<compile_context>
chip_gen: v7x
topology: tpu7x:2x2x1
jax: 0.10.0
libtpu: 0.0.40
codegen_flags: <defaults>
</compile_context>

<pallas_src>
import jax
import jax.numpy as jnp
from jax.experimental import pallas as pl
from jax.experimental.pallas import tpu as pltpu


# -----------------------------------------------------------------------------
# Global knobs
# -----------------------------------------------------------------------------

_M_TILE_TARGET = 1024        # rows (of N*H*W) per matmul tile; multiple of 8.

_VMEM_LIMIT = None


def _vmem_limit_bytes():
    """Scoped-VMEM budget: half of physical VMEM (64MiB v5e/v6e, 32MiB v7x)."""
    global _VMEM_LIMIT
    if _VMEM_LIMIT is None:
        try:
            cap = pltpu.get_tpu_info().vmem_capacity_bytes
            _VMEM_LIMIT = int(min(cap // 2, 96 * 1024 * 1024))
        except Exception:
            _VMEM_LIMIT = 32 * 1024 * 1024
    return _VMEM_LIMIT


def _tile_m(m, target=_M_TILE_TARGET):
    """Largest M tile <= target that is a multiple of 8 and divides m (if any)."""
    if m <= target:
        return m
    t = (target // 8) * 8
    while t >= 8:
        if m % t == 0:
            return t
        t -= 8
    return (target // 8) * 8   # ragged tail handled by Pallas block masking


# -----------------------------------------------------------------------------
# Pallas kernels
# -----------------------------------------------------------------------------

def _make_pw_kernel(act, has_gate, has_res):
    """Fused 1x1-conv: y = ((x * gate) @ w) * scale + bias [,ReLU][, + residual]."""

    def kernel(*refs):
        it = iter(refs)
        x_ref = next(it)
        g_ref = next(it) if has_gate else None
        w_ref = next(it)
        s_ref = next(it)
        b_ref = next(it)
        r_ref = next(it) if has_res else None
        o_ref = next(it)

        x = x_ref[0]                                    # (tm, K) bf16
        if g_ref is not None:
            x = x * g_ref[0]                            # SE gate, (1, K) broadcast
        y = jnp.dot(x, w_ref[...], preferred_element_type=jnp.float32)
        y = y * s_ref[...] + b_ref[...]                 # folded BN in f32
        if act:
            y = jnp.maximum(y, 0.0)
        if r_ref is not None:
            y = y + r_ref[0].astype(jnp.float32)        # fused residual skip
        o_ref[0] = y.astype(o_ref.dtype)

    return kernel


def _dw_s1_kernel(x_ref, w_ref, s_ref, b_ref, y_ref, m_ref):
    """3x3 depthwise (stride 1) + folded BN + ReLU on one image's halo plane.

    Taps are formed as in-VMEM slices of the padded plane (no 9x HBM taps).
    Also emits the SE squeeze (spatial mean) as a second, tiny output."""
    _, Ho, Wo, C = y_ref.shape
    x = x_ref[0].astype(jnp.float32)                    # (Ho+2, Wo+2, C)
    w = w_ref[...].astype(jnp.float32)                  # (9, C)
    acc = jnp.zeros((Ho, Wo, C), jnp.float32)
    for i in range(3):
        for j in range(3):
            acc = acc + x[i:i + Ho, j:j + Wo, :] * w[i * 3 + j][None, None, :]
    y = acc * s_ref[0][None, None, :] + b_ref[0][None, None, :]
    y = jnp.maximum(y, 0.0)
    y_ref[0] = y.astype(y_ref.dtype)
    m_ref[...] = jnp.mean(y, axis=(0, 1)).reshape(1, 1, C)


def _dw_s2_kernel(p00_ref, p01_ref, p10_ref, p11_ref, w_ref, s_ref, b_ref,
                  y_ref, m_ref):
    """3x3 depthwise (stride 2) + folded BN + ReLU from 4 even/odd phase planes.

    Phase decomposition makes every in-kernel tap slice unit-stride while total
    HBM read traffic stays ~1x the activation.  Also emits the SE squeeze."""
    _, Ho, Wo, C = y_ref.shape
    phases = [p00_ref[0].astype(jnp.float32), p01_ref[0].astype(jnp.float32),
              p10_ref[0].astype(jnp.float32), p11_ref[0].astype(jnp.float32)]
    w = w_ref[...].astype(jnp.float32)                  # (9, C)
    acc = jnp.zeros((Ho, Wo, C), jnp.float32)
    for i in range(3):
        for j in range(3):
            pr, a = i % 2, i // 2
            pc, b = j % 2, j // 2
            tap = phases[pr * 2 + pc][a:a + Ho, b:b + Wo, :]
            acc = acc + tap * w[i * 3 + j][None, None, :]
    y = acc * s_ref[0][None, None, :] + b_ref[0][None, None, :]
    y = jnp.maximum(y, 0.0)
    y_ref[0] = y.astype(y_ref.dtype)
    m_ref[...] = jnp.mean(y, axis=(0, 1)).reshape(1, 1, C)


# -----------------------------------------------------------------------------
# Wrappers (tiling / BlockSpecs; XLA only does cheap layout glue)
# -----------------------------------------------------------------------------

def pallas_pw(x3, w2d, scale, bias, *, act, gate=None, residual=None):
    """Fused pointwise conv + BN [+ReLU][+SE-gate on input][+residual add].

    x3: (N, M, K), w2d: (K, Cout), gate: (N, K), residual: (N, M, Cout).
    Grid = (batch, M tiles); weights / BN vectors stay VMEM-resident.
    """
    x3 = x3.astype(jnp.bfloat16)
    w2d = w2d.astype(jnp.bfloat16)
    N, M, K = x3.shape
    Cout = w2d.shape[1]
    tm = _tile_m(M)
    grid = (N, pl.cdiv(M, tm))

    inputs = [x3]
    in_specs = [pl.BlockSpec((1, tm, K), lambda n, m: (n, m, 0))]
    if gate is not None:
        inputs.append(gate.reshape(N, 1, K).astype(jnp.bfloat16))
        in_specs.append(pl.BlockSpec((1, 1, K), lambda n, m: (n, 0, 0)))
    inputs += [w2d,
               jnp.asarray(scale, jnp.float32).reshape(1, Cout),
               jnp.asarray(bias, jnp.float32).reshape(1, Cout)]
    in_specs += [pl.BlockSpec((K, Cout), lambda n, m: (0, 0)),
                 pl.BlockSpec((1, Cout), lambda n, m: (0, 0)),
                 pl.BlockSpec((1, Cout), lambda n, m: (0, 0))]
    if residual is not None:
        inputs.append(residual.astype(jnp.bfloat16))
        in_specs.append(pl.BlockSpec((1, tm, Cout), lambda n, m: (n, m, 0)))

    bytes_accessed = (x3.size + w2d.size + N * M * Cout) * 2 + 2 * Cout * 4
    if gate is not None:
        bytes_accessed += N * K * 2
    if residual is not None:
        bytes_accessed += N * M * Cout * 2
    cost = pl.CostEstimate(flops=2 * N * M * K * Cout, transcendentals=0,
                           bytes_accessed=int(bytes_accessed))

    # TODO(synk): Cout of 16/24/32 keeps stores lane-sparse (<128 lanes); a
    # lane-dense (channel-padded or transposed) output layout is a further
    # optimization not applied here.
    return pl.pallas_call(
        _make_pw_kernel(act, gate is not None, residual is not None),
        out_shape=jax.ShapeDtypeStruct((N, M, Cout), jnp.bfloat16),
        grid=grid,
        in_specs=in_specs,
        out_specs=pl.BlockSpec((1, tm, Cout), lambda n, m: (n, m, 0)),
        compiler_params=pltpu.CompilerParams(
            dimension_semantics=("parallel", "parallel"),
            vmem_limit_bytes=_vmem_limit_bytes()),
        cost_estimate=cost,
    )(*inputs)


def pallas_dw3x3_bn_relu(x, w_dw, scale, bias, *, stride):
    """Depthwise 3x3 + folded BN + ReLU.  Returns (y_nhwc bf16, pooled_mean f32).

    Grid = (batch,); one padded plane per image (halo in VMEM).  At very large
    resolutions a row-band halo tiling would be the next step.
    """
    N, H, W, C = x.shape
    x = x.astype(jnp.bfloat16)
    xp = jnp.pad(x, ((0, 0), (1, 1), (1, 1), (0, 0)))
    w9 = w_dw.reshape(9, C).astype(jnp.bfloat16)
    s = jnp.asarray(scale, jnp.float32).reshape(1, C)
    b = jnp.asarray(bias, jnp.float32).reshape(1, C)
    cp = pltpu.CompilerParams(dimension_semantics=("parallel",),
                              vmem_limit_bytes=_vmem_limit_bytes())

    if stride == 1:
        Ho, Wo = H, W
        Hp, Wp = H + 2, W + 2
        cost = pl.CostEstimate(
            flops=2 * 9 * N * Ho * Wo * C, transcendentals=0,
            bytes_accessed=int(xp.size * 2 + N * Ho * Wo * C * 2 + N * C * 4))
        y, pooled = pl.pallas_call(
            _dw_s1_kernel,
            out_shape=(jax.ShapeDtypeStruct((N, Ho, Wo, C), jnp.bfloat16),
                       jax.ShapeDtypeStruct((N, 1, C), jnp.float32)),
            grid=(N,),
            in_specs=[pl.BlockSpec((1, Hp, Wp, C), lambda n: (n, 0, 0, 0)),
                      pl.BlockSpec((9, C), lambda n: (0, 0)),
                      pl.BlockSpec((1, C), lambda n: (0, 0)),
                      pl.BlockSpec((1, C), lambda n: (0, 0))],
            out_specs=(pl.BlockSpec((1, Ho, Wo, C), lambda n: (n, 0, 0, 0)),
                       pl.BlockSpec((1, 1, C), lambda n: (n, 0, 0))),
            compiler_params=cp,
            cost_estimate=cost,
        )(xp, w9, s, b)
    elif stride == 2:
        Ho = (H - 1) // 2 + 1
        Wo = (W - 1) // 2 + 1
        p00 = xp[:, 0::2, 0::2, :]
        p01 = xp[:, 0::2, 1::2, :]
        p10 = xp[:, 1::2, 0::2, :]
        p11 = xp[:, 1::2, 1::2, :]
        cost = pl.CostEstimate(
            flops=2 * 9 * N * Ho * Wo * C, transcendentals=0,
            bytes_accessed=int(xp.size * 2 + N * Ho * Wo * C * 2 + N * C * 4))

        def plane_spec(p):
            shape = (1,) + tuple(p.shape[1:])
            return pl.BlockSpec(shape, lambda n: (n, 0, 0, 0))

        y, pooled = pl.pallas_call(
            _dw_s2_kernel,
            out_shape=(jax.ShapeDtypeStruct((N, Ho, Wo, C), jnp.bfloat16),
                       jax.ShapeDtypeStruct((N, 1, C), jnp.float32)),
            grid=(N,),
            in_specs=[plane_spec(p00), plane_spec(p01),
                      plane_spec(p10), plane_spec(p11),
                      pl.BlockSpec((9, C), lambda n: (0, 0)),
                      pl.BlockSpec((1, C), lambda n: (0, 0)),
                      pl.BlockSpec((1, C), lambda n: (0, 0))],
            out_specs=(pl.BlockSpec((1, Ho, Wo, C), lambda n: (n, 0, 0, 0)),
                       pl.BlockSpec((1, 1, C), lambda n: (n, 0, 0))),
            compiler_params=cp,
            cost_estimate=cost,
        )(p00, p01, p10, p11, w9, s, b)
    else:
        raise ValueError("only stride 1 or 2 supported")
    return y, pooled.reshape(N, C)


def se_gate(pooled, w1, b1, w2, b2):
    """SE excite path on the tiny (N, C) pooled vector (latency-bound -> JAX)."""
    s = jnp.maximum(pooled.astype(jnp.float32) @ w1 + b1, 0.0)
    return jax.nn.sigmoid(s @ w2 + b2)                  # (N, C) f32


def _im2col(x, kh, kw, stride, pad):
    """im2col for the (dense) stem conv only; all 1x1 convs skip this entirely."""
    N, H, W, C = x.shape
    xp = jnp.pad(x, ((0, 0), (pad, pad), (pad, pad), (0, 0)))
    Ho = (H + 2 * pad - kh) // stride + 1
    Wo = (W + 2 * pad - kw) // stride + 1
    cols = []
    for i in range(kh):
        for j in range(kw):
            cols.append(xp[:, i:i + (Ho - 1) * stride + 1:stride,
                           j:j + (Wo - 1) * stride + 1:stride, :])
    patches = jnp.concatenate(cols, axis=-1)            # (N, Ho, Wo, kh*kw*C)
    return patches.reshape(N, Ho * Wo, kh * kw * C), Ho, Wo


# -----------------------------------------------------------------------------
# Deterministic parameter construction
# -----------------------------------------------------------------------------

class _ParamGen:
    def __init__(self, key):
        self.key = key

    def _next(self):
        self.key, sub = jax.random.split(self.key)
        return sub

    def normal(self, shape, scale=0.1):
        return scale * jax.random.normal(self._next(), shape, jnp.float32)

    def bn(self, c, eps=1e-5):
        """Eval-mode BatchNorm folded to (scale, bias)."""
        gamma = 1.0 + 0.1 * jax.random.normal(self._next(), (c,), jnp.float32)
        beta = 0.05 * jax.random.normal(self._next(), (c,), jnp.float32)
        mean = 0.05 * jax.random.normal(self._next(), (c,), jnp.float32)
        var = 0.5 + jax.random.uniform(self._next(), (c,), jnp.float32)
        scale = gamma / jnp.sqrt(var + eps)
        bias = beta - mean * scale
        return scale, bias

    def se(self, c, rd):
        return (self.normal((c, rd)), self.normal((rd,), 0.01),
                self.normal((rd, c)), self.normal((c,), 0.01))


def make_params(key, in_chans=3, stem_size=32):
    pg = _ParamGen(key)
    bf = lambda a: a.astype(jnp.bfloat16)               # bf16 weights in HBM
    params = {
        'stem_w': bf(pg.normal((3, 3, in_chans, stem_size))),
        'stem_bn': pg.bn(stem_size),
        # block 0: DepthwiseSeparable 32 -> 16, stride 1, SE rd = 32//4 = 8
        'block0': dict(
            dw_w=bf(pg.normal((3, 3, 32))), dw_bn=pg.bn(32),
            se=pg.se(32, 8),
            pw_w=bf(pg.normal((1, 1, 32, 16))), pw_bn=pg.bn(16)),
        # block 1: InvertedResidual 16 -> 24, expand 6 (96), stride 2, SE rd = 4
        'block1': dict(
            exp_w=bf(pg.normal((1, 1, 16, 96))), exp_bn=pg.bn(96),
            dw_w=bf(pg.normal((3, 3, 96))), dw_bn=pg.bn(96),
            se=pg.se(96, 4),
            pw_w=bf(pg.normal((1, 1, 96, 24))), pw_bn=pg.bn(24)),
        # block 2: InvertedResidual 24 -> 24, expand 6 (144), stride 1, SE rd = 6, skip
        'block2': dict(
            exp_w=bf(pg.normal((1, 1, 24, 144))), exp_bn=pg.bn(144),
            dw_w=bf(pg.normal((3, 3, 144))), dw_bn=pg.bn(144),
            se=pg.se(144, 6),
            pw_w=bf(pg.normal((1, 1, 144, 24))), pw_bn=pg.bn(24)),
    }
    return params


# -----------------------------------------------------------------------------
# Forward pass (mirrors EfficientNetFeatures.forward, 'bottleneck' features)
# -----------------------------------------------------------------------------

def efficientnet_features_forward(x_nchw, params):
    """Returns a list of feature maps in NCHW, like the PyTorch module."""
    x = jnp.transpose(x_nchw, (0, 2, 3, 1)).astype(jnp.bfloat16)    # NCHW -> NHWC
    N, _, _, Cin = x.shape

    # stem: conv3x3 s2 + BN + ReLU (im2col glue in XLA, matmul+BN+ReLU in Pallas)
    patches, Ho, Wo = _im2col(x, 3, 3, 2, 1)
    x = pallas_pw(patches, params['stem_w'].reshape(9 * Cin, -1),
                  *params['stem_bn'], act=True).reshape(N, Ho, Wo, -1)
    features = [x]

    # block 0: depthwise-separable (dw s1 -> SE -> pw 32->16, no act, no skip)
    p = params['block0']
    y, pooled = pallas_dw3x3_bn_relu(x, p['dw_w'], *p['dw_bn'], stride=1)
    g = se_gate(pooled, *p['se'])
    H, W, C = y.shape[1:]
    x = pallas_pw(y.reshape(N, H * W, C), p['pw_w'].reshape(C, -1),
                  *p['pw_bn'], act=False, gate=g).reshape(N, H, W, -1)
    features.append(x)

    # block 1: inverted residual, stride 2 (pw 16->96 -> dw s2 -> SE -> pw 96->24)
    p = params['block1']
    H, W, C = x.shape[1:]
    h = pallas_pw(x.reshape(N, H * W, C), p['exp_w'].reshape(C, -1),
                  *p['exp_bn'], act=True).reshape(N, H, W, -1)
    y, pooled = pallas_dw3x3_bn_relu(h, p['dw_w'], *p['dw_bn'], stride=2)
    g = se_gate(pooled, *p['se'])
    H, W, C = y.shape[1:]
    x = pallas_pw(y.reshape(N, H * W, C), p['pw_w'].reshape(C, -1),
                  *p['pw_bn'], act=False, gate=g).reshape(N, H, W, -1)
    features.append(x)

    # block 2: inverted residual, stride 1, residual skip fused into the projection
    p = params['block2']
    H, W, C = x.shape[1:]
    skip = x
    h = pallas_pw(x.reshape(N, H * W, C), p['exp_w'].reshape(C, -1),
                  *p['exp_bn'], act=True).reshape(N, H, W, -1)
    y, pooled = pallas_dw3x3_bn_relu(h, p['dw_w'], *p['dw_bn'], stride=1)
    g = se_gate(pooled, *p['se'])
    Cm = y.shape[-1]
    x = pallas_pw(y.reshape(N, H * W, Cm), p['pw_w'].reshape(Cm, -1),
                  *p['pw_bn'], act=False, gate=g,
                  residual=skip.reshape(N, H * W, C)).reshape(N, H, W, -1)
    features.append(x)

    # TODO(synk): FeatureHooks path (feature_location != 'bottleneck') not implemented.
    return [jnp.transpose(f, (0, 3, 1, 2)).astype(jnp.float32) for f in features]


# -----------------------------------------------------------------------------
# Demo
# -----------------------------------------------------------------------------

if __name__ == "__main__":
    key = jax.random.PRNGKey(0)
    k_x, k_p = jax.random.split(key)

    x = jax.random.normal(k_x, (2, 3, 16, 16), jnp.float32)         # NCHW input
    params = make_params(k_p)

    fwd = jax.jit(efficientnet_features_forward)
    feats = fwd(x, params)
    feats = [jax.block_until_ready(f) for f in feats]

    expected = [(2, 32, 8, 8), (2, 16, 8, 8), (2, 24, 4, 4), (2, 24, 4, 4)]
    assert [tuple(f.shape) for f in feats] == expected
    assert all(bool(jnp.all(jnp.isfinite(f))) for f in feats)

    print("KERNEL_OK")
</pallas_src>

<mosaic_0001>
module attributes {stable_mosaic.version = 11 : i64} {
  func.func @kernel(%arg0: i32, %arg1: i32, %arg2: memref<1x64x27xbf16, #tpu.memory_space<vmem>>, %arg3: memref<27x32xbf16, #tpu.memory_space<vmem>>, %arg4: memref<1x32xf32, #tpu.memory_space<vmem>>, %arg5: memref<1x32xf32, #tpu.memory_space<vmem>>, %arg6: memref<1x64x32xbf16, #tpu.memory_space<vmem>>) attributes {dimension_semantics = [#tpu.dimension_semantics<parallel>, #tpu.dimension_semantics<parallel>], iteration_bounds = array<i64: 2, 1>, scalar_prefetch = 0 : i64, scratch_operands = 0 : i64, tpu.core_type = #tpu.core_type<tc>, window_params = [{transform_indices = @transform_0, window_bounds = array<i64: 1, 64, 27>}, {pipeline_mode = #tpu.pipeline_mode<synchronous>, transform_indices = @transform_1, window_bounds = array<i64: 27, 32>}, {pipeline_mode = #tpu.pipeline_mode<synchronous>, transform_indices = @transform_2, window_bounds = array<i64: 1, 32>}, {pipeline_mode = #tpu.pipeline_mode<synchronous>, transform_indices = @transform_3, window_bounds = array<i64: 1, 32>}, {transform_indices = @transform_4, window_bounds = array<i64: 1, 64, 32>}]} {
    %c0 = arith.constant 0 : index
    %c0_0 = arith.constant 0 : index
    %c0_1 = arith.constant 0 : index
    %0 = vector.load %arg2[%c0, %c0_0, %c0_1] : memref<1x64x27xbf16, #tpu.memory_space<vmem>>, vector<1x64x27xbf16>
    %1 = vector.shape_cast %0 : vector<1x64x27xbf16> to vector<64x27xbf16>
    %c0_2 = arith.constant 0 : index
    %c0_3 = arith.constant 0 : index
    %2 = vector.load %arg3[%c0_2, %c0_3] : memref<27x32xbf16, #tpu.memory_space<vmem>>, vector<27x32xbf16>
    %cst = arith.constant dense<0.000000e+00> : vector<64x32xf32>
    %3 = tpu.matmul %1, %2, %cst {dimension_numbers = #tpu.dot_dimension_numbers<[1], [0], [0], [1], [0, 0, 1, 1], [], []>} : vector<64x27xbf16>, vector<27x32xbf16>, vector<64x32xf32> -> vector<64x32xf32>
    %c0_4 = arith.constant 0 : index
    %c0_5 = arith.constant 0 : index
    %4 = vector.load %arg4[%c0_4, %c0_5] : memref<1x32xf32, #tpu.memory_space<vmem>>, vector<1x32xf32>
    %5 = vector.broadcast %4 : vector<1x32xf32> to vector<64x32xf32>
    %6 = arith.mulf %3, %5 : vector<64x32xf32>
    %c0_6 = arith.constant 0 : index
    %c0_7 = arith.constant 0 : index
    %7 = vector.load %arg5[%c0_6, %c0_7] : memref<1x32xf32, #tpu.memory_space<vmem>>, vector<1x32xf32>
    %8 = vector.broadcast %7 : vector<1x32xf32> to vector<64x32xf32>
    %9 = arith.addf %6, %8 : vector<64x32xf32>
    %cst_8 = arith.constant 0.000000e+00 : f32
    %10 = vector.broadcast %cst_8 : f32 to vector<64x32xf32>
    %11 = arith.maximumf %9, %10 : vector<64x32xf32>
    %12 = arith.truncf %11 : vector<64x32xf32> to vector<64x32xbf16>
    %c0_9 = arith.constant 0 : index
    %c0_10 = arith.constant 0 : index
    %c0_11 = arith.constant 0 : index
    %13 = vector.load %arg6[%c0_9, %c0_10, %c0_11] : memref<1x64x32xbf16, #tpu.memory_space<vmem>>, vector<1x64x32xbf16>
    %14 = vector.shape_cast %13 : vector<1x64x32xbf16> to vector<64x32xbf16>
    %15 = vector.shape_cast %12 : vector<64x32xbf16> to vector<1x64x32xbf16>
    tpu.vector_store %arg6[%c0_9, %c0_10, %c0_11], %15 {strides = array<i32>} : memref<1x64x32xbf16, #tpu.memory_space<vmem>>, vector<1x64x32xbf16>,
    return
  }
  func.func @transform_0(%arg0: i32, %arg1: i32) -> (i32, i32, i32) {
    %c0_i32 = arith.constant 0 : i32
    %c0_i32_0 = arith.constant 0 : i32
    return %arg0, %arg1, %c0_i32 : i32, i32, i32
  }
  func.func @transform_1(%arg0: i32, %arg1: i32) -> (i32, i32) {
    %c0_i32 = arith.constant 0 : i32
    %c0_i32_0 = arith.constant 0 : i32
    %c0_i32_1 = arith.constant 0 : i32
    return %c0_i32, %c0_i32_0 : i32, i32
  }
  func.func @transform_2(%arg0: i32, %arg1: i32) -> (i32, i32) {
    %c0_i32 = arith.constant 0 : i32
    %c0_i32_0 = arith.constant 0 : i32
    %c0_i32_1 = arith.constant 0 : i32
    return %c0_i32, %c0_i32_0 : i32, i32
  }
  func.func @transform_3(%arg0: i32, %arg1: i32) -> (i32, i32) {
    %c0_i32 = arith.constant 0 : i32
    %c0_i32_0 = arith.constant 0 : i32
    %c0_i32_1 = arith.constant 0 : i32
    return %c0_i32, %c0_i32_0 : i32, i32
  }
  func.func @transform_4(%arg0: i32, %arg1: i32) -> (i32, i32, i32) {
    %c0_i32 = arith.constant 0 : i32
    %c0_i32_0 = arith.constant 0 : i32
    return %arg0, %arg1, %c0_i32 : i32, i32, i32
  }
}

module attributes {stable_mosaic.version = 11 : i64} {
  func.func @_dw_s1_kernel(%arg0: i32, %arg1: memref<1x10x10x32xbf16, #tpu.memory_space<vmem>>, %arg2: memref<9x32xbf16, #tpu.memory_space<vmem>>, %arg3: memref<1x32xf32, #tpu.memory_space<vmem>>, %arg4: memref<1x32xf32, #tpu.memory_space<vmem>>, %arg5: memref<1x8x8x32xbf16, #tpu.memory_space<vmem>>, %arg6: memref<1x1x32xf32, #tpu.memory_space<vmem>>) attributes {dimension_semantics = [#tpu.dimension_semantics<parallel>], iteration_bounds = array<i64: 2>, scalar_prefetch = 0 : i64, scratch_operands = 0 : i64, tpu.core_type = #tpu.core_type<tc>, window_params = [{transform_indices = @transform_0, window_bounds = array<i64: 1, 10, 10, 32>}, {pipeline_mode = #tpu.pipeline_mode<synchronous>, transform_indices = @transform_1, window_bounds = array<i64: 9, 32>}, {pipeline_mode = #tpu.pipeline_mode<synchronous>, transform_indices = @transform_2, window_bounds = array<i64: 1, 32>}, {pipeline_mode = #tpu.pipeline_mode<synchronous>, transform_indices = @transform_3, window_bounds = array<i64: 1, 32>}, {transform_indices = @transform_4, window_bounds = array<i64: 1, 8, 8, 32>}, {transform_indices = @transform_5, window_bounds = array<i64: 1, 1, 32>}]} {
    %c0 = arith.constant 0 : index
    %c0_0 = arith.constant 0 : index
    %c0_1 = arith.constant 0 : index
    %c0_2 = arith.constant 0 : index
    %0 = vector.load %arg1[%c0, %c0_0, %c0_1, %c0_2] : memref<1x10x10x32xbf16, #tpu.memory_space<vmem>>, vector<1x10x10x32xbf16>
    %1 = vector.shape_cast %0 : vector<1x10x10x32xbf16> to vector<10x10x32xbf16>
    %2 = arith.extf %1 : vector<10x10x32xbf16> to vector<10x10x32xf32>
    %c0_3 = arith.constant 0 : index
    %c0_4 = arith.constant 0 : index
    %3 = vector.load %arg2[%c0_3, %c0_4] : memref<9x32xbf16, #tpu.memory_space<vmem>>, vector<9x32xbf16>
    %4 = arith.extf %3 : vector<9x32xbf16> to vector<9x32xf32>
    %cst = arith.constant 0.000000e+00 : f32
    %5 = vector.broadcast %cst : f32 to vector<8x8x32xf32>
    %6 = vector.extract_strided_slice %2 {offsets = [0, 0, 0], sizes = [8, 8, 32], strides = [1, 1, 1]} : vector<10x10x32xf32> to vector<8x8x32xf32>
    %7 = vector.extract_strided_slice %4 {offsets = [0, 0], sizes = [1, 32], strides = [1, 1]} : vector<9x32xf32> to vector<1x32xf32>
    %8 = vector.shape_cast %7 : vector<1x32xf32> to vector<32xf32>
    %9 = vector.shape_cast %8 : vector<32xf32> to vector<1x1x32xf32>
    %10 = vector.broadcast %9 : vector<1x1x32xf32> to vector<8x8x32xf32>
    %11 = arith.mulf %6, %10 : vector<8x8x32xf32>
    %12 = arith.addf %5, %11 : vector<8x8x32xf32>
    %13 = vector.extract_strided_slice %2 {offsets = [0, 1, 0], sizes = [8, 8, 32], strides = [1, 1, 1]} : vector<10x10x32xf32> to vector<8x8x32xf32>
    %14 = vector.extract_strided_slice %4 {offsets = [1, 0], sizes = [1, 32], strides = [1, 1]} : vector<9x32xf32> to vector<1x32xf32>
    %15 = vector.shape_cast %14 : vector<1x32xf32> to vector<32xf32>
    %16 = vector.shape_cast %15 : vector<32xf32> to vector<1x1x32xf32>
    %17 = vector.broadcast %16 : vector<1x1x32xf32> to vector<8x8x32xf32>
    %18 = arith.mulf %13, %17 : vector<8x8x32xf32>
    %19 = arith.addf %12, %18 : vector<8x8x32xf32>
    %20 = vector.extract_strided_slice %2 {offsets = [0, 2, 0], sizes = [8, 8, 32], strides = [1, 1, 1]} : vector<10x10x32xf32> to vector<8x8x32xf32>
    %21 = vector.extract_strided_slice %4 {offsets = [2, 0], sizes = [1, 32], strides = [1, 1]} : vector<9x32xf32> to vector<1x32xf32>
    %22 = vector.shape_cast %21 : vector<1x32xf32> to vector<32xf32>
    %23 = vector.shape_cast %22 : vector<32xf32> to vector<1x1x32xf32>
    %24 = vector.broadcast %23 : vector<1x1x32xf32> to vector<8x8x32xf32>
    %25 = arith.mulf %20, %24 : vector<8x8x32xf32>
    %26 = arith.addf %19, %25 : vector<8x8x32xf32>
    %27 = vector.extract_strided_slice %2 {offsets = [1, 0, 0], sizes = [8, 8, 32], strides = [1, 1, 1]} : vector<10x10x32xf32> to vector<8x8x32xf32>
    %28 = vector.extract_strided_slice %4 {offsets = [3, 0], sizes = [1, 32], strides = [1, 1]} : vector<9x32xf32> to vector<1x32xf32>
    %29 = vector.shape_cast %28 : vector<1x32xf32> to vector<32xf32>
    %30 = vector.shape_cast %29 : vector<32xf32> to vector<1x1x32xf32>
    %31 = vector.broadcast %30 : vector<1x1x32xf32> to vector<8x8x32xf32>
    %32 = arith.mulf %27, %31 : vector<8x8x32xf32>
    %33 = arith.addf %26, %32 : vector<8x8x32xf32>
    %34 = vector.extract_strided_slice %2 {offsets = [1, 1, 0], sizes = [8, 8, 32], strides = [1, 1, 1]} : vector<10x10x32xf32> to vector<8x8x32xf32>
    %35 = vector.extract_strided_slice %4 {offsets = [4, 0], sizes = [1, 32], strides = [1, 1]} : vector<9x32xf32> to vector<1x32xf32>
    %36 = vector.shape_cast %35 : vector<1x32xf32> to vector<32xf32>
    %37 = vector.shape_cast %36 : vector<32xf32> to vector<1x1x32xf32>
    %38 = vector.broadcast %37 : vector<1x1x32xf32> to vector<8x8x32xf32>
    %39 = arith.mulf %34, %38 : vector<8x8x32xf32>
    %40 = arith.addf %33, %39 : vector<8x8x32xf32>
    %41 = vector.extract_strided_slice %2 {offsets = [1, 2, 0], sizes = [8, 8, 32], strides = [1, 1, 1]} : vector<10x10x32xf32> to vector<8x8x32xf32>
    %42 = vector.extract_strided_slice %4 {offsets = [5, 0], sizes = [1, 32], strides = [1, 1]} : vector<9x32xf32> to vector<1x32xf32>
    %43 = vector.shape_cast %42 : vector<1x32xf32> to vector<32xf32>
    %44 = vector.shape_cast %43 : vector<32xf32> to vector<1x1x32xf32>
    %45 = vector.broadcast %44 : vector<1x1x32xf32> to vector<8x8x32xf32>
    %46 = arith.mulf %41, %45 : vector<8x8x32xf32>
    %47 = arith.addf %40, %46 : vector<8x8x32xf32>
    %48 = vector.extract_strided_slice %2 {offsets = [2, 0, 0], sizes = [8, 8, 32], strides = [1, 1, 1]} : vector<10x10x32xf32> to vector<8x8x32xf32>
    %49 = vector.extract_strided_slice %4 {offsets = [6, 0], sizes = [1, 32], strides = [1, 1]} : vector<9x32xf32> to vector<1x32xf32>
    %50 = vector.shape_cast %49 : vector<1x32xf32> to vector<32xf32>
    %51 = vector.shape_cast %50 : vector<32xf32> to vector<1x1x32xf32>
    %52 = vector.broadcast %51 : vector<1x1x32xf32> to vector<8x8x32xf32>
    %53 = arith.mulf %48, %52 : vector<8x8x32xf32>
    %54 = arith.addf %47, %53 : vector<8x8x32xf32>
    %55 = vector.extract_strided_slice %2 {offsets = [2, 1, 0], sizes = [8, 8, 32], strides = [1, 1, 1]} : vector<10x10x32xf32> to vector<8x8x32xf32>
    %56 = vector.extract_strided_slice %4 {offsets = [7, 0], sizes = [1, 32], strides = [1, 1]} : vector<9x32xf32> to vector<1x32xf32>
    %57 = vector.shape_cast %56 : vector<1x32xf32> to vector<32xf32>
    %58 = vector.shape_cast %57 : vector<32xf32> to vector<1x1x32xf32>
    %59 = vector.broadcast %58 : vector<1x1x32xf32> to vector<8x8x32xf32>
    %60 = arith.mulf %55, %59 : vector<8x8x32xf32>
    %61 = arith.addf %54, %60 : vector<8x8x32xf32>
    %62 = vector.extract_strided_slice %2 {offsets = [2, 2, 0], sizes = [8, 8, 32], strides = [1, 1, 1]} : vector<10x10x32xf32> to vector<8x8x32xf32>
    %63 = vector.extract_strided_slice %4 {offsets = [8, 0], sizes = [1, 32], strides = [1, 1]} : vector<9x32xf32> to vector<1x32xf32>
    %64 = vector.shape_cast %63 : vector<1x32xf32> to vector<32xf32>
    %65 = vector.shape_cast %64 : vector<32xf32> to vector<1x1x32xf32>
    %66 = vector.broadcast %65 : vector<1x1x32xf32> to vector<8x8x32xf32>
    %67 = arith.mulf %62, %66 : vector<8x8x32xf32>
    %68 = arith.addf %61, %67 : vector<8x8x32xf32>
    %c0_5 = arith.constant 0 : index
    %c0_6 = arith.constant 0 : index
    %69 = vector.load %arg3[%c0_5, %c0_6] : memref<1x32xf32, #tpu.memory_space<vmem>>, vector<1x32xf32>
    %70 = vector.shape_cast %69 : vector<1x32xf32> to vector<32xf32>
    %71 = vector.shape_cast %70 : vector<32xf32> to vector<1x1x32xf32>
    %72 = vector.broadcast %71 : vector<1x1x32xf32> to vector<8x8x32xf32>
    %73 = arith.mulf %68, %72 : vector<8x8x32xf32>
    %c0_7 = arith.constant 0 : index
    %c0_8 = arith.constant 0 : index
    %74 = vector.load %arg4[%c0_7, %c0_8] : memref<1x32xf32, #tpu.memory_space<vmem>>, vector<1x32xf32>
    %75 = vector.shape_cast %74 : vector<1x32xf32> to vector<32xf32>
    %76 = vector.shape_cast %75 : vector<32xf32> to vector<1x1x32xf32>
    %77 = vector.broadcast %76 : vector<1x1x32xf32> to vector<8x8x32xf32>
    %78 = arith.addf %73, %77 : vector<8x8x32xf32>
    %cst_9 = arith.constant 0.000000e+00 : f32
    %79 = vector.broadcast %cst_9 : f32 to vector<8x8x32xf32>
    %80 = arith.maximumf %78, %79 : vector<8x8x32xf32>
    %81 = arith.truncf %80 : vector<8x8x32xf32> to vector<8x8x32xbf16>
    %c0_10 = arith.constant 0 : index
    %c0_11 = arith.constant 0 : index
    %c0_12 = arith.constant 0 : index
    %c0_13 = arith.constant 0 : index
    %82 = vector.load %arg5[%c0_10, %c0_11, %c0_12, %c0_13] : memref<1x8x8x32xbf16, #tpu.memory_space<vmem>>, vector<1x8x8x32xbf16>
    %83 = vector.shape_cast %82 : vector<1x8x8x32xbf16> to vector<8x8x32xbf16>
    %84 = vector.shape_cast %81 : vector<8x8x32xbf16> to vector<1x8x8x32xbf16>
    tpu.vector_store %arg5[%c0_10, %c0_11, %c0_12, %c0_13], %84 {strides = array<i32>} : memref<1x8x8x32xbf16, #tpu.memory_space<vmem>>, vector<1x8x8x32xbf16>,
    %cst_14 = arith.constant dense<0.000000e+00> : vector<32xf32>
    %85 = vector.multi_reduction <add>, %80, %cst_14 [0, 1] : vector<8x8x32xf32> to vector<32xf32>
    %cst_15 = arith.constant 6.400000e+01 : f32
    %86 = vector.broadcast %cst_15 : f32 to vector<32xf32>
    %87 = arith.divf %85, %86 : vector<32xf32>
    %88 = vector.shape_cast %87 : vector<32xf32> to vector<1x1x32xf32>
    %c0_16 = arith.constant 0 : index
    %c0_17 = arith.constant 0 : index
    %c0_18 = arith.constant 0 : index
    %89 = vector.load %arg6[%c0_16, %c0_17, %c0_18] : memref<1x1x32xf32, #tpu.memory_space<vmem>>, vector<1x1x32xf32>
    tpu.vector_store %arg6[%c0_16, %c0_17, %c0_18], %88 {strides = array<i32>} : memref<1x1x32xf32, #tpu.memory_space<vmem>>, vector<1x1x32xf32>,
    return
  }
  func.func @transform_0(%arg0: i32) -> (i32, i32, i32, i32) {
    %c0_i32 = arith.constant 0 : i32
    %c0_i32_0 = arith.constant 0 : i32
    %c0_i32_1 = arith.constant 0 : i32
    %c0_i32_2 = arith.constant 0 : i32
    return %arg0, %c0_i32, %c0_i32_0, %c0_i32_1 : i32, i32, i32, i32
  }
  func.func @transform_1(%arg0: i32) -> (i32, i32) {
    %c0_i32 = arith.constant 0 : i32
    %c0_i32_0 = arith.constant 0 : i32
    %c0_i32_1 = arith.constant 0 : i32
    return %c0_i32, %c0_i32_0 : i32, i32
  }
  func.func @transform_2(%arg0: i32) -> (i32, i32) {
    %c0_i32 = arith.constant 0 : i32
    %c0_i32_0 = arith.constant 0 : i32
    %c0_i32_1 = arith.constant 0 : i32
    return %c0_i32, %c0_i32_0 : i32, i32
  }
  func.func @transform_3(%arg0: i32) -> (i32, i32) {
    %c0_i32 = arith.constant 0 : i32
    %c0_i32_0 = arith.constant 0 : i32
    %c0_i32_1 = arith.constant 0 : i32
    return %c0_i32, %c0_i32_0 : i32, i32
  }
  func.func @transform_4(%arg0: i32) -> (i32, i32, i32, i32) {
    %c0_i32 = arith.constant 0 : i32
    %c0_i32_0 = arith.constant 0 : i32
    %c0_i32_1 = arith.constant 0 : i32
    %c0_i32_2 = arith.constant 0 : i32
    return %arg0, %c0_i32, %c0_i32_0, %c0_i32_1 : i32, i32, i32, i32
  }
  func.func @transform_5(%arg0: i32) -> (i32, i32, i32) {
    %c0_i32 = arith.constant 0 : i32
    %c0_i32_0 = arith.constant 0 : i32
    %c0_i32_1 = arith.constant 0 : i32
    return %arg0, %c0_i32, %c0_i32_0 : i32, i32, i32
  }
}

module attributes {stable_mosaic.version = 11 : i64} {
  func.func @kernel(%arg0: i32, %arg1: i32, %arg2: memref<1x64x32xbf16, #tpu.memory_space<vmem>>, %arg3: memref<1x1x32xbf16, #tpu.memory_space<vmem>>, %arg4: memref<32x16xbf16, #tpu.memory_space<vmem>>, %arg5: memref<1x16xf32, #tpu.memory_space<vmem>>, %arg6: memref<1x16xf32, #tpu.memory_space<vmem>>, %arg7: memref<1x64x16xbf16, #tpu.memory_space<vmem>>) attributes {dimension_semantics = [#tpu.dimension_semantics<parallel>, #tpu.dimension_semantics<parallel>], iteration_bounds = array<i64: 2, 1>, scalar_prefetch = 0 : i64, scratch_operands = 0 : i64, tpu.core_type = #tpu.core_type<tc>, window_params = [{transform_indices = @transform_0, window_bounds = array<i64: 1, 64, 32>}, {transform_indices = @transform_1, window_bounds = array<i64: 1, 1, 32>}, {pipeline_mode = #tpu.pipeline_mode<synchronous>, transform_indices = @transform_2, window_bounds = array<i64: 32, 16>}, {pipeline_mode = #tpu.pipeline_mode<synchronous>, transform_indices = @transform_3, window_bounds = array<i64: 1, 16>}, {pipeline_mode = #tpu.pipeline_mode<synchronous>, transform_indices = @transform_4, window_bounds = array<i64: 1, 16>}, {transform_indices = @transform_5, window_bounds = array<i64: 1, 64, 16>}]} {
    %c0 = arith.constant 0 : index
    %c0_0 = arith.constant 0 : index
    %c0_1 = arith.constant 0 : index
    %0 = vector.load %arg2[%c0, %c0_0, %c0_1] : memref<1x64x32xbf16, #tpu.memory_space<vmem>>, vector<1x64x32xbf16>
    %1 = vector.shape_cast %0 : vector<1x64x32xbf16> to vector<64x32xbf16>
    %c0_2 = arith.constant 0 : index
    %c0_3 = arith.constant 0 : index
    %c0_4 = arith.constant 0 : index
    %2 = vector.load %arg3[%c0_2, %c0_3, %c0_4] : memref<1x1x32xbf16, #tpu.memory_space<vmem>>, vector<1x1x32xbf16>
    %3 = vector.shape_cast %2 : vector<1x1x32xbf16> to vector<1x32xbf16>
    %4 = vector.broadcast %3 : vector<1x32xbf16> to vector<64x32xbf16>
    %5 = arith.mulf %1, %4 : vector<64x32xbf16>
    %c0_5 = arith.constant 0 : index
    %c0_6 = arith.constant 0 : index
    %6 = vector.load %arg4[%c0_5, %c0_6] : memref<32x16xbf16, #tpu.memory_space<vmem>>, vector<32x16xbf16>
    %cst = arith.constant dense<0.000000e+00> : vector<64x16xf32>
    %7 = tpu.matmul %5, %6, %cst {dimension_numbers = #tpu.dot_dimension_numbers<[1], [0], [0], [1], [0, 0, 1, 1], [], []>} : vector<64x32xbf16>, vector<32x16xbf16>, vector<64x16xf32> -> vector<64x16xf32>
    %c0_7 = arith.constant 0 : index
    %c0_8 = arith.constant 0 : index
    %8 = vector.load %arg5[%c0_7, %c0_8] : memref<1x16xf32, #tpu.memory_space<vmem>>, vector<1x16xf32>
    %9 = vector.broadcast %8 : vector<1x16xf32> to vector<64x16xf32>
    %10 = arith.mulf %7, %9 : vector<64x16xf32>
    %c0_9 = arith.constant 0 : index
    %c0_10 = arith.constant 0 : index
    %11 = vector.load %arg6[%c0_9, %c0_10] : memref<1x16xf32, #tpu.memory_space<vmem>>, vector<1x16xf32>
    %12 = vector.broadcast %11 : vector<1x16xf32> to vector<64x16xf32>
    %13 = arith.addf %10, %12 : vector<64x16xf32>
    %14 = arith.truncf %13 : vector<64x16xf32> to vector<64x16xbf16>
    %c0_11 = arith.constant 0 : index
    %c0_12 = arith.constant 0 : index
    %c0_13 = arith.constant 0 : index
    %15 = vector.load %arg7[%c0_11, %c0_12, %c0_13] : memref<1x64x16xbf16, #tpu.memory_space<vmem>>, vector<1x64x16xbf16>
    %16 = vector.shape_cast %15 : vector<1x64x16xbf16> to vector<64x16xbf16>
    %17 = vector.shape_cast %14 : vector<64x16xbf16> to vector<1x64x16xbf16>
    tpu.vector_store %arg7[%c0_11, %c0_12, %c0_13], %17 {strides = array<i32>} : memref<1x64x16xbf16, #tpu.memory_space<vmem>>, vector<1x64x16xbf16>,
    return
  }
  func.func @transform_0(%arg0: i32, %arg1: i32) -> (i32, i32, i32) {
    %c0_i32 = arith.constant 0 : i32
    %c0_i32_0 = arith.constant 0 : i32
    return %arg0, %arg1, %c0_i32 : i32, i32, i32
  }
  func.func @transform_1(%arg0: i32, %arg1: i32) -> (i32, i32, i32) {
    %c0_i32 = arith.constant 0 : i32
    %c0_i32_0 = arith.constant 0 : i32
    %c0_i32_1 = arith.constant 0 : i32
    return %arg0, %c0_i32, %c0_i32_0 : i32, i32, i32
  }
  func.func @transform_2(%arg0: i32, %arg1: i32) -> (i32, i32) {
    %c0_i32 = arith.constant 0 : i32
    %c0_i32_0 = arith.constant 0 : i32
    %c0_i32_1 = arith.constant 0 : i32
    return %c0_i32, %c0_i32_0 : i32, i32
  }
  func.func @transform_3(%arg0: i32, %arg1: i32) -> (i32, i32) {
    %c0_i32 = arith.constant 0 : i32
    %c0_i32_0 = arith.constant 0 : i32
    %c0_i32_1 = arith.constant 0 : i32
    return %c0_i32, %c0_i32_0 : i32, i32
  }
  func.func @transform_4(%arg0: i32, %arg1: i32) -> (i32, i32) {
    %c0_i32 = arith.constant 0 : i32
    %c0_i32_0 = arith.constant 0 : i32
    %c0_i32_1 = arith.constant 0 : i32
    return %c0_i32, %c0_i32_0 : i32, i32
  }
  func.func @transform_5(%arg0: i32, %arg1: i32) -> (i32, i32, i32) {
    %c0_i32 = arith.constant 0 : i32
    %c0_i32_0 = arith.constant 0 : i32
    return %arg0, %arg1, %c0_i32 : i32, i32, i32
  }
}

module attributes {stable_mosaic.version = 11 : i64} {
  func.func @kernel(%arg0: i32, %arg1: i32, %arg2: memref<1x64x16xbf16, #tpu.memory_space<vmem>>, %arg3: memref<16x96xbf16, #tpu.memory_space<vmem>>, %arg4: memref<1x96xf32, #tpu.memory_space<vmem>>, %arg5: memref<1x96xf32, #tpu.memory_space<vmem>>, %arg6: memref<1x64x96xbf16, #tpu.memory_space<vmem>>) attributes {dimension_semantics = [#tpu.dimension_semantics<parallel>, #tpu.dimension_semantics<parallel>], iteration_bounds = array<i64: 2, 1>, scalar_prefetch = 0 : i64, scratch_operands = 0 : i64, tpu.core_type = #tpu.core_type<tc>, window_params = [{transform_indices = @transform_0, window_bounds = array<i64: 1, 64, 16>}, {pipeline_mode = #tpu.pipeline_mode<synchronous>, transform_indices = @transform_1, window_bounds = array<i64: 16, 96>}, {pipeline_mode = #tpu.pipeline_mode<synchronous>, transform_indices = @transform_2, window_bounds = array<i64: 1, 96>}, {pipeline_mode = #tpu.pipeline_mode<synchronous>, transform_indices = @transform_3, window_bounds = array<i64: 1, 96>}, {transform_indices = @transform_4, window_bounds = array<i64: 1, 64, 96>}]} {
    %c0 = arith.constant 0 : index
    %c0_0 = arith.constant 0 : index
    %c0_1 = arith.constant 0 : index
    %0 = vector.load %arg2[%c0, %c0_0, %c0_1] : memref<1x64x16xbf16, #tpu.memory_space<vmem>>, vector<1x64x16xbf16>
    %1 = vector.shape_cast %0 : vector<1x64x16xbf16> to vector<64x16xbf16>
    %c0_2 = arith.constant 0 : index
    %c0_3 = arith.constant 0 : index
    %2 = vector.load %arg3[%c0_2, %c0_3] : memref<16x96xbf16, #tpu.memory_space<vmem>>, vector<16x96xbf16>
    %cst = arith.constant dense<0.000000e+00> : vector<64x96xf32>
    %3 = tpu.matmul %1, %2, %cst {dimension_numbers = #tpu.dot_dimension_numbers<[1], [0], [0], [1], [0, 0, 1, 1], [], []>} : vector<64x16xbf16>, vector<16x96xbf16>, vector<64x96xf32> -> vector<64x96xf32>
    %c0_4 = arith.constant 0 : index
    %c0_5 = arith.constant 0 : index
    %4 = vector.load %arg4[%c0_4, %c0_5] : memref<1x96xf32, #tpu.memory_space<vmem>>, vector<1x96xf32>
    %5 = vector.broadcast %4 : vector<1x96xf32> to vector<64x96xf32>
    %6 = arith.mulf %3, %5 : vector<64x96xf32>
    %c0_6 = arith.constant 0 : index
    %c0_7 = arith.constant 0 : index
    %7 = vector.load %arg5[%c0_6, %c0_7] : memref<1x96xf32, #tpu.memory_space<vmem>>, vector<1x96xf32>
    %8 = vector.broadcast %7 : vector<1x96xf32> to vector<64x96xf32>
    %9 = arith.addf %6, %8 : vector<64x96xf32>
    %cst_8 = arith.constant 0.000000e+00 : f32
    %10 = vector.broadcast %cst_8 : f32 to vector<64x96xf32>
    %11 = arith.maximumf %9, %10 : vector<64x96xf32>
    %12 = arith.truncf %11 : vector<64x96xf32> to vector<64x96xbf16>
    %c0_9 = arith.constant 0 : index
    %c0_10 = arith.constant 0 : index
    %c0_11 = arith.constant 0 : index
    %13 = vector.load %arg6[%c0_9, %c0_10, %c0_11] : memref<1x64x96xbf16, #tpu.memory_space<vmem>>, vector<1x64x96xbf16>
    %14 = vector.shape_cast %13 : vector<1x64x96xbf16> to vector<64x96xbf16>
    %15 = vector.shape_cast %12 : vector<64x96xbf16> to vector<1x64x96xbf16>
    tpu.vector_store %arg6[%c0_9, %c0_10, %c0_11], %15 {strides = array<i32>} : memref<1x64x96xbf16, #tpu.memory_space<vmem>>, vector<1x64x96xbf16>,
    return
  }
  func.func @transform_0(%arg0: i32, %arg1: i32) -> (i32, i32, i32) {
    %c0_i32 = arith.constant 0 : i32
    %c0_i32_0 = arith.constant 0 : i32
    return %arg0, %arg1, %c0_i32 : i32, i32, i32
  }
  func.func @transform_1(%arg0: i32, %arg1: i32) -> (i32, i32) {
    %c0_i32 = arith.constant 0 : i32
    %c0_i32_0 = arith.constant 0 : i32
    %c0_i32_1 = arith.constant 0 : i32
    return %c0_i32, %c0_i32_0 : i32, i32
  }
  func.func @transform_2(%arg0: i32, %arg1: i32) -> (i32, i32) {
    %c0_i32 = arith.constant 0 : i32
    %c0_i32_0 = arith.constant 0 : i32
    %c0_i32_1 = arith.constant 0 : i32
    return %c0_i32, %c0_i32_0 : i32, i32
  }
  func.func @transform_3(%arg0: i32, %arg1: i32) -> (i32, i32) {
    %c0_i32 = arith.constant 0 : i32
    %c0_i32_0 = arith.constant 0 : i32
    %c0_i32_1 = arith.constant 0 : i32
    return %c0_i32, %c0_i32_0 : i32, i32
  }
  func.func @transform_4(%arg0: i32, %arg1: i32) -> (i32, i32, i32) {
    %c0_i32 = arith.constant 0 : i32
    %c0_i32_0 = arith.constant 0 : i32
    return %arg0, %arg1, %c0_i32 : i32, i32, i32
  }
}

module attributes {stable_mosaic.version = 11 : i64} {
  func.func @kernel(%arg0: i32, %arg1: i32, %arg2: memref<1x16x96xbf16, #tpu.memory_space<vmem>>, %arg3: memref<1x1x96xbf16, #tpu.memory_space<vmem>>, %arg4: memref<96x24xbf16, #tpu.memory_space<vmem>>, %arg5: memref<1x24xf32, #tpu.memory_space<vmem>>, %arg6: memref<1x24xf32, #tpu.memory_space<vmem>>, %arg7: memref<1x16x24xbf16, #tpu.memory_space<vmem>>) attributes {dimension_semantics = [#tpu.dimension_semantics<parallel>, #tpu.dimension_semantics<parallel>], iteration_bounds = array<i64: 2, 1>, scalar_prefetch = 0 : i64, scratch_operands = 0 : i64, tpu.core_type = #tpu.core_type<tc>, window_params = [{transform_indices = @transform_0, window_bounds = array<i64: 1, 16, 96>}, {transform_indices = @transform_1, window_bounds = array<i64: 1, 1, 96>}, {pipeline_mode = #tpu.pipeline_mode<synchronous>, transform_indices = @transform_2, window_bounds = array<i64: 96, 24>}, {pipeline_mode = #tpu.pipeline_mode<synchronous>, transform_indices = @transform_3, window_bounds = array<i64: 1, 24>}, {pipeline_mode = #tpu.pipeline_mode<synchronous>, transform_indices = @transform_4, window_bounds = array<i64: 1, 24>}, {transform_indices = @transform_5, window_bounds = array<i64: 1, 16, 24>}]} {
    %c0 = arith.constant 0 : index
    %c0_0 = arith.constant 0 : index
    %c0_1 = arith.constant 0 : index
    %0 = vector.load %arg2[%c0, %c0_0, %c0_1] : memref<1x16x96xbf16, #tpu.memory_space<vmem>>, vector<1x16x96xbf16>
    %1 = vector.shape_cast %0 : vector<1x16x96xbf16> to vector<16x96xbf16>
    %c0_2 = arith.constant 0 : index
    %c0_3 = arith.constant 0 : index
    %c0_4 = arith.constant 0 : index
    %2 = vector.load %arg3[%c0_2, %c0_3, %c0_4] : memref<1x1x96xbf16, #tpu.memory_space<vmem>>, vector<1x1x96xbf16>
    %3 = vector.shape_cast %2 : vector<1x1x96xbf16> to vector<1x96xbf16>
    %4 = vector.broadcast %3 : vector<1x96xbf16> to vector<16x96xbf16>
    %5 = arith.mulf %1, %4 : vector<16x96xbf16>
    %c0_5 = arith.constant 0 : index
    %c0_6 = arith.constant 0 : index
    %6 = vector.load %arg4[%c0_5, %c0_6] : memref<96x24xbf16, #tpu.memory_space<vmem>>, vector<96x24xbf16>
    %cst = arith.constant dense<0.000000e+00> : vector<16x24xf32>
    %7 = tpu.matmul %5, %6, %cst {dimension_numbers = #tpu.dot_dimension_numbers<[1], [0], [0], [1], [0, 0, 1, 1], [], []>} : vector<16x96xbf16>, vector<96x24xbf16>, vector<16x24xf32> -> vector<16x24xf32>
    %c0_7 = arith.constant 0 : index
    %c0_8 = arith.constant 0 : index
    %8 = vector.load %arg5[%c0_7, %c0_8] : memref<1x24xf32, #tpu.memory_space<vmem>>, vector<1x24xf32>
    %9 = vector.broadcast %8 : vector<1x24xf32> to vector<16x24xf32>
    %10 = arith.mulf %7, %9 : vector<16x24xf32>
    %c0_9 = arith.constant 0 : index
    %c0_10 = arith.constant 0 : index
    %11 = vector.load %arg6[%c0_9, %c0_10] : memref<1x24xf32, #tpu.memory_space<vmem>>, vector<1x24xf32>
    %12 = vector.broadcast %11 : vector<1x24xf32> to vector<16x24xf32>
    %13 = arith.addf %10, %12 : vector<16x24xf32>
    %14 = arith.truncf %13 : vector<16x24xf32> to vector<16x24xbf16>
    %c0_11 = arith.constant 0 : index
    %c0_12 = arith.constant 0 : index
    %c0_13 = arith.constant 0 : index
    %15 = vector.load %arg7[%c0_11, %c0_12, %c0_13] : memref<1x16x24xbf16, #tpu.memory_space<vmem>>, vector<1x16x24xbf16>
    %16 = vector.shape_cast %15 : vector<1x16x24xbf16> to vector<16x24xbf16>
    %17 = vector.shape_cast %14 : vector<16x24xbf16> to vector<1x16x24xbf16>
    tpu.vector_store %arg7[%c0_11, %c0_12, %c0_13], %17 {strides = array<i32>} : memref<1x16x24xbf16, #tpu.memory_space<vmem>>, vector<1x16x24xbf16>,
    return
  }
  func.func @transform_0(%arg0: i32, %arg1: i32) -> (i32, i32, i32) {
    %c0_i32 = arith.constant 0 : i32
    %c0_i32_0 = arith.constant 0 : i32
    return %arg0, %arg1, %c0_i32 : i32, i32, i32
  }
  func.func @transform_1(%arg0: i32, %arg1: i32) -> (i32, i32, i32) {
    %c0_i32 = arith.constant 0 : i32
    %c0_i32_0 = arith.constant 0 : i32
    %c0_i32_1 = arith.constant 0 : i32
    return %arg0, %c0_i32, %c0_i32_0 : i32, i32, i32
  }
  func.func @transform_2(%arg0: i32, %arg1: i32) -> (i32, i32) {
    %c0_i32 = arith.constant 0 : i32
    %c0_i32_0 = arith.constant 0 : i32
    %c0_i32_1 = arith.constant 0 : i32
    return %c0_i32, %c0_i32_0 : i32, i32
  }
  func.func @transform_3(%arg0: i32, %arg1: i32) -> (i32, i32) {
    %c0_i32 = arith.constant 0 : i32
    %c0_i32_0 = arith.constant 0 : i32
    %c0_i32_1 = arith.constant 0 : i32
    return %c0_i32, %c0_i32_0 : i32, i32
  }
  func.func @transform_4(%arg0: i32, %arg1: i32) -> (i32, i32) {
    %c0_i32 = arith.constant 0 : i32
    %c0_i32_0 = arith.constant 0 : i32
    %c0_i32_1 = arith.constant 0 : i32
    return %c0_i32, %c0_i32_0 : i32, i32
  }
  func.func @transform_5(%arg0: i32, %arg1: i32) -> (i32, i32, i32) {
    %c0_i32 = arith.constant 0 : i32
    %c0_i32_0 = arith.constant 0 : i32
    return %arg0, %arg1, %c0_i32 : i32, i32, i32
  }
}

module attributes {stable_mosaic.version = 11 : i64} {
  func.func @_dw_s2_kernel(%arg0: i32, %arg1: memref<1x5x5x96xbf16, #tpu.memory_space<vmem>>, %arg2: memref<1x5x5x96xbf16, #tpu.memory_space<vmem>>, %arg3: memref<1x5x5x96xbf16, #tpu.memory_space<vmem>>, %arg4: memref<1x5x5x96xbf16, #tpu.memory_space<vmem>>, %arg5: memref<9x96xbf16, #tpu.memory_space<vmem>>, %arg6: memref<1x96xf32, #tpu.memory_space<vmem>>, %arg7: memref<1x96xf32, #tpu.memory_space<vmem>>, %arg8: memref<1x4x4x96xbf16, #tpu.memory_space<vmem>>, %arg9: memref<1x1x96xf32, #tpu.memory_space<vmem>>) attributes {dimension_semantics = [#tpu.dimension_semantics<parallel>], iteration_bounds = array<i64: 2>, scalar_prefetch = 0 : i64, scratch_operands = 0 : i64, tpu.core_type = #tpu.core_type<tc>, window_params = [{transform_indices = @transform_0, window_bounds = array<i64: 1, 5, 5, 96>}, {transform_indices = @transform_1, window_bounds = array<i64: 1, 5, 5, 96>}, {transform_indices = @transform_2, window_bounds = array<i64: 1, 5, 5, 96>}, {transform_indices = @transform_3, window_bounds = array<i64: 1, 5, 5, 96>}, {pipeline_mode = #tpu.pipeline_mode<synchronous>, transform_indices = @transform_4, window_bounds = array<i64: 9, 96>}, {pipeline_mode = #tpu.pipeline_mode<synchronous>, transform_indices = @transform_5, window_bounds = array<i64: 1, 96>}, {pipeline_mode = #tpu.pipeline_mode<synchronous>, transform_indices = @transform_6, window_bounds = array<i64: 1, 96>}, {transform_indices = @transform_7, window_bounds = array<i64: 1, 4, 4, 96>}, {transform_indices = @transform_8, window_bounds = array<i64: 1, 1, 96>}]} {
    %c0 = arith.constant 0 : index
    %c0_0 = arith.constant 0 : index
    %c0_1 = arith.constant 0 : index
    %c0_2 = arith.constant 0 : index
    %0 = vector.load %arg1[%c0, %c0_0, %c0_1, %c0_2] : memref<1x5x5x96xbf16, #tpu.memory_space<vmem>>, vector<1x5x5x96xbf16>
    %1 = vector.shape_cast %0 : vector<1x5x5x96xbf16> to vector<5x5x96xbf16>
    %2 = arith.extf %1 : vector<5x5x96xbf16> to vector<5x5x96xf32>
    %c0_3 = arith.constant 0 : index
    %c0_4 = arith.constant 0 : index
    %c0_5 = arith.constant 0 : index
    %c0_6 = arith.constant 0 : index
    %3 = vector.load %arg2[%c0_3, %c0_4, %c0_5, %c0_6] : memref<1x5x5x96xbf16, #tpu.memory_space<vmem>>, vector<1x5x5x96xbf16>
    %4 = vector.shape_cast %3 : vector<1x5x5x96xbf16> to vector<5x5x96xbf16>
    %5 = arith.extf %4 : vector<5x5x96xbf16> to vector<5x5x96xf32>
    %c0_7 = arith.constant 0 : index
    %c0_8 = arith.constant 0 : index
    %c0_9 = arith.constant 0 : index
    %c0_10 = arith.constant 0 : index
    %6 = vector.load %arg3[%c0_7, %c0_8, %c0_9, %c0_10] : memref<1x5x5x96xbf16, #tpu.memory_space<vmem>>, vector<1x5x5x96xbf16>
    %7 = vector.shape_cast %6 : vector<1x5x5x96xbf16> to vector<5x5x96xbf16>
    %8 = arith.extf %7 : vector<5x5x96xbf16> to vector<5x5x96xf32>
    %c0_11 = arith.constant 0 : index
    %c0_12 = arith.constant 0 : index
    %c0_13 = arith.constant 0 : index
    %c0_14 = arith.constant 0 : index
    %9 = vector.load %arg4[%c0_11, %c0_12, %c0_13, %c0_14] : memref<1x5x5x96xbf16, #tpu.memory_space<vmem>>, vector<1x5x5x96xbf16>
    %10 = vector.shape_cast %9 : vector<1x5x5x96xbf16> to vector<5x5x96xbf16>
    %11 = arith.extf %10 : vector<5x5x96xbf16> to vector<5x5x96xf32>
    %c0_15 = arith.constant 0 : index
    %c0_16 = arith.constant 0 : index
    %12 = vector.load %arg5[%c0_15, %c0_16] : memref<9x96xbf16, #tpu.memory_space<vmem>>, vector<9x96xbf16>
    %13 = arith.extf %12 : vector<9x96xbf16> to vector<9x96xf32>
    %cst = arith.constant 0.000000e+00 : f32
    %14 = vector.broadcast %cst : f32 to vector<4x4x96xf32>
    %15 = vector.extract_strided_slice %2 {offsets = [0, 0, 0], sizes = [4, 4, 96], strides = [1, 1, 1]} : vector<5x5x96xf32> to vector<4x4x96xf32>
    %16 = vector.extract_strided_slice %13 {offsets = [0, 0], sizes = [1, 96], strides = [1, 1]} : vector<9x96xf32> to vector<1x96xf32>
    %17 = vector.shape_cast %16 : vector<1x96xf32> to vector<96xf32>
    %18 = vector.shape_cast %17 : vector<96xf32> to vector<1x1x96xf32>
    %19 = vector.broadcast %18 : vector<1x1x96xf32> to vector<4x4x96xf32>
    %20 = arith.mulf %15, %19 : vector<4x4x96xf32>
    %21 = arith.addf %14, %20 : vector<4x4x96xf32>
    %22 = vector.extract_strided_slice %5 {offsets = [0, 0, 0], sizes = [4, 4, 96], strides = [1, 1, 1]} : vector<5x5x96xf32> to vector<4x4x96xf32>
    %23 = vector.extract_strided_slice %13 {offsets = [1, 0], sizes = [1, 96], strides = [1, 1]} : vector<9x96xf32> to vector<1x96xf32>
    %24 = vector.shape_cast %23 : vector<1x96xf32> to vector<96xf32>
    %25 = vector.shape_cast %24 : vector<96xf32> to vector<1x1x96xf32>
    %26 = vector.broadcast %25 : vector<1x1x96xf32> to vector<4x4x96xf32>
    %27 = arith.mulf %22, %26 : vector<4x4x96xf32>
    %28 = arith.addf %21, %27 : vector<4x4x96xf32>
    %29 = vector.extract_strided_slice %2 {offsets = [0, 1, 0], sizes = [4, 4, 96], strides = [1, 1, 1]} : vector<5x5x96xf32> to vector<4x4x96xf32>
    %30 = vector.extract_strided_slice %13 {offsets = [2, 0], sizes = [1, 96], strides = [1, 1]} : vector<9x96xf32> to vector<1x96xf32>
    %31 = vector.shape_cast %30 : vector<1x96xf32> to vector<96xf32>
    %32 = vector.shape_cast %31 : vector<96xf32> to vector<1x1x96xf32>
    %33 = vector.broadcast %32 : vector<1x1x96xf32> to vector<4x4x96xf32>
    %34 = arith.mulf %29, %33 : vector<4x4x96xf32>
    %35 = arith.addf %28, %34 : vector<4x4x96xf32>
    %36 = vector.extract_strided_slice %8 {offsets = [0, 0, 0], sizes = [4, 4, 96], strides = [1, 1, 1]} : vector<5x5x96xf32> to vector<4x4x96xf32>
    %37 = vector.extract_strided_slice %13 {offsets = [3, 0], sizes = [1, 96], strides = [1, 1]} : vector<9x96xf32> to vector<1x96xf32>
    %38 = vector.shape_cast %37 : vector<1x96xf32> to vector<96xf32>
    %39 = vector.shape_cast %38 : vector<96xf32> to vector<1x1x96xf32>
    %40 = vector.broadcast %39 : vector<1x1x96xf32> to vector<4x4x96xf32>
    %41 = arith.mulf %36, %40 : vector<4x4x96xf32>
    %42 = arith.addf %35, %41 : vector<4x4x96xf32>
    %43 = vector.extract_strided_slice %11 {offsets = [0, 0, 0], sizes = [4, 4, 96], strides = [1, 1, 1]} : vector<5x5x96xf32> to vector<4x4x96xf32>
    %44 = vector.extract_strided_slice %13 {offsets = [4, 0], sizes = [1, 96], strides = [1, 1]} : vector<9x96xf32> to vector<1x96xf32>
    %45 = vector.shape_cast %44 : vector<1x96xf32> to vector<96xf32>
    %46 = vector.shape_cast %45 : vector<96xf32> to vector<1x1x96xf32>
    %47 = vector.broadcast %46 : vector<1x1x96xf32> to vector<4x4x96xf32>
    %48 = arith.mulf %43, %47 : vector<4x4x96xf32>
    %49 = arith.addf %42, %48 : vector<4x4x96xf32>
    %50 = vector.extract_strided_slice %8 {offsets = [0, 1, 0], sizes = [4, 4, 96], strides = [1, 1, 1]} : vector<5x5x96xf32> to vector<4x4x96xf32>
    %51 = vector.extract_strided_slice %13 {offsets = [5, 0], sizes = [1, 96], strides = [1, 1]} : vector<9x96xf32> to vector<1x96xf32>
    %52 = vector.shape_cast %51 : vector<1x96xf32> to vector<96xf32>
    %53 = vector.shape_cast %52 : vector<96xf32> to vector<1x1x96xf32>
    %54 = vector.broadcast %53 : vector<1x1x96xf32> to vector<4x4x96xf32>
    %55 = arith.mulf %50, %54 : vector<4x4x96xf32>
    %56 = arith.addf %49, %55 : vector<4x4x96xf32>
    %57 = vector.extract_strided_slice %2 {offsets = [1, 0, 0], sizes = [4, 4, 96], strides = [1, 1, 1]} : vector<5x5x96xf32> to vector<4x4x96xf32>
    %58 = vector.extract_strided_slice %13 {offsets = [6, 0], sizes = [1, 96], strides = [1, 1]} : vector<9x96xf32> to vector<1x96xf32>
    %59 = vector.shape_cast %58 : vector<1x96xf32> to vector<96xf32>
    %60 = vector.shape_cast %59 : vector<96xf32> to vector<1x1x96xf32>
    %61 = vector.broadcast %60 : vector<1x1x96xf32> to vector<4x4x96xf32>
    %62 = arith.mulf %57, %61 : vector<4x4x96xf32>
    %63 = arith.addf %56, %62 : vector<4x4x96xf32>
    %64 = vector.extract_strided_slice %5 {offsets = [1, 0, 0], sizes = [4, 4, 96], strides = [1, 1, 1]} : vector<5x5x96xf32> to vector<4x4x96xf32>
    %65 = vector.extract_strided_slice %13 {offsets = [7, 0], sizes = [1, 96], strides = [1, 1]} : vector<9x96xf32> to vector<1x96xf32>
    %66 = vector.shape_cast %65 : vector<1x96xf32> to vector<96xf32>
    %67 = vector.shape_cast %66 : vector<96xf32> to vector<1x1x96xf32>
    %68 = vector.broadcast %67 : vector<1x1x96xf32> to vector<4x4x96xf32>
    %69 = arith.mulf %64, %68 : vector<4x4x96xf32>
    %70 = arith.addf %63, %69 : vector<4x4x96xf32>
    %71 = vector.extract_strided_slice %2 {offsets = [1, 1, 0], sizes = [4, 4, 96], strides = [1, 1, 1]} : vector<5x5x96xf32> to vector<4x4x96xf32>
    %72 = vector.extract_strided_slice %13 {offsets = [8, 0], sizes = [1, 96], strides = [1, 1]} : vector<9x96xf32> to vector<1x96xf32>
    %73 = vector.shape_cast %72 : vector<1x96xf32> to vector<96xf32>
    %74 = vector.shape_cast %73 : vector<96xf32> to vector<1x1x96xf32>
    %75 = vector.broadcast %74 : vector<1x1x96xf32> to vector<4x4x96xf32>
    %76 = arith.mulf %71, %75 : vector<4x4x96xf32>
    %77 = arith.addf %70, %76 : vector<4x4x96xf32>
    %c0_17 = arith.constant 0 : index
    %c0_18 = arith.constant 0 : index
    %78 = vector.load %arg6[%c0_17, %c0_18] : memref<1x96xf32, #tpu.memory_space<vmem>>, vector<1x96xf32>
    %79 = vector.shape_cast %78 : vector<1x96xf32> to vector<96xf32>
    %80 = vector.shape_cast %79 : vector<96xf32> to vector<1x1x96xf32>
    %81 = vector.broadcast %80 : vector<1x1x96xf32> to vector<4x4x96xf32>
    %82 = arith.mulf %77, %81 : vector<4x4x96xf32>
    %c0_19 = arith.constant 0 : index
    %c0_20 = arith.constant 0 : index
    %83 = vector.load %arg7[%c0_19, %c0_20] : memref<1x96xf32, #tpu.memory_space<vmem>>, vector<1x96xf32>
    %84 = vector.shape_cast %83 : vector<1x96xf32> to vector<96xf32>
    %85 = vector.shape_cast %84 : vector<96xf32> to vector<1x1x96xf32>
    %86 = vector.broadcast %85 : vector<1x1x96xf32> to vector<4x4x96xf32>
    %87 = arith.addf %82, %86 : vector<4x4x96xf32>
    %cst_21 = arith.constant 0.000000e+00 : f32
    %88 = vector.broadcast %cst_21 : f32 to vector<4x4x96xf32>
    %89 = arith.maximumf %87, %88 : vector<4x4x96xf32>
    %90 = arith.truncf %89 : vector<4x4x96xf32> to vector<4x4x96xbf16>
    %c0_22 = arith.constant 0 : index
    %c0_23 = arith.constant 0 : index
    %c0_24 = arith.constant 0 : index
    %c0_25 = arith.constant 0 : index
    %91 = vector.load %arg8[%c0_22, %c0_23, %c0_24, %c0_25] : memref<1x4x4x96xbf16, #tpu.memory_space<vmem>>, vector<1x4x4x96xbf16>
    %92 = vector.shape_cast %91 : vector<1x4x4x96xbf16> to vector<4x4x96xbf16>
    %93 = vector.shape_cast %90 : vector<4x4x96xbf16> to vector<1x4x4x96xbf16>
    tpu.vector_store %arg8[%c0_22, %c0_23, %c0_24, %c0_25], %93 {strides = array<i32>} : memref<1x4x4x96xbf16, #tpu.memory_space<vmem>>, vector<1x4x4x96xbf16>,
    %cst_26 = arith.constant dense<0.000000e+00> : vector<96xf32>
    %94 = vector.multi_reduction <add>, %89, %cst_26 [0, 1] : vector<4x4x96xf32> to vector<96xf32>
    %cst_27 = arith.constant 1.600000e+01 : f32
    %95 = vector.broadcast %cst_27 : f32 to vector<96xf32>
    %96 = arith.divf %94, %95 : vector<96xf32>
    %97 = vector.shape_cast %96 : vector<96xf32> to vector<1x1x96xf32>
    %c0_28 = arith.constant 0 : index
    %c0_29 = arith.constant 0 : index
    %c0_30 = arith.constant 0 : index
    %98 = vector.load %arg9[%c0_28, %c0_29, %c0_30] : memref<1x1x96xf32, #tpu.memory_space<vmem>>, vector<1x1x96xf32>
    tpu.vector_store %arg9[%c0_28, %c0_29, %c0_30], %97 {strides = array<i32>} : memref<1x1x96xf32, #tpu.memory_space<vmem>>, vector<1x1x96xf32>,
    return
  }
  func.func @transform_0(%arg0: i32) -> (i32, i32, i32, i32) {
    %c0_i32 = arith.constant 0 : i32
    %c0_i32_0 = arith.constant 0 : i32
    %c0_i32_1 = arith.constant 0 : i32
    %c0_i32_2 = arith.constant 0 : i32
    return %arg0, %c0_i32, %c0_i32_0, %c0_i32_1 : i32, i32, i32, i32
  }
  func.func @transform_1(%arg0: i32) -> (i32, i32, i32, i32) {
    %c0_i32 = arith.constant 0 : i32
    %c0_i32_0 = arith.constant 0 : i32
    %c0_i32_1 = arith.constant 0 : i32
    %c0_i32_2 = arith.constant 0 : i32
    return %arg0, %c0_i32, %c0_i32_0, %c0_i32_1 : i32, i32, i32, i32
  }
  func.func @transform_2(%arg0: i32) -> (i32, i32, i32, i32) {
    %c0_i32 = arith.constant 0 : i32
    %c0_i32_0 = arith.constant 0 : i32
    %c0_i32_1 = arith.constant 0 : i32
    %c0_i32_2 = arith.constant 0 : i32
    return %arg0, %c0_i32, %c0_i32_0, %c0_i32_1 : i32, i32, i32, i32
  }
  func.func @transform_3(%arg0: i32) -> (i32, i32, i32, i32) {
    %c0_i32 = arith.constant 0 : i32
    %c0_i32_0 = arith.constant 0 : i32
    %c0_i32_1 = arith.constant 0 : i32
    %c0_i32_2 = arith.constant 0 : i32
    return %arg0, %c0_i32, %c0_i32_0, %c0_i32_1 : i32, i32, i32, i32
  }
  func.func @transform_4(%arg0: i32) -> (i32, i32) {
    %c0_i32 = arith.constant 0 : i32
    %c0_i32_0 = arith.constant 0 : i32
    %c0_i32_1 = arith.constant 0 : i32
    return %c0_i32, %c0_i32_0 : i32, i32
  }
  func.func @transform_5(%arg0: i32) -> (i32, i32) {
    %c0_i32 = arith.constant 0 : i32
    %c0_i32_0 = arith.constant 0 : i32
    %c0_i32_1 = arith.constant 0 : i32
    return %c0_i32, %c0_i32_0 : i32, i32
  }
  func.func @transform_6(%arg0: i32) -> (i32, i32) {
    %c0_i32 = arith.constant 0 : i32
    %c0_i32_0 = arith.constant 0 : i32
    %c0_i32_1 = arith.constant 0 : i32
    return %c0_i32, %c0_i32_0 : i32, i32
  }
  func.func @transform_7(%arg0: i32) -> (i32, i32, i32, i32) {
    %c0_i32 = arith.constant 0 : i32
    %c0_i32_0 = arith.constant 0 : i32
    %c0_i32_1 = arith.constant 0 : i32
    %c0_i32_2 = arith.constant 0 : i32
    return %arg0, %c0_i32, %c0_i32_0, %c0_i32_1 : i32, i32, i32, i32
  }
  func.func @transform_8(%arg0: i32) -> (i32, i32, i32) {
    %c0_i32 = arith.constant 0 : i32
    %c0_i32_0 = arith.constant 0 : i32
    %c0_i32_1 = arith.constant 0 : i32
    return %arg0, %c0_i32, %c0_i32_0 : i32, i32, i32
  }
}

module attributes {stable_mosaic.version = 11 : i64} {
  func.func @kernel(%arg0: i32, %arg1: i32, %arg2: memref<1x16x24xbf16, #tpu.memory_space<vmem>>, %arg3: memref<24x144xbf16, #tpu.memory_space<vmem>>, %arg4: memref<1x144xf32, #tpu.memory_space<vmem>>, %arg5: memref<1x144xf32, #tpu.memory_space<vmem>>, %arg6: memref<1x16x144xbf16, #tpu.memory_space<vmem>>) attributes {dimension_semantics = [#tpu.dimension_semantics<parallel>, #tpu.dimension_semantics<parallel>], iteration_bounds = array<i64: 2, 1>, scalar_prefetch = 0 : i64, scratch_operands = 0 : i64, tpu.core_type = #tpu.core_type<tc>, window_params = [{transform_indices = @transform_0, window_bounds = array<i64: 1, 16, 24>}, {pipeline_mode = #tpu.pipeline_mode<synchronous>, transform_indices = @transform_1, window_bounds = array<i64: 24, 144>}, {pipeline_mode = #tpu.pipeline_mode<synchronous>, transform_indices = @transform_2, window_bounds = array<i64: 1, 144>}, {pipeline_mode = #tpu.pipeline_mode<synchronous>, transform_indices = @transform_3, window_bounds = array<i64: 1, 144>}, {transform_indices = @transform_4, window_bounds = array<i64: 1, 16, 144>}]} {
    %c0 = arith.constant 0 : index
    %c0_0 = arith.constant 0 : index
    %c0_1 = arith.constant 0 : index
    %0 = vector.load %arg2[%c0, %c0_0, %c0_1] : memref<1x16x24xbf16, #tpu.memory_space<vmem>>, vector<1x16x24xbf16>
    %1 = vector.shape_cast %0 : vector<1x16x24xbf16> to vector<16x24xbf16>
    %c0_2 = arith.constant 0 : index
    %c0_3 = arith.constant 0 : index
    %2 = vector.load %arg3[%c0_2, %c0_3] : memref<24x144xbf16, #tpu.memory_space<vmem>>, vector<24x144xbf16>
    %cst = arith.constant dense<0.000000e+00> : vector<16x144xf32>
    %3 = tpu.matmul %1, %2, %cst {dimension_numbers = #tpu.dot_dimension_numbers<[1], [0], [0], [1], [0, 0, 1, 1], [], []>} : vector<16x24xbf16>, vector<24x144xbf16>, vector<16x144xf32> -> vector<16x144xf32>
    %c0_4 = arith.constant 0 : index
    %c0_5 = arith.constant 0 : index
    %4 = vector.load %arg4[%c0_4, %c0_5] : memref<1x144xf32, #tpu.memory_space<vmem>>, vector<1x144xf32>
    %5 = vector.broadcast %4 : vector<1x144xf32> to vector<16x144xf32>
    %6 = arith.mulf %3, %5 : vector<16x144xf32>
    %c0_6 = arith.constant 0 : index
    %c0_7 = arith.constant 0 : index
    %7 = vector.load %arg5[%c0_6, %c0_7] : memref<1x144xf32, #tpu.memory_space<vmem>>, vector<1x144xf32>
    %8 = vector.broadcast %7 : vector<1x144xf32> to vector<16x144xf32>
    %9 = arith.addf %6, %8 : vector<16x144xf32>
    %cst_8 = arith.constant 0.000000e+00 : f32
    %10 = vector.broadcast %cst_8 : f32 to vector<16x144xf32>
    %11 = arith.maximumf %9, %10 : vector<16x144xf32>
    %12 = arith.truncf %11 : vector<16x144xf32> to vector<16x144xbf16>
    %c0_9 = arith.constant 0 : index
    %c0_10 = arith.constant 0 : index
    %c0_11 = arith.constant 0 : index
    %13 = vector.load %arg6[%c0_9, %c0_10, %c0_11] : memref<1x16x144xbf16, #tpu.memory_space<vmem>>, vector<1x16x144xbf16>
    %14 = vector.shape_cast %13 : vector<1x16x144xbf16> to vector<16x144xbf16>
    %15 = vector.shape_cast %12 : vector<16x144xbf16> to vector<1x16x144xbf16>
    tpu.vector_store %arg6[%c0_9, %c0_10, %c0_11], %15 {strides = array<i32>} : memref<1x16x144xbf16, #tpu.memory_space<vmem>>, vector<1x16x144xbf16>,
    return
  }
  func.func @transform_0(%arg0: i32, %arg1: i32) -> (i32, i32, i32) {
    %c0_i32 = arith.constant 0 : i32
    %c0_i32_0 = arith.constant 0 : i32
    return %arg0, %arg1, %c0_i32 : i32, i32, i32
  }
  func.func @transform_1(%arg0: i32, %arg1: i32) -> (i32, i32) {
    %c0_i32 = arith.constant 0 : i32
    %c0_i32_0 = arith.constant 0 : i32
    %c0_i32_1 = arith.constant 0 : i32
    return %c0_i32, %c0_i32_0 : i32, i32
  }
  func.func @transform_2(%arg0: i32, %arg1: i32) -> (i32, i32) {
    %c0_i32 = arith.constant 0 : i32
    %c0_i32_0 = arith.constant 0 : i32
    %c0_i32_1 = arith.constant 0 : i32
    return %c0_i32, %c0_i32_0 : i32, i32
  }
  func.func @transform_3(%arg0: i32, %arg1: i32) -> (i32, i32) {
    %c0_i32 = arith.constant 0 : i32
    %c0_i32_0 = arith.constant 0 : i32
    %c0_i32_1 = arith.constant 0 : i32
    return %c0_i32, %c0_i32_0 : i32, i32
  }
  func.func @transform_4(%arg0: i32, %arg1: i32) -> (i32, i32, i32) {
    %c0_i32 = arith.constant 0 : i32
    %c0_i32_0 = arith.constant 0 : i32
    return %arg0, %arg1, %c0_i32 : i32, i32, i32
  }
}

module attributes {stable_mosaic.version = 11 : i64} {
  func.func @_dw_s1_kernel(%arg0: i32, %arg1: memref<1x6x6x144xbf16, #tpu.memory_space<vmem>>, %arg2: memref<9x144xbf16, #tpu.memory_space<vmem>>, %arg3: memref<1x144xf32, #tpu.memory_space<vmem>>, %arg4: memref<1x144xf32, #tpu.memory_space<vmem>>, %arg5: memref<1x4x4x144xbf16, #tpu.memory_space<vmem>>, %arg6: memref<1x1x144xf32, #tpu.memory_space<vmem>>) attributes {dimension_semantics = [#tpu.dimension_semantics<parallel>], iteration_bounds = array<i64: 2>, scalar_prefetch = 0 : i64, scratch_operands = 0 : i64, tpu.core_type = #tpu.core_type<tc>, window_params = [{transform_indices = @transform_0, window_bounds = array<i64: 1, 6, 6, 144>}, {pipeline_mode = #tpu.pipeline_mode<synchronous>, transform_indices = @transform_1, window_bounds = array<i64: 9, 144>}, {pipeline_mode = #tpu.pipeline_mode<synchronous>, transform_indices = @transform_2, window_bounds = array<i64: 1, 144>}, {pipeline_mode = #tpu.pipeline_mode<synchronous>, transform_indices = @transform_3, window_bounds = array<i64: 1, 144>}, {transform_indices = @transform_4, window_bounds = array<i64: 1, 4, 4, 144>}, {transform_indices = @transform_5, window_bounds = array<i64: 1, 1, 144>}]} {
    %c0 = arith.constant 0 : index
    %c0_0 = arith.constant 0 : index
    %c0_1 = arith.constant 0 : index
    %c0_2 = arith.constant 0 : index
    %0 = vector.load %arg1[%c0, %c0_0, %c0_1, %c0_2] : memref<1x6x6x144xbf16, #tpu.memory_space<vmem>>, vector<1x6x6x144xbf16>
    %1 = vector.shape_cast %0 : vector<1x6x6x144xbf16> to vector<6x6x144xbf16>
    %2 = arith.extf %1 : vector<6x6x144xbf16> to vector<6x6x144xf32>
    %c0_3 = arith.constant 0 : index
    %c0_4 = arith.constant 0 : index
    %3 = vector.load %arg2[%c0_3, %c0_4] : memref<9x144xbf16, #tpu.memory_space<vmem>>, vector<9x144xbf16>
    %4 = arith.extf %3 : vector<9x144xbf16> to vector<9x144xf32>
    %cst = arith.constant 0.000000e+00 : f32
    %5 = vector.broadcast %cst : f32 to vector<4x4x144xf32>
    %6 = vector.extract_strided_slice %2 {offsets = [0, 0, 0], sizes = [4, 4, 144], strides = [1, 1, 1]} : vector<6x6x144xf32> to vector<4x4x144xf32>
    %7 = vector.extract_strided_slice %4 {offsets = [0, 0], sizes = [1, 144], strides = [1, 1]} : vector<9x144xf32> to vector<1x144xf32>
    %8 = vector.shape_cast %7 : vector<1x144xf32> to vector<144xf32>
    %9 = vector.shape_cast %8 : vector<144xf32> to vector<1x1x144xf32>
    %10 = vector.broadcast %9 : vector<1x1x144xf32> to vector<4x4x144xf32>
    %11 = arith.mulf %6, %10 : vector<4x4x144xf32>
    %12 = arith.addf %5, %11 : vector<4x4x144xf32>
    %13 = vector.extract_strided_slice %2 {offsets = [0, 1, 0], sizes = [4, 4, 144], strides = [1, 1, 1]} : vector<6x6x144xf32> to vector<4x4x144xf32>
    %14 = vector.extract_strided_slice %4 {offsets = [1, 0], sizes = [1, 144], strides = [1, 1]} : vector<9x144xf32> to vector<1x144xf32>
    %15 = vector.shape_cast %14 : vector<1x144xf32> to vector<144xf32>
    %16 = vector.shape_cast %15 : vector<144xf32> to vector<1x1x144xf32>
    %17 = vector.broadcast %16 : vector<1x1x144xf32> to vector<4x4x144xf32>
    %18 = arith.mulf %13, %17 : vector<4x4x144xf32>
    %19 = arith.addf %12, %18 : vector<4x4x144xf32>
    %20 = vector.extract_strided_slice %2 {offsets = [0, 2, 0], sizes = [4, 4, 144], strides = [1, 1, 1]} : vector<6x6x144xf32> to vector<4x4x144xf32>
    %21 = vector.extract_strided_slice %4 {offsets = [2, 0], sizes = [1, 144], strides = [1, 1]} : vector<9x144xf32> to vector<1x144xf32>
    %22 = vector.shape_cast %21 : vector<1x144xf32> to vector<144xf32>
    %23 = vector.shape_cast %22 : vector<144xf32> to vector<1x1x144xf32>
    %24 = vector.broadcast %23 : vector<1x1x144xf32> to vector<4x4x144xf32>
    %25 = arith.mulf %20, %24 : vector<4x4x144xf32>
    %26 = arith.addf %19, %25 : vector<4x4x144xf32>
    %27 = vector.extract_strided_slice %2 {offsets = [1, 0, 0], sizes = [4, 4, 144], strides = [1, 1, 1]} : vector<6x6x144xf32> to vector<4x4x144xf32>
    %28 = vector.extract_strided_slice %4 {offsets = [3, 0], sizes = [1, 144], strides = [1, 1]} : vector<9x144xf32> to vector<1x144xf32>
    %29 = vector.shape_cast %28 : vector<1x144xf32> to vector<144xf32>
    %30 = vector.shape_cast %29 : vector<144xf32> to vector<1x1x144xf32>
    %31 = vector.broadcast %30 : vector<1x1x144xf32> to vector<4x4x144xf32>
    %32 = arith.mulf %27, %31 : vector<4x4x144xf32>
    %33 = arith.addf %26, %32 : vector<4x4x144xf32>
    %34 = vector.extract_strided_slice %2 {offsets = [1, 1, 0], sizes = [4, 4, 144], strides = [1, 1, 1]} : vector<6x6x144xf32> to vector<4x4x144xf32>
    %35 = vector.extract_strided_slice %4 {offsets = [4, 0], sizes = [1, 144], strides = [1, 1]} : vector<9x144xf32> to vector<1x144xf32>
    %36 = vector.shape_cast %35 : vector<1x144xf32> to vector<144xf32>
    %37 = vector.shape_cast %36 : vector<144xf32> to vector<1x1x144xf32>
    %38 = vector.broadcast %37 : vector<1x1x144xf32> to vector<4x4x144xf32>
    %39 = arith.mulf %34, %38 : vector<4x4x144xf32>
    %40 = arith.addf %33, %39 : vector<4x4x144xf32>
    %41 = vector.extract_strided_slice %2 {offsets = [1, 2, 0], sizes = [4, 4, 144], strides = [1, 1, 1]} : vector<6x6x144xf32> to vector<4x4x144xf32>
    %42 = vector.extract_strided_slice %4 {offsets = [5, 0], sizes = [1, 144], strides = [1, 1]} : vector<9x144xf32> to vector<1x144xf32>
    %43 = vector.shape_cast %42 : vector<1x144xf32> to vector<144xf32>
    %44 = vector.shape_cast %43 : vector<144xf32> to vector<1x1x144xf32>
    %45 = vector.broadcast %44 : vector<1x1x144xf32> to vector<4x4x144xf32>
    %46 = arith.mulf %41, %45 : vector<4x4x144xf32>
    %47 = arith.addf %40, %46 : vector<4x4x144xf32>
    %48 = vector.extract_strided_slice %2 {offsets = [2, 0, 0], sizes = [4, 4, 144], strides = [1, 1, 1]} : vector<6x6x144xf32> to vector<4x4x144xf32>
    %49 = vector.extract_strided_slice %4 {offsets = [6, 0], sizes = [1, 144], strides = [1, 1]} : vector<9x144xf32> to vector<1x144xf32>
    %50 = vector.shape_cast %49 : vector<1x144xf32> to vector<144xf32>
    %51 = vector.shape_cast %50 : vector<144xf32> to vector<1x1x144xf32>
    %52 = vector.broadcast %51 : vector<1x1x144xf32> to vector<4x4x144xf32>
    %53 = arith.mulf %48, %52 : vector<4x4x144xf32>
    %54 = arith.addf %47, %53 : vector<4x4x144xf32>
    %55 = vector.extract_strided_slice %2 {offsets = [2, 1, 0], sizes = [4, 4, 144], strides = [1, 1, 1]} : vector<6x6x144xf32> to vector<4x4x144xf32>
    %56 = vector.extract_strided_slice %4 {offsets = [7, 0], sizes = [1, 144], strides = [1, 1]} : vector<9x144xf32> to vector<1x144xf32>
    %57 = vector.shape_cast %56 : vector<1x144xf32> to vector<144xf32>
    %58 = vector.shape_cast %57 : vector<144xf32> to vector<1x1x144xf32>
    %59 = vector.broadcast %58 : vector<1x1x144xf32> to vector<4x4x144xf32>
    %60 = arith.mulf %55, %59 : vector<4x4x144xf32>
    %61 = arith.addf %54, %60 : vector<4x4x144xf32>
    %62 = vector.extract_strided_slice %2 {offsets = [2, 2, 0], sizes = [4, 4, 144], strides = [1, 1, 1]} : vector<6x6x144xf32> to vector<4x4x144xf32>
    %63 = vector.extract_strided_slice %4 {offsets = [8, 0], sizes = [1, 144], strides = [1, 1]} : vector<9x144xf32> to vector<1x144xf32>
    %64 = vector.shape_cast %63 : vector<1x144xf32> to vector<144xf32>
    %65 = vector.shape_cast %64 : vector<144xf32> to vector<1x1x144xf32>
    %66 = vector.broadcast %65 : vector<1x1x144xf32> to vector<4x4x144xf32>
    %67 = arith.mulf %62, %66 : vector<4x4x144xf32>
    %68 = arith.addf %61, %67 : vector<4x4x144xf32>
    %c0_5 = arith.constant 0 : index
    %c0_6 = arith.constant 0 : index
    %69 = vector.load %arg3[%c0_5, %c0_6] : memref<1x144xf32, #tpu.memory_space<vmem>>, vector<1x144xf32>
    %70 = vector.shape_cast %69 : vector<1x144xf32> to vector<144xf32>
    %71 = vector.shape_cast %70 : vector<144xf32> to vector<1x1x144xf32>
    %72 = vector.broadcast %71 : vector<1x1x144xf32> to vector<4x4x144xf32>
    %73 = arith.mulf %68, %72 : vector<4x4x144xf32>
    %c0_7 = arith.constant 0 : index
    %c0_8 = arith.constant 0 : index
    %74 = vector.load %arg4[%c0_7, %c0_8] : memref<1x144xf32, #tpu.memory_space<vmem>>, vector<1x144xf32>
    %75 = vector.shape_cast %74 : vector<1x144xf32> to vector<144xf32>
    %76 = vector.shape_cast %75 : vector<144xf32> to vector<1x1x144xf32>
    %77 = vector.broadcast %76 : vector<1x1x144xf32> to vector<4x4x144xf32>
    %78 = arith.addf %73, %77 : vector<4x4x144xf32>
    %cst_9 = arith.constant 0.000000e+00 : f32
    %79 = vector.broadcast %cst_9 : f32 to vector<4x4x144xf32>
    %80 = arith.maximumf %78, %79 : vector<4x4x144xf32>
    %81 = arith.truncf %80 : vector<4x4x144xf32> to vector<4x4x144xbf16>
    %c0_10 = arith.constant 0 : index
    %c0_11 = arith.constant 0 : index
    %c0_12 = arith.constant 0 : index
    %c0_13 = arith.constant 0 : index
    %82 = vector.load %arg5[%c0_10, %c0_11, %c0_12, %c0_13] : memref<1x4x4x144xbf16, #tpu.memory_space<vmem>>, vector<1x4x4x144xbf16>
    %83 = vector.shape_cast %82 : vector<1x4x4x144xbf16> to vector<4x4x144xbf16>
    %84 = vector.shape_cast %81 : vector<4x4x144xbf16> to vector<1x4x4x144xbf16>
    tpu.vector_store %arg5[%c0_10, %c0_11, %c0_12, %c0_13], %84 {strides = array<i32>} : memref<1x4x4x144xbf16, #tpu.memory_space<vmem>>, vector<1x4x4x144xbf16>,
    %cst_14 = arith.constant dense<0.000000e+00> : vector<144xf32>
    %85 = vector.multi_reduction <add>, %80, %cst_14 [0, 1] : vector<4x4x144xf32> to vector<144xf32>
    %cst_15 = arith.constant 1.600000e+01 : f32
    %86 = vector.broadcast %cst_15 : f32 to vector<144xf32>
    %87 = arith.divf %85, %86 : vector<144xf32>
    %88 = vector.shape_cast %87 : vector<144xf32> to vector<1x1x144xf32>
    %c0_16 = arith.constant 0 : index
    %c0_17 = arith.constant 0 : index
    %c0_18 = arith.constant 0 : index
    %89 = vector.load %arg6[%c0_16, %c0_17, %c0_18] : memref<1x1x144xf32, #tpu.memory_space<vmem>>, vector<1x1x144xf32>
    tpu.vector_store %arg6[%c0_16, %c0_17, %c0_18], %88 {strides = array<i32>} : memref<1x1x144xf32, #tpu.memory_space<vmem>>, vector<1x1x144xf32>,
    return
  }
  func.func @transform_0(%arg0: i32) -> (i32, i32, i32, i32) {
    %c0_i32 = arith.constant 0 : i32
    %c0_i32_0 = arith.constant 0 : i32
    %c0_i32_1 = arith.constant 0 : i32
    %c0_i32_2 = arith.constant 0 : i32
    return %arg0, %c0_i32, %c0_i32_0, %c0_i32_1 : i32, i32, i32, i32
  }
  func.func @transform_1(%arg0: i32) -> (i32, i32) {
    %c0_i32 = arith.constant 0 : i32
    %c0_i32_0 = arith.constant 0 : i32
    %c0_i32_1 = arith.constant 0 : i32
    return %c0_i32, %c0_i32_0 : i32, i32
  }
  func.func @transform_2(%arg0: i32) -> (i32, i32) {
    %c0_i32 = arith.constant 0 : i32
    %c0_i32_0 = arith.constant 0 : i32
    %c0_i32_1 = arith.constant 0 : i32
    return %c0_i32, %c0_i32_0 : i32, i32
  }
  func.func @transform_3(%arg0: i32) -> (i32, i32) {
    %c0_i32 = arith.constant 0 : i32
    %c0_i32_0 = arith.constant 0 : i32
    %c0_i32_1 = arith.constant 0 : i32
    return %c0_i32, %c0_i32_0 : i32, i32
  }
  func.func @transform_4(%arg0: i32) -> (i32, i32, i32, i32) {
    %c0_i32 = arith.constant 0 : i32
    %c0_i32_0 = arith.constant 0 : i32
    %c0_i32_1 = arith.constant 0 : i32
    %c0_i32_2 = arith.constant 0 : i32
    return %arg0, %c0_i32, %c0_i32_0, %c0_i32_1 : i32, i32, i32, i32
  }
  func.func @transform_5(%arg0: i32) -> (i32, i32, i32) {
    %c0_i32 = arith.constant 0 : i32
    %c0_i32_0 = arith.constant 0 : i32
    %c0_i32_1 = arith.constant 0 : i32
    return %arg0, %c0_i32, %c0_i32_0 : i32, i32, i32
  }
}

module attributes {stable_mosaic.version = 11 : i64} {
  func.func @kernel(%arg0: i32, %arg1: i32, %arg2: memref<1x16x144xbf16, #tpu.memory_space<vmem>>, %arg3: memref<1x1x144xbf16, #tpu.memory_space<vmem>>, %arg4: memref<144x24xbf16, #tpu.memory_space<vmem>>, %arg5: memref<1x24xf32, #tpu.memory_space<vmem>>, %arg6: memref<1x24xf32, #tpu.memory_space<vmem>>, %arg7: memref<1x16x24xbf16, #tpu.memory_space<vmem>>, %arg8: memref<1x16x24xbf16, #tpu.memory_space<vmem>>) attributes {dimension_semantics = [#tpu.dimension_semantics<parallel>, #tpu.dimension_semantics<parallel>], iteration_bounds = array<i64: 2, 1>, scalar_prefetch = 0 : i64, scratch_operands = 0 : i64, tpu.core_type = #tpu.core_type<tc>, window_params = [{transform_indices = @transform_0, window_bounds = array<i64: 1, 16, 144>}, {transform_indices = @transform_1, window_bounds = array<i64: 1, 1, 144>}, {pipeline_mode = #tpu.pipeline_mode<synchronous>, transform_indices = @transform_2, window_bounds = array<i64: 144, 24>}, {pipeline_mode = #tpu.pipeline_mode<synchronous>, transform_indices = @transform_3, window_bounds = array<i64: 1, 24>}, {pipeline_mode = #tpu.pipeline_mode<synchronous>, transform_indices = @transform_4, window_bounds = array<i64: 1, 24>}, {transform_indices = @transform_5, window_bounds = array<i64: 1, 16, 24>}, {transform_indices = @transform_6, window_bounds = array<i64: 1, 16, 24>}]} {
    %c0 = arith.constant 0 : index
    %c0_0 = arith.constant 0 : index
    %c0_1 = arith.constant 0 : index
    %0 = vector.load %arg2[%c0, %c0_0, %c0_1] : memref<1x16x144xbf16, #tpu.memory_space<vmem>>, vector<1x16x144xbf16>
    %1 = vector.shape_cast %0 : vector<1x16x144xbf16> to vector<16x144xbf16>
    %c0_2 = arith.constant 0 : index
    %c0_3 = arith.constant 0 : index
    %c0_4 = arith.constant 0 : index
    %2 = vector.load %arg3[%c0_2, %c0_3, %c0_4] : memref<1x1x144xbf16, #tpu.memory_space<vmem>>, vector<1x1x144xbf16>
    %3 = vector.shape_cast %2 : vector<1x1x144xbf16> to vector<1x144xbf16>
    %4 = vector.broadcast %3 : vector<1x144xbf16> to vector<16x144xbf16>
    %5 = arith.mulf %1, %4 : vector<16x144xbf16>
    %c0_5 = arith.constant 0 : index
    %c0_6 = arith.constant 0 : index
    %6 = vector.load %arg4[%c0_5, %c0_6] : memref<144x24xbf16, #tpu.memory_space<vmem>>, vector<144x24xbf16>
    %cst = arith.constant dense<0.000000e+00> : vector<16x24xf32>
    %7 = tpu.matmul %5, %6, %cst {dimension_numbers = #tpu.dot_dimension_numbers<[1], [0], [0], [1], [0, 0, 1, 1], [], []>} : vector<16x144xbf16>, vector<144x24xbf16>, vector<16x24xf32> -> vector<16x24xf32>
    %c0_7 = arith.constant 0 : index
    %c0_8 = arith.constant 0 : index
    %8 = vector.load %arg5[%c0_7, %c0_8] : memref<1x24xf32, #tpu.memory_space<vmem>>, vector<1x24xf32>
    %9 = vector.broadcast %8 : vector<1x24xf32> to vector<16x24xf32>
    %10 = arith.mulf %7, %9 : vector<16x24xf32>
    %c0_9 = arith.constant 0 : index
    %c0_10 = arith.constant 0 : index
    %11 = vector.load %arg6[%c0_9, %c0_10] : memref<1x24xf32, #tpu.memory_space<vmem>>, vector<1x24xf32>
    %12 = vector.broadcast %11 : vector<1x24xf32> to vector<16x24xf32>
    %13 = arith.addf %10, %12 : vector<16x24xf32>
    %c0_11 = arith.constant 0 : index
    %c0_12 = arith.constant 0 : index
    %c0_13 = arith.constant 0 : index
    %14 = vector.load %arg7[%c0_11, %c0_12, %c0_13] : memref<1x16x24xbf16, #tpu.memory_space<vmem>>, vector<1x16x24xbf16>
    %15 = vector.shape_cast %14 : vector<1x16x24xbf16> to vector<16x24xbf16>
    %16 = arith.extf %15 : vector<16x24xbf16> to vector<16x24xf32>
    %17 = arith.addf %13, %16 : vector<16x24xf32>
    %18 = arith.truncf %17 : vector<16x24xf32> to vector<16x24xbf16>
    %c0_14 = arith.constant 0 : index
    %c0_15 = arith.constant 0 : index
    %c0_16 = arith.constant 0 : index
    %19 = vector.load %arg8[%c0_14, %c0_15, %c0_16] : memref<1x16x24xbf16, #tpu.memory_space<vmem>>, vector<1x16x24xbf16>
    %20 = vector.shape_cast %19 : vector<1x16x24xbf16> to vector<16x24xbf16>
    %21 = vector.shape_cast %18 : vector<16x24xbf16> to vector<1x16x24xbf16>
    tpu.vector_store %arg8[%c0_14, %c0_15, %c0_16], %21 {strides = array<i32>} : memref<1x16x24xbf16, #tpu.memory_space<vmem>>, vector<1x16x24xbf16>,
    return
  }
  func.func @transform_0(%arg0: i32, %arg1: i32) -> (i32, i32, i32) {
    %c0_i32 = arith.constant 0 : i32
    %c0_i32_0 = arith.constant 0 : i32
    return %arg0, %arg1, %c0_i32 : i32, i32, i32
  }
  func.func @transform_1(%arg0: i32, %arg1: i32) -> (i32, i32, i32) {
    %c0_i32 = arith.constant 0 : i32
    %c0_i32_0 = arith.constant 0 : i32
    %c0_i32_1 = arith.constant 0 : i32
    return %arg0, %c0_i32, %c0_i32_0 : i32, i32, i32
  }
  func.func @transform_2(%arg0: i32, %arg1: i32) -> (i32, i32) {
    %c0_i32 = arith.constant 0 : i32
    %c0_i32_0 = arith.constant 0 : i32
    %c0_i32_1 = arith.constant 0 : i32
    return %c0_i32, %c0_i32_0 : i32, i32
  }
  func.func @transform_3(%arg0: i32, %arg1: i32) -> (i32, i32) {
    %c0_i32 = arith.constant 0 : i32
    %c0_i32_0 = arith.constant 0 : i32
    %c0_i32_1 = arith.constant 0 : i32
    return %c0_i32, %c0_i32_0 : i32, i32
  }
  func.func @transform_4(%arg0: i32, %arg1: i32) -> (i32, i32) {
    %c0_i32 = arith.constant 0 : i32
    %c0_i32_0 = arith.constant 0 : i32
    %c0_i32_1 = arith.constant 0 : i32
    return %c0_i32, %c0_i32_0 : i32, i32
  }
  func.func @transform_5(%arg0: i32, %arg1: i32) -> (i32, i32, i32) {
    %c0_i32 = arith.constant 0 : i32
    %c0_i32_0 = arith.constant 0 : i32
    return %arg0, %arg1, %c0_i32 : i32, i32, i32
  }
  func.func @transform_6(%arg0: i32, %arg1: i32) -> (i32, i32, i32) {
    %c0_i32 = arith.constant 0 : i32
    %c0_i32_0 = arith.constant 0 : i32
    return %arg0, %arg1, %c0_i32 : i32, i32, i32
  }
}

</mosaic_0001>

<llo_original>
// kernel: efficientnet_features_forward.9
$region0: #{efficientnet_features_forward.9}
  #allocation0 [shape = 'u32[]', space=smem, size = 0x4, offset = 0x4, fixed_abs, tag = 'smem constant byte address 0x4 - core index']
  #allocation1 [shape = 'u32[144,128]{1,0:T(1,128)}', space=vmem, size = 0x12000, scoped, tag = 'internal scratch']
  %s0 = inlined_call_operand.vmem [shape: bf16[2,64,27], index: 0, kind: input, shape index: {}]
  %s1 = inlined_call_operand.vmem [shape: bf16[27,32], index: 1, kind: input, shape index: {}]
  %s2 = inlined_call_operand.vmem [shape: f32[1,32], index: 2, kind: input, shape index: {}]
  %s3 = inlined_call_operand.vmem [shape: f32[1,32], index: 3, kind: input, shape index: {}]
  %s4 = inlined_call_operand.vmem [shape: bf16[2,64,32], index: 4, kind: output, shape index: {}]
  %s5 = sld [smem:[#allocation0]]
  $region49: #{efficientnet_features_forward.9} parent=0
    _
  %s7 = ssub.s32 1, %s5
  %s8 = scalar_select 0, %s7, %s5
  loop: start=0, step=1, limit=4
  $region2: #{efficientnet_features_forward.9} parent=0 // loop_pre_header
    _
  $region3: #{efficientnet_features_forward.9} parent=0 // loop_header
    %s10 = sphi 0, %s14
    %p11 = scmp.ge.s32.totalorder %s10, 4
    %s17 = sphi 0, %s29
    %s18 = sphi 0, %s25
    %s19 = sphi 0, %s17
    %s20 = sphi 0, %s18
    %s21 = sphi 0, %s19
    %s22 = sphi 0, %s20
    %s34 = sphi 0, %s36
    %s37 = sphi 0, %s34
    %s38 = sphi 0, %s37
    %s54 = sphi 0, %s38
    %s58 = sphi 0, %s58
    %s60 = sphi 0, %s58
    %s61 = sphi 0, %s60
    %s75 = sphi 0, %s61
    %s79 = sphi 0, %s79
    %s81 = sphi 0, %s79
    %s82 = sphi 0, %s81
    %s96 = sphi 0, %s82
    %s100 = sphi 0, %s100
    %s102 = sphi 0, %s100
    %s103 = sphi 0, %s102
    %s117 = sphi 0, %s103
    %s125 = sphi 0, %s127
    %s128 = sphi 0, %s125
    %s129 = sphi 0, %s128
    %s145 = sphi 0, %s129
  $region4: #{efficientnet_features_forward.9} parent=0 // loop_header_branch
    %13 = sbr.rel (%p11) target = $region8
  $region5: #{efficientnet_features_forward.9} parent=0 // loop_body
    %s15 = ssub.s32 %s10, 1
    %s16 = ssub.s32 %s10, 2
    %s23 = sadd.s32 1, %s18
    %p24 = scmp.ge.s32.totalorder %s23, 1
    %s25 = scalar_select %p24, 0, %s23
    %s26 = sadd.s32 1, %s17
    %s27 = scalar_select %p24, %s26, %s17
    %p28 = scmp.ge.s32.totalorder %s27, 2
    %s29 = scalar_select %p28, 0, %s27
    %s30 = ssub.s32 %s17, %s29
    %s31 = ssub.s32 %s18, %s25
    %s32 = sor.u32 %s30, %s31
    %p33 = scmp.eq.s32.totalorder %s32, 0
    %s35 = sadd.s32 %s34, 1
    %s36 = scalar_select %p33, %s34, %s35
    %p39 = pneg %p33
    %p40 = scmp.eq.s32.totalorder %s10, 1
    %p41 = por %p39, %p40
    %p42 = scmp.ne.s32.totalorder %s34, %s37
    %p43 = scmp.eq.s32.totalorder %s10, 0
    %p44 = por %p42, %p43
    %p45 = scmp.ne.s32.totalorder %s34, %s37
    %p46 = scmp.eq.s32.totalorder %s15, 1
    %p47 = por %p45, %p46
    %p48 = scmp.ne.s32.totalorder %s37, %s38
    %p49 = scmp.eq.s32.totalorder %s15, 0
    %p50 = por %p48, %p49
    %p51 = scmp.ne.s32.totalorder %s37, %s38
    %p52 = scmp.eq.s32.totalorder %s16, 1
    %p53 = por %p51, %p52
    %p55 = scmp.ne.s32.totalorder %s38, %s54
    %p56 = scmp.eq.s32.totalorder %s16, 0
    %p57 = por %p55, %p56
    %s59 = sadd.s32 %s58, 1
    %p62 = scmp.eq.s32.totalorder %s10, 1
    %p63 = scmp.ne.s32.totalorder %s58, %s60
    %p64 = scmp.eq.s32.totalorder %s10, 0
    %p65 = por %p63, %p64
    %p66 = scmp.ne.s32.totalorder %s58, %s60
    %p67 = scmp.eq.s32.totalorder %s15, 1
    %p68 = por %p66, %p67
    %p69 = scmp.ne.s32.totalorder %s60, %s61
    %p70 = scmp.eq.s32.totalorder %s15, 0
    %p71 = por %p69, %p70
    %p72 = scmp.ne.s32.totalorder %s60, %s61
    %p73 = scmp.eq.s32.totalorder %s16, 1
    %p74 = por %p72, %p73
    %p76 = scmp.ne.s32.totalorder %s61, %s75
    %p77 = scmp.eq.s32.totalorder %s16, 0
    %p78 = por %p76, %p77
    %s80 = sadd.s32 %s79, 1
    %p83 = scmp.eq.s32.totalorder %s10, 1
    %p84 = scmp.ne.s32.totalorder %s79, %s81
    %p85 = scmp.eq.s32.totalorder %s10, 0
    %p86 = por %p84, %p85
    %p87 = scmp.ne.s32.totalorder %s79, %s81
    %p88 = scmp.eq.s32.totalorder %s15, 1
    %p89 = por %p87, %p88
    %p90 = scmp.ne.s32.totalorder %s81, %s82
    %p91 = scmp.eq.s32.totalorder %s15, 0
    %p92 = por %p90, %p91
    %p93 = scmp.ne.s32.totalorder %s81, %s82
    %p94 = scmp.eq.s32.totalorder %s16, 1
    %p95 = por %p93, %p94
    %p97 = scmp.ne.s32.totalorder %s82, %s96
    %p98 = scmp.eq.s32.totalorder %s16, 0
    %p99 = por %p97, %p98
    %s101 = sadd.s32 %s100, 1
    %p104 = scmp.eq.s32.totalorder %s10, 1
    %p105 = scmp.ne.s32.totalorder %s100, %s102
    %p106 = scmp.eq.s32.totalorder %s10, 0
    %p107 = por %p105, %p106
    %p108 = scmp.ne.s32.totalorder %s100, %s102
    %p109 = scmp.eq.s32.totalorder %s15, 1
    %p110 = por %p108, %p109
    %p111 = scmp.ne.s32.totalorder %s102, %s103
    %p112 = scmp.eq.s32.totalorder %s15, 0
    %p113 = por %p111, %p112
    %p114 = scmp.ne.s32.totalorder %s102, %s103
    %p115 = scmp.eq.s32.totalorder %s16, 1
    %p116 = por %p114, %p115
    %p118 = scmp.ne.s32.totalorder %s103, %s117
    %p119 = scmp.eq.s32.totalorder %s16, 0
    %p120 = por %p118, %p119
    %s121 = ssub.s32 %s17, %s29
    %s122 = ssub.s32 %s18, %s25
    %s123 = sor.u32 %s121, %s122
    %p124 = scmp.eq.s32.totalorder %s123, 0
    %s126 = sadd.s32 %s125, 1
    %s127 = scalar_select %p124, %s125, %s126
    %p130 = pneg %p124
    %p131 = scmp.eq.s32.totalorder %s10, 1
    %p132 = por %p130, %p131
    %p133 = scmp.ne.s32.totalorder %s125, %s128
    %p134 = scmp.eq.s32.totalorder %s10, 0
    %p135 = por %p133, %p134
    %p136 = scmp.ne.s32.totalorder %s125, %s128
    %p137 = scmp.eq.s32.totalorder %s15, 1
    %p138 = por %p136, %p137
    %p139 = scmp.ne.s32.totalorder %s128, %s129
    %p140 = scmp.eq.s32.totalorder %s15, 0
    %p141 = por %p139, %p140
    %p142 = scmp.ne.s32.totalorder %s128, %s129
    %p143 = scmp.eq.s32.totalorder %s16, 1
    %p144 = por %p142, %p143
    %p146 = scmp.ne.s32.totalorder %s129, %s145
    %p147 = scmp.eq.s32.totalorder %s16, 0
    %p148 = por %p146, %p147
    %p149 = scmp.le.s32.totalorder 1, %s10
    %p150 = scmp.lt.s32.totalorder %s10, 3
    %p151 = pnand %p149, %p150
    %p152 = pneg %p151
    // Predicated region
    $region9: #{efficientnet_features_forward.9} parent=5 // pred_check
      _
    $region10: #{efficientnet_features_forward.9} parent=5 // pred_check_branch
      %154 = sbr.rel (%p151) target = $region12
    $region11: #{efficientnet_features_forward.9} parent=5 // pred_region
      %s155 = ssub.s32 %s10, 1
      // Predicated region
      $region13: #{efficientnet_features_forward.9} parent=11 // pred_check
        %p156 = pneg %p71
      $region14: #{efficientnet_features_forward.9} parent=11 // pred_check_branch
        %158 = sbr.rel (%p156) target = $region16
      $region15: #{efficientnet_features_forward.9} parent=11 // pred_region
        _
      $region16: #{efficientnet_features_forward.9} parent=11 // pred_fallthru
        _
      // Predicated region
      $region17: #{efficientnet_features_forward.9} parent=11 // pred_check
        %p159 = pneg %p92
      $region18: #{efficientnet_features_forward.9} parent=11 // pred_check_branch
        %161 = sbr.rel (%p159) target = $region20
      $region19: #{efficientnet_features_forward.9} parent=11 // pred_region
        _
      $region20: #{efficientnet_features_forward.9} parent=11 // pred_fallthru
        _
      // Predicated region
      $region21: #{efficientnet_features_forward.9} parent=11 // pred_check
        %p162 = pneg %p113
      $region22: #{efficientnet_features_forward.9} parent=11 // pred_check_branch
        %164 = sbr.rel (%p162) target = $region24
      $region23: #{efficientnet_features_forward.9} parent=11 // pred_region
        _
      $region24: #{efficientnet_features_forward.9} parent=11 // pred_fallthru
        _
    $region12: #{efficientnet_features_forward.9} parent=5 // pred_fallthru
      _
    %p165 = scmp.lt.s32.totalorder %s10, 2
    // Predicated region
    $region25: #{efficientnet_features_forward.9} parent=5 // pred_check
      %p166 = pneg %p165
    $region26: #{efficientnet_features_forward.9} parent=5 // pred_check_branch
      %168 = sbr.rel (%p166) target = $region28
    $region27: #{efficientnet_features_forward.9} parent=5 // pred_region
      // Predicated region
      $region29: #{efficientnet_features_forward.9} parent=27 // pred_check
        %p169 = pneg %p44
      $region30: #{efficientnet_features_forward.9} parent=27 // pred_check_branch
        %171 = sbr.rel (%p169) target = $region32
      $region31: #{efficientnet_features_forward.9} parent=27 // pred_region
        %s172 = smul.u32 8, %s18
        %p173 = scmp.lt.s32.totalorder %s17, 1
        %s174 = scalar_select %p173, %s17, 1
        %p175 = scmp.lt.s32.totalorder %s172, 7
        %s176 = scalar_select %p175, %s172, 7
        %s177 = smul.addr %s174, 8
        %s178 = sadd.s32 %s176, %s177
        %s179 = smul.addr %s178, 4
        %s180 = scalar_lea.vmem %s0, %s179
        %s181 = smul.u32 8, %s18
      $region32: #{efficientnet_features_forward.9} parent=27 // pred_fallthru
        _
    $region28: #{efficientnet_features_forward.9} parent=5 // pred_fallthru
      _
    %p182 = scmp.le.s32.totalorder 1, %s10
    %p183 = scmp.lt.s32.totalorder %s10, 3
    %p184 = pnand %p182, %p183
    %p185 = pneg %p184
    // Predicated region
    $region33: #{efficientnet_features_forward.9} parent=5 // pred_check
      _
    $region34: #{efficientnet_features_forward.9} parent=5 // pred_check_branch
      %187 = sbr.rel (%p184) target = $region36
    $region35: #{efficientnet_features_forward.9} parent=5 // pred_region
      %s188 = ssub.s32 %s10, 1
      %s189 = smul.u32 8, %s20
      %p190 = scmp.lt.s32.totalorder %s19, 1
      %s191 = scalar_select %p190, %s19, 1
      %p192 = scmp.lt.s32.totalorder %s189, 7
      %s193 = scalar_select %p192, %s189, 7
      %s194 = smul.addr %s191, 8
      %s195 = sadd.s32 %s193, %s194
      %s196 = smul.addr %s195, 4
      %s197 = scalar_lea.vmem %s0, %s196
      %p198 = pneg %p50
      %p199 = pneg %p47
      %p200 = pneg %p71
      %p201 = pneg %p68
      %p202 = pneg %p92
      %p203 = pneg %p89
      %p204 = pneg %p113
      %p205 = pneg %p110
      %p206 = pneg %p141
      %p207 = pneg %p138
      %s208 = smul.u32 8, %s20
      %p209 = scmp.lt.s32.totalorder %s19, 1
      %s210 = scalar_select %p209, %s19, 1
      %p211 = scmp.lt.s32.totalorder %s208, 7
      %s212 = scalar_select %p211, %s208, 7
      %s213 = smul.addr %s210, 8
      %s214 = sadd.s32 %s212, %s213
      %s215 = smul.addr %s214, 4
      %s216 = scalar_lea.vmem %s4, %s215
      %s217 = smul.u32 8, %s20
      %p218 = scmp.lt.s32.totalorder %s19, 1
      %s219 = scalar_select %p218, %s19, 1
      %p220 = scmp.lt.s32.totalorder %s217, 7
      %s221 = scalar_select %p220, %s217, 7
      %s222 = smul.addr %s219, 8
      %s223 = sadd.s32 %s221, %s222
      %s224 = smul.addr %s223, 4
      %s225 = scalar_lea.vmem %s0, %s224
      %s226 = smul.u32 8, %s20
      %s227 = smul.u32 8, %s20
      %p228 = scmp.lt.s32.totalorder %s19, 1
      %s229 = scalar_select %p228, %s19, 1
      %p230 = scmp.lt.s32.totalorder %s227, 7
      %s231 = scalar_select %p230, %s227, 7
      %s232 = smul.addr %s229, 8
      %s233 = sadd.s32 %s231, %s232
      %s234 = smul.addr %s233, 4
      %s235 = scalar_lea.vmem %s4, %s234
      %s236 = smul.u32 8, %s20
      %v238 = vld [vmem:[%s225] sm:$0xf]
      %v239 = vld [vmem:[%s225 + $0x4] sm:$0xf]
      %v240 = vld [vmem:[%s225 + $0x8] sm:$0xf]
      %v241 = vld [vmem:[%s225 + $0xc] sm:$0xf]
      %v242 = vld [vmem:[%s225 + $0x10] sm:$0xf]
      %v243 = vld [vmem:[%s225 + $0x14] sm:$0xf]
      %v244 = vld [vmem:[%s225 + $0x18] sm:$0xf]
      %v245 = vld [vmem:[%s225 + $0x1c] sm:$0xf]
      %v246 = vld [vmem:[%s1] sm:$0xf]
      %v247 = vld [vmem:[%s1 + $0x4] sm:$0xf]
      %v248 = vld [vmem:[%s1 + $0x8] sm:$0xf]
      %v249 = vld [vmem:[%s1 + $0xc] sm:$0x3]
      %v258 = vunpack.c.l.b16 %v238
      %v259 = vunpack.c.l.b16 %v239
      %v260 = vunpack.c.l.b16 %v240
      %v261 = vunpack.c.l.b16 %v241
      %v262 = vunpack.c.l.b16 %v242
      %v263 = vunpack.c.l.b16 %v243
      %v264 = vunpack.c.l.b16 %v244
      %v265 = vunpack.c.l.b16 %v245
      %v266 = vpack.c.b16 %v259, %v258
      %v267 = vpack.c.b16 %v261, %v260
      %v268 = vpack.c.b16 %v263, %v262
      %v269 = vpack.c.b16 %v265, %v264
      %v274 = vunpack.c.l.b16 %v246
      %v275 = vunpack.c.l.b16 %v247
      %v276 = vunpack.c.l.b16 %v248
      %v277 = vunpack.c.l.b16 %v249
      %v278 = vpack.c.b16 %v275, %v274
      %v279 = vpack.c.b16 %v277, %v276
      %vm281 = vcmask 220160
      %v283 = vsel %vm281, %v266, 0
      %v286 = vsel %vm281, %v267, 0
      %v289 = vsel %vm281, %v268, 0
      %v292 = vsel %vm281, %v269, 0
      %vm294 = vcmask 1044480
      %vm295 = vcmask 1045504
      %v296 = vsel %vm294, 4294967295, 65535
      %v297 = vsel %vm295, %v296, 0
      %v299 = vand.u32 %v279, %v297
      %301 = vmatprep.subr.bf16.mxu0 0
      %302 = vmatpush1.bf16.msra.mxu0 %v278
      %303 = vmatprep.subr.bf16.mxu0 0
      %304 = vmatpush1.bf16.msra.mxu0 %v299
      %305 = vmatprep.subr.bf16.mxu0 0
      %306 = vmatpush1.bf16.msra.mxu0 0
      %307 = vmatprep.subr.bf16.mxu0 0
      %308 = vmatpush1.bf16.msra.mxu0 0
      %309 = vmatprep.subr.bf16.mxu0 0
      %310 = vmatpush1.bf16.msra.mxu0 0
      %311 = vmatprep.subr.bf16.mxu0 0
      %312 = vmatpush1.bf16.msra.mxu0 0
      %313 = vmatprep.subr.bf16.mxu0 0
      %314 = vmatpush1.bf16.msra.mxu0 0
      %315 = vmatprep.subr.bf16.mxu0 0
      %316 = vmatpush1.bf16.msra.mxu0 0
      %317 = vmatprep.subr.bf16.mxu0 0
      %318 = vmatpush1.bf16.msra.mxu0 0
      %319 = vmatprep.subr.bf16.mxu0 0
      %320 = vmatpush1.bf16.msra.mxu0 0
      %321 = vmatprep.subr.bf16.mxu0 0
      %322 = vmatpush1.bf16.msra.mxu0 0
      %323 = vmatprep.subr.bf16.mxu0 0
      %324 = vmatpush1.bf16.msra.mxu0 0
      %325 = vmatprep.subr.bf16.mxu0 0
      %326 = vmatpush1.bf16.msra.mxu0 0
      %327 = vmatprep.subr.bf16.mxu0 0
      %328 = vmatpush1.bf16.msra.mxu0 0
      %329 = vmatprep.subr.bf16.mxu0 0
      %330 = vmatpush1.bf16.msra.mxu0 0
      %331 = vmatprep.subr.bf16.mxu0 0
      %332 = vmatpush1.bf16.msra.mxu0 0
      %333 = vmatprep.mubr.bf16.mxu0 0
      %334 = vmatmul.mubr.bf16.gmra.mrb[0].mxu0 %v283
      %v335 = vpop.f32.mrb[0].mxu0
      %v336 = vadd.f32 0.0, %v335
      %v337 = vpop.f32.mrb[0].mxu0
      %v338 = vpop.f32.mrb[0].mxu0
      %v339 = vadd.f32 0.0, %v338
      %v340 = vpop.f32.mrb[0].mxu0
      %341 = vmatprep.mubr.bf16.mxu0 0
      %342 = vmatmul.mubr.bf16.gmra.mrb[0].mxu0 %v286
      %v343 = vpop.f32.mrb[0].mxu0
      %v344 = vadd.f32 0.0, %v343
      %v345 = vpop.f32.mrb[0].mxu0
      %v346 = vpop.f32.mrb[0].mxu0
      %v347 = vadd.f32 0.0, %v346
      %v348 = vpop.f32.mrb[0].mxu0
      %349 = vmatprep.mubr.bf16.mxu0 0
      %350 = vmatmul.mubr.bf16.gmra.mrb[0].mxu0 %v289
      %v351 = vpop.f32.mrb[0].mxu0
      %v352 = vadd.f32 0.0, %v351
      %v353 = vpop.f32.mrb[0].mxu0
      %v354 = vpop.f32.mrb[0].mxu0
      %v355 = vadd.f32 0.0, %v354
      %v356 = vpop.f32.mrb[0].mxu0
      %357 = vmatprep.mubr.bf16.mxu0 0
      %358 = vmatmul.mubr.bf16.gmra.mrb[0].mxu0 %v292
      %v359 = vpop.f32.mrb[0].mxu0
      %v360 = vadd.f32 0.0, %v359
      %v361 = vpop.f32.mrb[0].mxu0
      %v362 = vpop.f32.mrb[0].mxu0
      %v363 = vadd.f32 0.0, %v362
      %v364 = vpop.f32.mrb[0].mxu0
      %365 = vdwg.mxu0
      %v366 = vld [vmem:[%s2] sm:$0x1]
      %v368 = vlaneseq
      %v369 = vshrl.u32 %v368, 7
      %v370 = vsub.s32 0, %v369
      %v371 = vrot.slane %v366, %v370
      %v373 = vmul.f32 %v336, %v371
      %v374 = vmul.f32 %v339, %v371
      %v375 = vmul.f32 %v344, %v371
      %v376 = vmul.f32 %v347, %v371
      %v377 = vmul.f32 %v352, %v371
      %v378 = vmul.f32 %v355, %v371
      %v379 = vmul.f32 %v360, %v371
      %v380 = vmul.f32 %v363, %v371
      %v381 = vld [vmem:[%s3] sm:$0x1]
      %v383 = vlaneseq
      %v384 = vshrl.u32 %v383, 7
      %v385 = vsub.s32 0, %v384
      %v386 = vrot.slane %v381, %v385
      %v388 = vadd.f32 %v373, %v386
      %v389 = vadd.f32 %v374, %v386
      %v390 = vadd.f32 %v375, %v386
      %v391 = vadd.f32 %v376, %v386
      %v392 = vadd.f32 %v377, %v386
      %v393 = vadd.f32 %v378, %v386
      %v394 = vadd.f32 %v379, %v386
      %v395 = vadd.f32 %v380, %v386
      %v396 = vmax.f32 %v388, 0.0
      %v397 = vmax.f32 %v389, 0.0
      %v398 = vmax.f32 %v390, 0.0
      %v399 = vmax.f32 %v391, 0.0
      %v400 = vmax.f32 %v392, 0.0
      %v401 = vmax.f32 %v393, 0.0
      %v402 = vmax.f32 %v394, 0.0
      %v403 = vmax.f32 %v395, 0.0
      %v404 = vpack.c.bf16 %v397, %v396
      %v405 = vpack.c.bf16 %v399, %v398
      %v406 = vpack.c.bf16 %v401, %v400
      %v407 = vpack.c.bf16 %v403, %v402
      %v412 = vunpack.c.l.b16 %v404
      %v413 = vunpack.c.h.b16 %v404
      %v414 = vunpack.c.l.b16 %v405
      %v415 = vunpack.c.h.b16 %v405
      %v416 = vunpack.c.l.b16 %v406
      %v417 = vunpack.c.h.b16 %v406
      %v418 = vunpack.c.l.b16 %v407
      %v419 = vunpack.c.h.b16 %v407
      %v420 = vpack.c.b16 %v412, %v412
      %v421 = vpack.c.b16 %v413, %v413
      %v422 = vpack.c.b16 %v414, %v414
      %v423 = vpack.c.b16 %v415, %v415
      %v424 = vpack.c.b16 %v416, %v416
      %v425 = vpack.c.b16 %v417, %v417
      %v426 = vpack.c.b16 %v418, %v418
      %v427 = vpack.c.b16 %v419, %v419
      %vm436 = vcmask 257024
      %437 = vst.msk [vmem:[%s235] sm:$0xf] %vm436, %v420
      %438 = vst.msk [vmem:[%s235 + $0x4] sm:$0xf] %vm436, %v421
      %439 = vst.msk [vmem:[%s235 + $0x8] sm:$0xf] %vm436, %v422
      %440 = vst.msk [vmem:[%s235 + $0xc] sm:$0xf] %vm436, %v423
      %441 = vst.msk [vmem:[%s235 + $0x10] sm:$0xf] %vm436, %v424
      %442 = vst.msk [vmem:[%s235 + $0x14] sm:$0xf] %vm436, %v425
      %443 = vst.msk [vmem:[%s235 + $0x18] sm:$0xf] %vm436, %v426
      %444 = vst.msk [vmem:[%s235 + $0x1c] sm:$0xf] %vm436, %v427
      %s445 = smul.u32 8, %s20
      %p446 = scmp.lt.s32.totalorder %s19, 1
      %s447 = scalar_select %p446, %s19, 1
      %p448 = scmp.lt.s32.totalorder %s445, 7
      %s449 = scalar_select %p448, %s445, 7
      %s450 = smul.addr %s447, 8
      %s451 = sadd.s32 %s449, %s450
      %s452 = smul.addr %s451, 4
      %s453 = scalar_lea.vmem %s4, %s452
      // Predicated region
      $region37: #{efficientnet_features_forward.9} parent=35 // pred_check
        %p454 = pneg %p138
      $region38: #{efficientnet_features_forward.9} parent=35 // pred_check_branch
        %456 = sbr.rel (%p454) target = $region40
      $region39: #{efficientnet_features_forward.9} parent=35 // pred_region
        %s457 = smul.u32 8, %s20
      $region40: #{efficientnet_features_forward.9} parent=35 // pred_fallthru
        _
    $region36: #{efficientnet_features_forward.9} parent=5 // pred_fallthru
      _
    %p458 = scmp.le.s32.totalorder 2, %s10
    // Predicated region
    $region41: #{efficientnet_features_forward.9} parent=5 // pred_check
      %p459 = pneg %p458
    $region42: #{efficientnet_features_forward.9} parent=5 // pred_check_branch
      %461 = sbr.rel (%p459) target = $region44
    $region43: #{efficientnet_features_forward.9} parent=5 // pred_region
      %s462 = ssub.s32 %s10, 2
      // Predicated region
      $region45: #{efficientnet_features_forward.9} parent=43 // pred_check
        %p463 = pneg %p144
      $region46: #{efficientnet_features_forward.9} parent=43 // pred_check_branch
        %465 = sbr.rel (%p463) target = $region48
      $region47: #{efficientnet_features_forward.9} parent=43 // pred_region
        %s466 = smul.u32 8, %s22
        %p467 = scmp.lt.s32.totalorder %s21, 1
        %s468 = scalar_select %p467, %s21, 1
        %p469 = scmp.lt.s32.totalorder %s466, 7
        %s470 = scalar_select %p469, %s466, 7
        %s471 = smul.addr %s468, 8
        %s472 = sadd.s32 %s470, %s471
        %s473 = smul.addr %s472, 4
        %s474 = scalar_lea.vmem %s4, %s473
      $region48: #{efficientnet_features_forward.9} parent=43 // pred_fallthru
        _
    $region44: #{efficientnet_features_forward.9} parent=5 // pred_fallthru
      _
  $region6: #{efficientnet_features_forward.9} parent=0 // loop_footer
    %s14 = sadd.s32 1, %s10
  $region7: #{efficientnet_features_forward.9} parent=0 // loop_footer_branch
    %9 = sbr.rel target = $region3
  $region8: #{efficientnet_features_forward.9} parent=0 // loop_exit
    _

// kernel: efficientnet_features_forward.10
$region0: #{efficientnet_features_forward.10}
  #allocation0 [shape = 'u32[]', space=smem, size = 0x4, offset = 0x4, fixed_abs, tag = 'smem constant byte address 0x4 - core index']
  #allocation1 [shape = 'u32[144,128]{1,0:T(1,128)}', space=vmem, size = 0x12000, scoped, tag = 'internal scratch']
  %s0 = inlined_call_operand.vmem [shape: bf16[2,10,10,32], index: 0, kind: input, shape index: {}]
  %s1 = inlined_call_operand.vmem [shape: bf16[9,32], index: 1, kind: input, shape index: {}]
  %s2 = inlined_call_operand.vmem [shape: f32[1,32], index: 2, kind: input, shape index: {}]
  %s3 = inlined_call_operand.vmem [shape: f32[1,32], index: 3, kind: input, shape index: {}]
  %s4 = inlined_call_operand.vmem [shape: bf16[2,8,8,32], index: 4, kind: output, shape index: {0}]
  %s5 = inlined_call_operand.vmem [shape: f32[2,1,32], index: 5, kind: output, shape index: {1}]
  %6 = xla_tuple %s4, %s5
  %s7 = sld [smem:[#allocation0]]
  $region57: #{efficientnet_features_forward.10} parent=0
    _
  %s9 = ssub.s32 1, %s7
  %s10 = scalar_select 0, %s9, %s7
  loop: start=0, step=1, limit=4
  $region2: #{efficientnet_features_forward.10} parent=0 // loop_pre_header
    _
  $region3: #{efficientnet_features_forward.10} parent=0 // loop_header
    %s12 = sphi 0, %s16
    %p13 = scmp.ge.s32.totalorder %s12, 4
    %s22 = sphi 0, %s24
    %s25 = sphi 0, %s22
    %s26 = sphi 0, %s25
    %s42 = sphi 0, %s26
    %s46 = sphi 0, %s46
    %s48 = sphi 0, %s46
    %s49 = sphi 0, %s48
    %s63 = sphi 0, %s49
    %s67 = sphi 0, %s67
    %s69 = sphi 0, %s67
    %s70 = sphi 0, %s69
    %s84 = sphi 0, %s70
    %s88 = sphi 0, %s88
    %s90 = sphi 0, %s88
    %s91 = sphi 0, %s90
    %s105 = sphi 0, %s91
    %s111 = sphi 0, %s113
    %s114 = sphi 0, %s111
    %s115 = sphi 0, %s114
    %s131 = sphi 0, %s115
    %s137 = sphi 0, %s139
    %s140 = sphi 0, %s137
    %s141 = sphi 0, %s140
    %s157 = sphi 0, %s141
  $region4: #{efficientnet_features_forward.10} parent=0 // loop_header_branch
    %15 = sbr.rel (%p13) target = $region8
  $region5: #{efficientnet_features_forward.10} parent=0 // loop_body
    %s17 = ssub.s32 %s12, 1
    %s18 = ssub.s32 %s12, 2
    %s19 = sadd.s32 %s12, 1
    %s20 = ssub.s32 %s12, %s19
    %p21 = scmp.eq.s32.totalorder %s20, 0
    %s23 = sadd.s32 %s22, 1
    %s24 = scalar_select %p21, %s22, %s23
    %p27 = pneg %p21
    %p28 = scmp.eq.s32.totalorder %s12, 1
    %p29 = por %p27, %p28
    %p30 = scmp.ne.s32.totalorder %s22, %s25
    %p31 = scmp.eq.s32.totalorder %s12, 0
    %p32 = por %p30, %p31
    %p33 = scmp.ne.s32.totalorder %s22, %s25
    %p34 = scmp.eq.s32.totalorder %s17, 1
    %p35 = por %p33, %p34
    %p36 = scmp.ne.s32.totalorder %s25, %s26
    %p37 = scmp.eq.s32.totalorder %s17, 0
    %p38 = por %p36, %p37
    %p39 = scmp.ne.s32.totalorder %s25, %s26
    %p40 = scmp.eq.s32.totalorder %s18, 1
    %p41 = por %p39, %p40
    %p43 = scmp.ne.s32.totalorder %s26, %s42
    %p44 = scmp.eq.s32.totalorder %s18, 0
    %p45 = por %p43, %p44
    %s47 = sadd.s32 %s46, 1
    %p50 = scmp.eq.s32.totalorder %s12, 1
    %p51 = scmp.ne.s32.totalorder %s46, %s48
    %p52 = scmp.eq.s32.totalorder %s12, 0
    %p53 = por %p51, %p52
    %p54 = scmp.ne.s32.totalorder %s46, %s48
    %p55 = scmp.eq.s32.totalorder %s17, 1
    %p56 = por %p54, %p55
    %p57 = scmp.ne.s32.totalorder %s48, %s49
    %p58 = scmp.eq.s32.totalorder %s17, 0
    %p59 = por %p57, %p58
    %p60 = scmp.ne.s32.totalorder %s48, %s49
    %p61 = scmp.eq.s32.totalorder %s18, 1
    %p62 = por %p60, %p61
    %p64 = scmp.ne.s32.totalorder %s49, %s63
    %p65 = scmp.eq.s32.totalorder %s18, 0
    %p66 = por %p64, %p65
    %s68 = sadd.s32 %s67, 1
    %p71 = scmp.eq.s32.totalorder %s12, 1
    %p72 = scmp.ne.s32.totalorder %s67, %s69
    %p73 = scmp.eq.s32.totalorder %s12, 0
    %p74 = por %p72, %p73
    %p75 = scmp.ne.s32.totalorder %s67, %s69
    %p76 = scmp.eq.s32.totalorder %s17, 1
    %p77 = por %p75, %p76
    %p78 = scmp.ne.s32.totalorder %s69, %s70
    %p79 = scmp.eq.s32.totalorder %s17, 0
    %p80 = por %p78, %p79
    %p81 = scmp.ne.s32.totalorder %s69, %s70
    %p82 = scmp.eq.s32.totalorder %s18, 1
    %p83 = por %p81, %p82
    %p85 = scmp.ne.s32.totalorder %s70, %s84
    %p86 = scmp.eq.s32.totalorder %s18, 0
    %p87 = por %p85, %p86
    %s89 = sadd.s32 %s88, 1
    %p92 = scmp.eq.s32.totalorder %s12, 1
    %p93 = scmp.ne.s32.totalorder %s88, %s90
    %p94 = scmp.eq.s32.totalorder %s12, 0
    %p95 = por %p93, %p94
    %p96 = scmp.ne.s32.totalorder %s88, %s90
    %p97 = scmp.eq.s32.totalorder %s17, 1
    %p98 = por %p96, %p97
    %p99 = scmp.ne.s32.totalorder %s90, %s91
    %p100 = scmp.eq.s32.totalorder %s17, 0
    %p101 = por %p99, %p100
    %p102 = scmp.ne.s32.totalorder %s90, %s91
    %p103 = scmp.eq.s32.totalorder %s18, 1
    %p104 = por %p102, %p103
    %p106 = scmp.ne.s32.totalorder %s91, %s105
    %p107 = scmp.eq.s32.totalorder %s18, 0
    %p108 = por %p106, %p107
    %s109 = ssub.s32 %s12, %s19
    %p110 = scmp.eq.s32.totalorder %s109, 0
    %s112 = sadd.s32 %s111, 1
    %s113 = scalar_select %p110, %s111, %s112
    %p116 = pneg %p110
    %p117 = scmp.eq.s32.totalorder %s12, 1
    %p118 = por %p116, %p117
    %p119 = scmp.ne.s32.totalorder %s111, %s114
    %p120 = scmp.eq.s32.totalorder %s12, 0
    %p121 = por %p119, %p120
    %p122 = scmp.ne.s32.totalorder %s111, %s114
    %p123 = scmp.eq.s32.totalorder %s17, 1
    %p124 = por %p122, %p123
    %p125 = scmp.ne.s32.totalorder %s114, %s115
    %p126 = scmp.eq.s32.totalorder %s17, 0
    %p127 = por %p125, %p126
    %p128 = scmp.ne.s32.totalorder %s114, %s115
    %p129 = scmp.eq.s32.totalorder %s18, 1
    %p130 = por %p128, %p129
    %p132 = scmp.ne.s32.totalorder %s115, %s131
    %p133 = scmp.eq.s32.totalorder %s18, 0
    %p134 = por %p132, %p133
    %s135 = ssub.s32 %s12, %s19
    %p136 = scmp.eq.s32.totalorder %s135, 0
    %s138 = sadd.s32 %s137, 1
    %s139 = scalar_select %p136, %s137, %s138
    %p142 = pneg %p136
    %p143 = scmp.eq.s32.totalorder %s12, 1
    %p144 = por %p142, %p143
    %p145 = scmp.ne.s32.totalorder %s137, %s140
    %p146 = scmp.eq.s32.totalorder %s12, 0
    %p147 = por %p145, %p146
    %p148 = scmp.ne.s32.totalorder %s137, %s140
    %p149 = scmp.eq.s32.totalorder %s17, 1
    %p150 = por %p148, %p149
    %p151 = scmp.ne.s32.totalorder %s140, %s141
    %p152 = scmp.eq.s32.totalorder %s17, 0
    %p153 = por %p151, %p152
    %p154 = scmp.ne.s32.totalorder %s140, %s141
    %p155 = scmp.eq.s32.totalorder %s18, 1
    %p156 = por %p154, %p155
    %p158 = scmp.ne.s32.totalorder %s141, %s157
    %p159 = scmp.eq.s32.totalorder %s18, 0
    %p160 = por %p158, %p159
    %p161 = scmp.le.s32.totalorder 1, %s12
    %p162 = scmp.lt.s32.totalorder %s12, 3
    %p163 = pnand %p161, %p162
    %p164 = pneg %p163
    // Predicated region
    $region9: #{efficientnet_features_forward.10} parent=5 // pred_check
      _
    $region10: #{efficientnet_features_forward.10} parent=5 // pred_check_branch
      %166 = sbr.rel (%p163) target = $region12
    $region11: #{efficientnet_features_forward.10} parent=5 // pred_region
      %s167 = ssub.s32 %s12, 1
      // Predicated region
      $region13: #{efficientnet_features_forward.10} parent=11 // pred_check
        %p168 = pneg %p59
      $region14: #{efficientnet_features_forward.10} parent=11 // pred_check_branch
        %170 = sbr.rel (%p168) target = $region16
      $region15: #{efficientnet_features_forward.10} parent=11 // pred_region
        _
      $region16: #{efficientnet_features_forward.10} parent=11 // pred_fallthru
        _
      // Predicated region
      $region17: #{efficientnet_features_forward.10} parent=11 // pred_check
        %p171 = pneg %p80
      $region18: #{efficientnet_features_forward.10} parent=11 // pred_check_branch
        %173 = sbr.rel (%p171) target = $region20
      $region19: #{efficientnet_features_forward.10} parent=11 // pred_region
        _
      $region20: #{efficientnet_features_forward.10} parent=11 // pred_fallthru
        _
      // Predicated region
      $region21: #{efficientnet_features_forward.10} parent=11 // pred_check
        %p174 = pneg %p101
      $region22: #{efficientnet_features_forward.10} parent=11 // pred_check_branch
        %176 = sbr.rel (%p174) target = $region24
      $region23: #{efficientnet_features_forward.10} parent=11 // pred_region
        _
      $region24: #{efficientnet_features_forward.10} parent=11 // pred_fallthru
        _
    $region12: #{efficientnet_features_forward.10} parent=5 // pred_fallthru
      _
    %p177 = scmp.lt.s32.totalorder %s12, 2
    // Predicated region
    $region25: #{efficientnet_features_forward.10} parent=5 // pred_check
      %p178 = pneg %p177
    $region26: #{efficientnet_features_forward.10} parent=5 // pred_check_branch
      %180 = sbr.rel (%p178) target = $region28
    $region27: #{efficientnet_features_forward.10} parent=5 // pred_region
      // Predicated region
      $region29: #{efficientnet_features_forward.10} parent=27 // pred_check
        %p181 = pneg %p32
      $region30: #{efficientnet_features_forward.10} parent=27 // pred_check_branch
        %183 = sbr.rel (%p181) target = $region32
      $region31: #{efficientnet_features_forward.10} parent=27 // pred_region
        %p184 = scmp.lt.s32.totalorder %s12, 1
        %s185 = scalar_select %p184, %s12, 1
        %s186 = smul.addr %s185, 20
        %s187 = smul.addr %s186, 4
        %s188 = scalar_lea.vmem %s0, %s187
      $region32: #{efficientnet_features_forward.10} parent=27 // pred_fallthru
        _
    $region28: #{efficientnet_features_forward.10} parent=5 // pred_fallthru
      _
    %p189 = scmp.le.s32.totalorder 1, %s12
    %p190 = scmp.lt.s32.totalorder %s12, 3
    %p191 = pnand %p189, %p190
    %p192 = pneg %p191
    // Predicated region
    $region33: #{efficientnet_features_forward.10} parent=5 // pred_check
      _
    $region34: #{efficientnet_features_forward.10} parent=5 // pred_check_branch
      %194 = sbr.rel (%p191) target = $region36
    $region35: #{efficientnet_features_forward.10} parent=5 // pred_region
      %s195 = ssub.s32 %s12, 1
      %p196 = scmp.lt.s32.totalorder %s17, 1
      %s197 = scalar_select %p196, %s17, 1
      %s198 = smul.addr %s197, 20
      %s199 = smul.addr %s198, 4
      %s200 = scalar_lea.vmem %s0, %s199
      %p201 = pneg %p38
      %p202 = pneg %p35
      %p203 = pneg %p59
      %p204 = pneg %p56
      %p205 = pneg %p80
      %p206 = pneg %p77
      %p207 = pneg %p101
      %p208 = pneg %p98
      %p209 = pneg %p127
      %p210 = pneg %p124
      %p211 = scmp.lt.s32.totalorder %s17, 1
      %s212 = scalar_select %p211, %s17, 1
      %s213 = smul.addr %s212, 8
      %s214 = smul.addr %s213, 4
      %s215 = scalar_lea.vmem %s4, %s214
      %p216 = pneg %p153
      %p217 = pneg %p150
      %p218 = scmp.lt.s32.totalorder %s17, 1
      %s219 = scalar_select %p218, %s17, 1
      %s220 = scalar_lea.vmem %s5, %s219
      %p221 = scmp.lt.s32.totalorder %s17, 1
      %s222 = scalar_select %p221, %s17, 1
      %s223 = smul.addr %s222, 20
      %s224 = smul.addr %s223, 4
      %s225 = scalar_lea.vmem %s0, %s224
      %p226 = scmp.lt.s32.totalorder %s17, 1
      %s227 = scalar_select %p226, %s17, 1
      %s228 = smul.addr %s227, 8
      %s229 = smul.addr %s228, 4
      %s230 = scalar_lea.vmem %s4, %s229
      %p231 = scmp.lt.s32.totalorder %s17, 1
      %s232 = scalar_select %p231, %s17, 1
      %s233 = scalar_lea.vmem %s5, %s232
      %v234 = vld [vmem:[%s225] sm:$0xf]
      %v235 = vld [vmem:[%s225 + $0x4] sm:$0x1]
      %v236 = vld [vmem:[%s225 + $0x8] sm:$0xf]
      %v237 = vld [vmem:[%s225 + $0xc] sm:$0x1]
      %v238 = vld [vmem:[%s225 + $0x10] sm:$0xf]
      %v239 = vld [vmem:[%s225 + $0x14] sm:$0x1]
      %v240 = vld [vmem:[%s225 + $0x18] sm:$0xf]
      %v241 = vld [vmem:[%s225 + $0x1c] sm:$0x1]
      %v242 = vld [vmem:[%s225 + $0x20] sm:$0xf]
      %v243 = vld [vmem:[%s225 + $0x24] sm:$0x1]
      %v244 = vld [vmem:[%s225 + $0x28] sm:$0xf]
      %v245 = vld [vmem:[%s225 + $0x2c] sm:$0x1]
      %v246 = vld [vmem:[%s225 + $0x30] sm:$0xf]
      %v247 = vld [vmem:[%s225 + $0x34] sm:$0x1]
      %v248 = vld [vmem:[%s225 + $0x38] sm:$0xf]
      %v249 = vld [vmem:[%s225 + $0x3c] sm:$0x1]
      %v250 = vld [vmem:[%s225 + $0x40] sm:$0xf]
      %v251 = vld [vmem:[%s225 + $0x44] sm:$0x1]
      %v252 = vld [vmem:[%s225 + $0x48] sm:$0xf]
      %v253 = vld [vmem:[%s225 + $0x4c] sm:$0x1]
      %v254 = vunpack.c.l.bf16 %v234
      %v255 = vunpack.c.l.bf16 %v235
      %v256 = vunpack.c.l.bf16 %v236
      %v257 = vunpack.c.l.bf16 %v237
      %v258 = vunpack.c.l.bf16 %v238
      %v259 = vunpack.c.l.bf16 %v239
      %v260 = vunpack.c.l.bf16 %v240
      %v261 = vunpack.c.l.bf16 %v241
      %v262 = vunpack.c.l.bf16 %v242
      %v263 = vunpack.c.l.bf16 %v243
      %v264 = vunpack.c.l.bf16 %v244
      %v265 = vunpack.c.l.bf16 %v245
      %v266 = vunpack.c.l.bf16 %v246
      %v267 = vunpack.c.l.bf16 %v247
      %v268 = vunpack.c.l.bf16 %v248
      %v269 = vunpack.c.l.bf16 %v249
      %v270 = vunpack.c.l.bf16 %v250
      %v271 = vunpack.c.l.bf16 %v251
      %v272 = vunpack.c.l.bf16 %v252
      %v273 = vunpack.c.l.bf16 %v253
      %v274 = vld [vmem:[%s1] sm:$0xf]
      %v275 = vld [vmem:[%s1 + $0x4] sm:$0x1]
      %v276 = vunpack.c.l.bf16 %v274
      %v277 = vunpack.c.l.bf16 %v275
      %v278 = vlaneseq
      %v279 = vshrl.u32 %v278, 7
      %v280 = vsub.s32 0, %v279
      %v281 = vrot.slane %v276, %v280
      %v282 = vmul.f32 %v254, %v281
      %v283 = vmul.f32 %v256, %v281
      %v284 = vmul.f32 %v258, %v281
      %v285 = vmul.f32 %v260, %v281
      %v286 = vmul.f32 %v262, %v281
      %v287 = vmul.f32 %v264, %v281
      %v288 = vmul.f32 %v266, %v281
      %v289 = vmul.f32 %v268, %v281
      %v290 = vadd.f32 %v282, 0.0
      %v291 = vadd.f32 %v283, 0.0
      %v292 = vadd.f32 %v284, 0.0
      %v293 = vadd.f32 %v285, 0.0
      %v294 = vadd.f32 %v286, 0.0
      %v295 = vadd.f32 %v287, 0.0
      %v296 = vadd.f32 %v288, 0.0
      %v297 = vadd.f32 %v289, 0.0
      %v298 = vlaneseq
      %v299 = vshrl.u32 %v298, 7
      %v300 = vsub.s32 1, %v299
      %v301 = vrot.slane %v276, %v300
      %v302 = vmul.f32 %v254, %v301
      %v303 = vmul.f32 %v255, %v301
      %v304 = vmul.f32 %v256, %v301
      %v305 = vmul.f32 %v257, %v301
      %v306 = vmul.f32 %v258, %v301
      %v307 = vmul.f32 %v259, %v301
      %v308 = vmul.f32 %v260, %v301
      %v309 = vmul.f32 %v261, %v301
      %v310 = vmul.f32 %v262, %v301
      %v311 = vmul.f32 %v263, %v301
      %v312 = vmul.f32 %v264, %v301
      %v313 = vmul.f32 %v265, %v301
      %v314 = vmul.f32 %v266, %v301
      %v315 = vmul.f32 %v267, %v301
      %v316 = vmul.f32 %v268, %v301
      %v317 = vmul.f32 %v269, %v301
      %vm334 = vcmask 1046528
      %v335 = vrot.slane %v302, 1
      %v336 = vrot.slane %v303, 1
      %v337 = vsel %vm334, %v335, %v336
      %v338 = vrot.slane %v304, 1
      %v339 = vrot.slane %v305, 1
      %v340 = vsel %vm334, %v338, %v339
      %v341 = vrot.slane %v306, 1
      %v342 = vrot.slane %v307, 1
      %v343 = vsel %vm334, %v341, %v342
      %v344 = vrot.slane %v308, 1
      %v345 = vrot.slane %v309, 1
      %v346 = vsel %vm334, %v344, %v345
      %v347 = vrot.slane %v310, 1
      %v348 = vrot.slane %v311, 1
      %v349 = vsel %vm334, %v347, %v348
      %v350 = vrot.slane %v312, 1
      %v351 = vrot.slane %v313, 1
      %v352 = vsel %vm334, %v350, %v351
      %v353 = vrot.slane %v314, 1
      %v354 = vrot.slane %v315, 1
      %v355 = vsel %vm334, %v353, %v354
      %v356 = vrot.slane %v316, 1
      %v357 = vrot.slane %v317, 1
      %v358 = vsel %vm334, %v356, %v357
      %v367 = vadd.f32 %v290, %v337
      %v368 = vadd.f32 %v291, %v340
      %v369 = vadd.f32 %v292, %v343
      %v370 = vadd.f32 %v293, %v346
      %v371 = vadd.f32 %v294, %v349
      %v372 = vadd.f32 %v295, %v352
      %v373 = vadd.f32 %v296, %v355
      %v374 = vadd.f32 %v297, %v358
      %v375 = vlaneseq
      %v376 = vshrl.u32 %v375, 7
      %v377 = vsub.s32 2, %v376
      %v378 = vrot.slane %v276, %v377
      %v379 = vmul.f32 %v254, %v378
      %v380 = vmul.f32 %v255, %v378
      %v381 = vmul.f32 %v256, %v378
      %v382 = vmul.f32 %v257, %v378
      %v383 = vmul.f32 %v258, %v378
      %v384 = vmul.f32 %v259, %v378
      %v385 = vmul.f32 %v260, %v378
      %v386 = vmul.f32 %v261, %v378
      %v387 = vmul.f32 %v262, %v378
      %v388 = vmul.f32 %v263, %v378
      %v389 = vmul.f32 %v264, %v378
      %v390 = vmul.f32 %v265, %v378
      %v391 = vmul.f32 %v266, %v378
      %v392 = vmul.f32 %v267, %v378
      %v393 = vmul.f32 %v268, %v378
      %v394 = vmul.f32 %v269, %v378
      %vm411 = vcmask 1045504
      %v412 = vrot.slane %v379, 2
      %v413 = vrot.slane %v380, 2
      %v414 = vsel %vm411, %v412, %v413
      %v415 = vrot.slane %v381, 2
      %v416 = vrot.slane %v382, 2
      %v417 = vsel %vm411, %v415, %v416
      %v418 = vrot.slane %v383, 2
      %v419 = vrot.slane %v384, 2
      %v420 = vsel %vm411, %v418, %v419
      %v421 = vrot.slane %v385, 2
      %v422 = vrot.slane %v386, 2
      %v423 = vsel %vm411, %v421, %v422
      %v424 = vrot.slane %v387, 2
      %v425 = vrot.slane %v388, 2
      %v426 = vsel %vm411, %v424, %v425
      %v427 = vrot.slane %v389, 2
      %v428 = vrot.slane %v390, 2
      %v429 = vsel %vm411, %v427, %v428
      %v430 = vrot.slane %v391, 2
      %v431 = vrot.slane %v392, 2
      %v432 = vsel %vm411, %v430, %v431
      %v433 = vrot.slane %v393, 2
      %v434 = vrot.slane %v394, 2
      %v435 = vsel %vm411, %v433, %v434
      %v444 = vadd.f32 %v367, %v414
      %v445 = vadd.f32 %v368, %v417
      %v446 = vadd.f32 %v369, %v420
      %v447 = vadd.f32 %v370, %v423
      %v448 = vadd.f32 %v371, %v426
      %v449 = vadd.f32 %v372, %v429
      %v450 = vadd.f32 %v373, %v432
      %v451 = vadd.f32 %v374, %v435
      %v452 = vlaneseq
      %v453 = vshrl.u32 %v452, 7
      %v454 = vsub.s32 3, %v453
      %v455 = vrot.slane %v276, %v454
      %v456 = vmul.f32 %v256, %v455
      %v457 = vmul.f32 %v258, %v455
      %v458 = vmul.f32 %v260, %v455
      %v459 = vmul.f32 %v262, %v455
      %v460 = vmul.f32 %v264, %v455
      %v461 = vmul.f32 %v266, %v455
      %v462 = vmul.f32 %v268, %v455
      %v463 = vmul.f32 %v270, %v455
      %v464 = vadd.f32 %v444, %v456
      %v465 = vadd.f32 %v445, %v457
      %v466 = vadd.f32 %v446, %v458
      %v467 = vadd.f32 %v447, %v459
      %v468 = vadd.f32 %v448, %v460
      %v469 = vadd.f32 %v449, %v461
      %v470 = vadd.f32 %v450, %v462
      %v471 = vadd.f32 %v451, %v463
      %v472 = vlaneseq
      %v473 = vshrl.u32 %v472, 7
      %v474 = vsub.s32 4, %v473
      %v475 = vrot.slane %v276, %v474
      %v476 = vmul.f32 %v256, %v475
      %v477 = vmul.f32 %v257, %v475
      %v478 = vmul.f32 %v258, %v475
      %v479 = vmul.f32 %v259, %v475
      %v480 = vmul.f32 %v260, %v475
      %v481 = vmul.f32 %v261, %v475
      %v482 = vmul.f32 %v262, %v475
      %v483 = vmul.f32 %v263, %v475
      %v484 = vmul.f32 %v264, %v475
      %v485 = vmul.f32 %v265, %v475
      %v486 = vmul.f32 %v266, %v475
      %v487 = vmul.f32 %v267, %v475
      %v488 = vmul.f32 %v268, %v475
      %v489 = vmul.f32 %v269, %v475
      %v490 = vmul.f32 %v270, %v475
      %v491 = vmul.f32 %v271, %v475
      %v508 = vrot.slane %v476, 1
      %v509 = vrot.slane %v477, 1
      %v510 = vsel %vm334, %v508, %v509
      %v511 = vrot.slane %v478, 1
      %v512 = vrot.slane %v479, 1
      %v513 = vsel %vm334, %v511, %v512
      %v514 = vrot.slane %v480, 1
      %v515 = vrot.slane %v481, 1
      %v516 = vsel %vm334, %v514, %v515
      %v517 = vrot.slane %v482, 1
      %v518 = vrot.slane %v483, 1
      %v519 = vsel %vm334, %v517, %v518
      %v520 = vrot.slane %v484, 1
      %v521 = vrot.slane %v485, 1
      %v522 = vsel %vm334, %v520, %v521
      %v523 = vrot.slane %v486, 1
      %v524 = vrot.slane %v487, 1
      %v525 = vsel %vm334, %v523, %v524
      %v526 = vrot.slane %v488, 1
      %v527 = vrot.slane %v489, 1
      %v528 = vsel %vm334, %v526, %v527
      %v529 = vrot.slane %v490, 1
      %v530 = vrot.slane %v491, 1
      %v531 = vsel %vm334, %v529, %v530
      %v540 = vadd.f32 %v464, %v510
      %v541 = vadd.f32 %v465, %v513
      %v542 = vadd.f32 %v466, %v516
      %v543 = vadd.f32 %v467, %v519
      %v544 = vadd.f32 %v468, %v522
      %v545 = vadd.f32 %v469, %v525
      %v546 = vadd.f32 %v470, %v528
      %v547 = vadd.f32 %v471, %v531
      %v548 = vlaneseq
      %v549 = vshrl.u32 %v548, 7
      %v550 = vsub.s32 5, %v549
      %v551 = vrot.slane %v276, %v550
      %v552 = vmul.f32 %v256, %v551
      %v553 = vmul.f32 %v257, %v551
      %v554 = vmul.f32 %v258, %v551
      %v555 = vmul.f32 %v259, %v551
      %v556 = vmul.f32 %v260, %v551
      %v557 = vmul.f32 %v261, %v551
      %v558 = vmul.f32 %v262, %v551
      %v559 = vmul.f32 %v263, %v551
      %v560 = vmul.f32 %v264, %v551
      %v561 = vmul.f32 %v265, %v551
      %v562 = vmul.f32 %v266, %v551
      %v563 = vmul.f32 %v267, %v551
      %v564 = vmul.f32 %v268, %v551
      %v565 = vmul.f32 %v269, %v551
      %v566 = vmul.f32 %v270, %v551
      %v567 = vmul.f32 %v271, %v551
      %v584 = vrot.slane %v552, 2
      %v585 = vrot.slane %v553, 2
      %v586 = vsel %vm411, %v584, %v585
      %v587 = vrot.slane %v554, 2
      %v588 = vrot.slane %v555, 2
      %v589 = vsel %vm411, %v587, %v588
      %v590 = vrot.slane %v556, 2
      %v591 = vrot.slane %v557, 2
      %v592 = vsel %vm411, %v590, %v591
      %v593 = vrot.slane %v558, 2
      %v594 = vrot.slane %v559, 2
      %v595 = vsel %vm411, %v593, %v594
      %v596 = vrot.slane %v560, 2
      %v597 = vrot.slane %v561, 2
      %v598 = vsel %vm411, %v596, %v597
      %v599 = vrot.slane %v562, 2
      %v600 = vrot.slane %v563, 2
      %v601 = vsel %vm411, %v599, %v600
      %v602 = vrot.slane %v564, 2
      %v603 = vrot.slane %v565, 2
      %v604 = vsel %vm411, %v602, %v603
      %v605 = vrot.slane %v566, 2
      %v606 = vrot.slane %v567, 2
      %v607 = vsel %vm411, %v605, %v606
      %v616 = vadd.f32 %v540, %v586
      %v617 = vadd.f32 %v541, %v589
      %v618 = vadd.f32 %v542, %v592
      %v619 = vadd.f32 %v543, %v595
      %v620 = vadd.f32 %v544, %v598
      %v621 = vadd.f32 %v545, %v601
      %v622 = vadd.f32 %v546, %v604
      %v623 = vadd.f32 %v547, %v607
      %v624 = vlaneseq
      %v625 = vshrl.u32 %v624, 7
      %v626 = vsub.s32 6, %v625
      %v627 = vrot.slane %v276, %v626
      %v628 = vmul.f32 %v258, %v627
      %v629 = vmul.f32 %v260, %v627
      %v630 = vmul.f32 %v262, %v627
      %v631 = vmul.f32 %v264, %v627
      %v632 = vmul.f32 %v266, %v627
      %v633 = vmul.f32 %v268, %v627
      %v634 = vmul.f32 %v270, %v627
      %v635 = vmul.f32 %v272, %v627
      %v636 = vadd.f32 %v616, %v628
      %v637 = vadd.f32 %v617, %v629
      %v638 = vadd.f32 %v618, %v630
      %v639 = vadd.f32 %v619, %v631
      %v640 = vadd.f32 %v620, %v632
      %v641 = vadd.f32 %v621, %v633
      %v642 = vadd.f32 %v622, %v634
      %v643 = vadd.f32 %v623, %v635
      %v644 = vlaneseq
      %v645 = vshrl.u32 %v644, 7
      %v646 = vsub.s32 7, %v645
      %v647 = vrot.slane %v276, %v646
      %v648 = vmul.f32 %v258, %v647
      %v649 = vmul.f32 %v259, %v647
      %v650 = vmul.f32 %v260, %v647
      %v651 = vmul.f32 %v261, %v647
      %v652 = vmul.f32 %v262, %v647
      %v653 = vmul.f32 %v263, %v647
      %v654 = vmul.f32 %v264, %v647
      %v655 = vmul.f32 %v265, %v647
      %v656 = vmul.f32 %v266, %v647
      %v657 = vmul.f32 %v267, %v647
      %v658 = vmul.f32 %v268, %v647
      %v659 = vmul.f32 %v269, %v647
      %v660 = vmul.f32 %v270, %v647
      %v661 = vmul.f32 %v271, %v647
      %v662 = vmul.f32 %v272, %v647
      %v663 = vmul.f32 %v273, %v647
      %v680 = vrot.slane %v648, 1
      %v681 = vrot.slane %v649, 1
      %v682 = vsel %vm334, %v680, %v681
      %v683 = vrot.slane %v650, 1
      %v684 = vrot.slane %v651, 1
      %v685 = vsel %vm334, %v683, %v684
      %v686 = vrot.slane %v652, 1
      %v687 = vrot.slane %v653, 1
      %v688 = vsel %vm334, %v686, %v687
      %v689 = vrot.slane %v654, 1
      %v690 = vrot.slane %v655, 1
      %v691 = vsel %vm334, %v689, %v690
      %v692 = vrot.slane %v656, 1
      %v693 = vrot.slane %v657, 1
      %v694 = vsel %vm334, %v692, %v693
      %v695 = vrot.slane %v658, 1
      %v696 = vrot.slane %v659, 1
      %v697 = vsel %vm334, %v695, %v696
      %v698 = vrot.slane %v660, 1
      %v699 = vrot.slane %v661, 1
      %v700 = vsel %vm334, %v698, %v699
      %v701 = vrot.slane %v662, 1
      %v702 = vrot.slane %v663, 1
      %v703 = vsel %vm334, %v701, %v702
      %v712 = vadd.f32 %v636, %v682
      %v713 = vadd.f32 %v637, %v685
      %v714 = vadd.f32 %v638, %v688
      %v715 = vadd.f32 %v639, %v691
      %v716 = vadd.f32 %v640, %v694
      %v717 = vadd.f32 %v641, %v697
      %v718 = vadd.f32 %v642, %v700
      %v719 = vadd.f32 %v643, %v703
      %v720 = vlaneseq
      %v721 = vshrl.u32 %v720, 7
      %v722 = vsub.s32 0, %v721
      %v723 = vrot.slane %v277, %v722
      %v724 = vmul.f32 %v258, %v723
      %v725 = vmul.f32 %v259, %v723
      %v726 = vmul.f32 %v260, %v723
      %v727 = vmul.f32 %v261, %v723
      %v728 = vmul.f32 %v262, %v723
      %v729 = vmul.f32 %v263, %v723
      %v730 = vmul.f32 %v264, %v723
      %v731 = vmul.f32 %v265, %v723
      %v732 = vmul.f32 %v266, %v723
      %v733 = vmul.f32 %v267, %v723
      %v734 = vmul.f32 %v268, %v723
      %v735 = vmul.f32 %v269, %v723
      %v736 = vmul.f32 %v270, %v723
      %v737 = vmul.f32 %v271, %v723
      %v738 = vmul.f32 %v272, %v723
      %v739 = vmul.f32 %v273, %v723
      %v756 = vrot.slane %v724, 2
      %v757 = vrot.slane %v725, 2
      %v758 = vsel %vm411, %v756, %v757
      %v759 = vrot.slane %v726, 2
      %v760 = vrot.slane %v727, 2
      %v761 = vsel %vm411, %v759, %v760
      %v762 = vrot.slane %v728, 2
      %v763 = vrot.slane %v729, 2
      %v764 = vsel %vm411, %v762, %v763
      %v765 = vrot.slane %v730, 2
      %v766 = vrot.slane %v731, 2
      %v767 = vsel %vm411, %v765, %v766
      %v768 = vrot.slane %v732, 2
      %v769 = vrot.slane %v733, 2
      %v770 = vsel %vm411, %v768, %v769
      %v771 = vrot.slane %v734, 2
      %v772 = vrot.slane %v735, 2
      %v773 = vsel %vm411, %v771, %v772
      %v774 = vrot.slane %v736, 2
      %v775 = vrot.slane %v737, 2
      %v776 = vsel %vm411, %v774, %v775
      %v777 = vrot.slane %v738, 2
      %v778 = vrot.slane %v739, 2
      %v779 = vsel %vm411, %v777, %v778
      %v788 = vadd.f32 %v712, %v758
      %v789 = vadd.f32 %v713, %v761
      %v790 = vadd.f32 %v714, %v764
      %v791 = vadd.f32 %v715, %v767
      %v792 = vadd.f32 %v716, %v770
      %v793 = vadd.f32 %v717, %v773
      %v794 = vadd.f32 %v718, %v776
      %v795 = vadd.f32 %v719, %v779
      %v796 = vld [vmem:[%s2] sm:$0x1]
      %v798 = vlaneseq
      %v799 = vshrl.u32 %v798, 7
      %v800 = vsub.s32 0, %v799
      %v801 = vrot.slane %v796, %v800
      %v803 = vmul.f32 %v788, %v801
      %v804 = vmul.f32 %v789, %v801
      %v805 = vmul.f32 %v790, %v801
      %v806 = vmul.f32 %v791, %v801
      %v807 = vmul.f32 %v792, %v801
      %v808 = vmul.f32 %v793, %v801
      %v809 = vmul.f32 %v794, %v801
      %v810 = vmul.f32 %v795, %v801
      %v811 = vld [vmem:[%s3] sm:$0x1]
      %v813 = vlaneseq
      %v814 = vshrl.u32 %v813, 7
      %v815 = vsub.s32 0, %v814
      %v816 = vrot.slane %v811, %v815
      %v818 = vadd.f32 %v803, %v816
      %v819 = vadd.f32 %v804, %v816
      %v820 = vadd.f32 %v805, %v816
      %v821 = vadd.f32 %v806, %v816
      %v822 = vadd.f32 %v807, %v816
      %v823 = vadd.f32 %v808, %v816
      %v824 = vadd.f32 %v809, %v816
      %v825 = vadd.f32 %v810, %v816
      %v826 = vmax.f32 %v818, 0.0
      %v827 = vmax.f32 %v819, 0.0
      %v828 = vmax.f32 %v820, 0.0
      %v829 = vmax.f32 %v821, 0.0
      %v830 = vmax.f32 %v822, 0.0
      %v831 = vmax.f32 %v823, 0.0
      %v832 = vmax.f32 %v824, 0.0
      %v833 = vmax.f32 %v825, 0.0
      %v834 = vpack.c.bf16 %v826, %v826
      %v835 = vpack.c.bf16 %v827, %v827
      %v836 = vpack.c.bf16 %v828, %v828
      %v837 = vpack.c.bf16 %v829, %v829
      %v838 = vpack.c.bf16 %v830, %v830
      %v839 = vpack.c.bf16 %v831, %v831
      %v840 = vpack.c.bf16 %v832, %v832
      %v841 = vpack.c.bf16 %v833, %v833
      %vm842 = vcmask 257024
      %843 = vst.msk [vmem:[%s230] sm:$0xf] %vm842, %v834
      %844 = vst.msk [vmem:[%s230 + $0x4] sm:$0xf] %vm842, %v835
      %845 = vst.msk [vmem:[%s230 + $0x8] sm:$0xf] %vm842, %v836
      %846 = vst.msk [vmem:[%s230 + $0xc] sm:$0xf] %vm842, %v837
      %847 = vst.msk [vmem:[%s230 + $0x10] sm:$0xf] %vm842, %v838
      %848 = vst.msk [vmem:[%s230 + $0x14] sm:$0xf] %vm842, %v839
      %849 = vst.msk [vmem:[%s230 + $0x18] sm:$0xf] %vm842, %v840
      %850 = vst.msk [vmem:[%s230 + $0x1c] sm:$0xf] %vm842, %v841
      %vm851 = vcmask 261120
      %v852 = vsel %vm851, %v826, 0.0
      %v853 = vsel %vm851, %v827, 0.0
      %v854 = vadd.f32 %v852, %v853
      %v855 = vsel %vm851, %v828, 0.0
      %v856 = vadd.f32 %v854, %v855
      %v857 = vsel %vm851, %v829, 0.0
      %v858 = vadd.f32 %v856, %v857
      %v859 = vsel %vm851, %v830, 0.0
      %v860 = vadd.f32 %v858, %v859
      %v861 = vsel %vm851, %v831, 0.0
      %v862 = vadd.f32 %v860, %v861
      %v863 = vsel %vm851, %v832, 0.0
      %v864 = vadd.f32 %v862, %v863
      %v865 = vsel %vm851, %v833, 0.0
      %v866 = vadd.f32 %v864, %v865
      %v867 = vrot.slane %v866, 4
      %v868 = vadd.f32 %v866, %v867
      %v869 = vrot.slane %v868, 2
      %v870 = vadd.f32 %v868, %v869
      %v871 = vrot.slane %v870, 1
      %v872 = vadd.f32 %v870, %v871
      %v873 = vrcp.pop 64.0
      %v874 = vmul.f32 %v872, %v873
      %vm875 = vcmask 253952
      %876 = vst.msk [vmem:[%s233] sm:$0x1] %vm875, %v874
      %p877 = scmp.lt.s32.totalorder %s17, 1
      %s878 = scalar_select %p877, %s17, 1
      %s879 = smul.addr %s878, 8
      %s880 = smul.addr %s879, 4
      %s881 = scalar_lea.vmem %s4, %s880
      %p882 = scmp.lt.s32.totalorder %s17, 1
      %s883 = scalar_select %p882, %s17, 1
      %s884 = scalar_lea.vmem %s5, %s883
      // Predicated region
      $region37: #{efficientnet_features_forward.10} parent=35 // pred_check
        %p885 = pneg %p124
      $region38: #{efficientnet_features_forward.10} parent=35 // pred_check_branch
        %887 = sbr.rel (%p885) target = $region40
      $region39: #{efficientnet_features_forward.10} parent=35 // pred_region
        _
      $region40: #{efficientnet_features_forward.10} parent=35 // pred_fallthru
        _
      // Predicated region
      $region41: #{efficientnet_features_forward.10} parent=35 // pred_check
        %p888 = pneg %p150
      $region42: #{efficientnet_features_forward.10} parent=35 // pred_check_branch
        %890 = sbr.rel (%p888) target = $region44
      $region43: #{efficientnet_features_forward.10} parent=35 // pred_region
        _
      $region44: #{efficientnet_features_forward.10} parent=35 // pred_fallthru
        _
    $region36: #{efficientnet_features_forward.10} parent=5 // pred_fallthru
      _
    %p891 = scmp.le.s32.totalorder 2, %s12
    // Predicated region
    $region45: #{efficientnet_features_forward.10} parent=5 // pred_check
      %p892 = pneg %p891
    $region46: #{efficientnet_features_forward.10} parent=5 // pred_check_branch
      %894 = sbr.rel (%p892) target = $region48
    $region47: #{efficientnet_features_forward.10} parent=5 // pred_region
      %s895 = ssub.s32 %s12, 2
      // Predicated region
      $region49: #{efficientnet_features_forward.10} parent=47 // pred_check
        %p896 = pneg %p130
      $region50: #{efficientnet_features_forward.10} parent=47 // pred_check_branch
        %898 = sbr.rel (%p896) target = $region52
      $region51: #{efficientnet_features_forward.10} parent=47 // pred_region
        %p899 = scmp.lt.s32.totalorder %s18, 1
        %s900 = scalar_select %p899, %s18, 1
        %s901 = smul.addr %s900, 8
        %s902 = smul.addr %s901, 4
        %s903 = scalar_lea.vmem %s4, %s902
      $region52: #{efficientnet_features_forward.10} parent=47 // pred_fallthru
        _
      // Predicated region
      $region53: #{efficientnet_features_forward.10} parent=47 // pred_check
        %p904 = pneg %p156
      $region54: #{efficientnet_features_forward.10} parent=47 // pred_check_branch
        %906 = sbr.rel (%p904) target = $region56
      $region55: #{efficientnet_features_forward.10} parent=47 // pred_region
        %p907 = scmp.lt.s32.totalorder %s18, 1
        %s908 = scalar_select %p907, %s18, 1
        %s909 = scalar_lea.vmem %s5, %s908
      $region56: #{efficientnet_features_forward.10} parent=47 // pred_fallthru
        _
    $region48: #{efficientnet_features_forward.10} parent=5 // pred_fallthru
      _
  $region6: #{efficientnet_features_forward.10} parent=0 // loop_footer
    %s16 = sadd.s32 1, %s12
  $region7: #{efficientnet_features_forward.10} parent=0 // loop_footer_branch
    %11 = sbr.rel target = $region3
  $region8: #{efficientnet_features_forward.10} parent=0 // loop_exit
    _

// kernel: efficientnet_features_forward.11
$region0: #{efficientnet_features_forward.11}
  #allocation0 [shape = 'u32[]', space=smem, size = 0x4, offset = 0x4, fixed_abs, tag = 'smem constant byte address 0x4 - core index']
  #allocation1 [shape = 'u32[144,128]{1,0:T(1,128)}', space=vmem, size = 0x12000, scoped, tag = 'internal scratch']
  %s0 = inlined_call_operand.vmem [shape: bf16[2,64,32], index: 0, kind: input, shape index: {}]
  %s1 = inlined_call_operand.vmem [shape: bf16[2,1,32], index: 1, kind: input, shape index: {}]
  %s2 = inlined_call_operand.vmem [shape: bf16[32,16], index: 2, kind: input, shape index: {}]
  %s3 = inlined_call_operand.vmem [shape: f32[1,16], index: 3, kind: input, shape index: {}]
  %s4 = inlined_call_operand.vmem [shape: f32[1,16], index: 4, kind: input, shape index: {}]
  %s5 = inlined_call_operand.vmem [shape: bf16[2,64,16], index: 5, kind: output, shape index: {}]
  %s6 = sld [smem:[#allocation0]]
  $region53: #{efficientnet_features_forward.11} parent=0
    _
  %s8 = ssub.s32 1, %s6
  %s9 = scalar_select 0, %s8, %s6
  loop: start=0, step=1, limit=4
  $region2: #{efficientnet_features_forward.11} parent=0 // loop_pre_header
    _
  $region3: #{efficientnet_features_forward.11} parent=0 // loop_header
    %s11 = sphi 0, %s15
    %p12 = scmp.ge.s32.totalorder %s11, 4
    %s18 = sphi 0, %s30
    %s19 = sphi 0, %s26
    %s20 = sphi 0, %s18
    %s21 = sphi 0, %s19
    %s22 = sphi 0, %s20
    %s23 = sphi 0, %s21
    %s35 = sphi 0, %s37
    %s38 = sphi 0, %s35
    %s39 = sphi 0, %s38
    %s55 = sphi 0, %s39
    %s61 = sphi 0, %s63
    %s64 = sphi 0, %s61
    %s65 = sphi 0, %s64
    %s81 = sphi 0, %s65
    %s85 = sphi 0, %s85
    %s87 = sphi 0, %s85
    %s88 = sphi 0, %s87
    %s102 = sphi 0, %s88
    %s106 = sphi 0, %s106
    %s108 = sphi 0, %s106
    %s109 = sphi 0, %s108
    %s123 = sphi 0, %s109
    %s127 = sphi 0, %s127
    %s129 = sphi 0, %s127
    %s130 = sphi 0, %s129
    %s144 = sphi 0, %s130
    %s152 = sphi 0, %s154
    %s155 = sphi 0, %s152
    %s156 = sphi 0, %s155
    %s172 = sphi 0, %s156
  $region4: #{efficientnet_features_forward.11} parent=0 // loop_header_branch
    %14 = sbr.rel (%p12) target = $region8
  $region5: #{efficientnet_features_forward.11} parent=0 // loop_body
    %s16 = ssub.s32 %s11, 1
    %s17 = ssub.s32 %s11, 2
    %s24 = sadd.s32 1, %s19
    %p25 = scmp.ge.s32.totalorder %s24, 1
    %s26 = scalar_select %p25, 0, %s24
    %s27 = sadd.s32 1, %s18
    %s28 = scalar_select %p25, %s27, %s18
    %p29 = scmp.ge.s32.totalorder %s28, 2
    %s30 = scalar_select %p29, 0, %s28
    %s31 = ssub.s32 %s18, %s30
    %s32 = ssub.s32 %s19, %s26
    %s33 = sor.u32 %s31, %s32
    %p34 = scmp.eq.s32.totalorder %s33, 0
    %s36 = sadd.s32 %s35, 1
    %s37 = scalar_select %p34, %s35, %s36
    %p40 = pneg %p34
    %p41 = scmp.eq.s32.totalorder %s11, 1
    %p42 = por %p40, %p41
    %p43 = scmp.ne.s32.totalorder %s35, %s38
    %p44 = scmp.eq.s32.totalorder %s11, 0
    %p45 = por %p43, %p44
    %p46 = scmp.ne.s32.totalorder %s35, %s38
    %p47 = scmp.eq.s32.totalorder %s16, 1
    %p48 = por %p46, %p47
    %p49 = scmp.ne.s32.totalorder %s38, %s39
    %p50 = scmp.eq.s32.totalorder %s16, 0
    %p51 = por %p49, %p50
    %p52 = scmp.ne.s32.totalorder %s38, %s39
    %p53 = scmp.eq.s32.totalorder %s17, 1
    %p54 = por %p52, %p53
    %p56 = scmp.ne.s32.totalorder %s39, %s55
    %p57 = scmp.eq.s32.totalorder %s17, 0
    %p58 = por %p56, %p57
    %s59 = ssub.s32 %s18, %s30
    %p60 = scmp.eq.s32.totalorder %s59, 0
    %s62 = sadd.s32 %s61, 1
    %s63 = scalar_select %p60, %s61, %s62
    %p66 = pneg %p60
    %p67 = scmp.eq.s32.totalorder %s11, 1
    %p68 = por %p66, %p67
    %p69 = scmp.ne.s32.totalorder %s61, %s64
    %p70 = scmp.eq.s32.totalorder %s11, 0
    %p71 = por %p69, %p70
    %p72 = scmp.ne.s32.totalorder %s61, %s64
    %p73 = scmp.eq.s32.totalorder %s16, 1
    %p74 = por %p72, %p73
    %p75 = scmp.ne.s32.totalorder %s64, %s65
    %p76 = scmp.eq.s32.totalorder %s16, 0
    %p77 = por %p75, %p76
    %p78 = scmp.ne.s32.totalorder %s64, %s65
    %p79 = scmp.eq.s32.totalorder %s17, 1
    %p80 = por %p78, %p79
    %p82 = scmp.ne.s32.totalorder %s65, %s81
    %p83 = scmp.eq.s32.totalorder %s17, 0
    %p84 = por %p82, %p83
    %s86 = sadd.s32 %s85, 1
    %p89 = scmp.eq.s32.totalorder %s11, 1
    %p90 = scmp.ne.s32.totalorder %s85, %s87
    %p91 = scmp.eq.s32.totalorder %s11, 0
    %p92 = por %p90, %p91
    %p93 = scmp.ne.s32.totalorder %s85, %s87
    %p94 = scmp.eq.s32.totalorder %s16, 1
    %p95 = por %p93, %p94
    %p96 = scmp.ne.s32.totalorder %s87, %s88
    %p97 = scmp.eq.s32.totalorder %s16, 0
    %p98 = por %p96, %p97
    %p99 = scmp.ne.s32.totalorder %s87, %s88
    %p100 = scmp.eq.s32.totalorder %s17, 1
    %p101 = por %p99, %p100
    %p103 = scmp.ne.s32.totalorder %s88, %s102
    %p104 = scmp.eq.s32.totalorder %s17, 0
    %p105 = por %p103, %p104
    %s107 = sadd.s32 %s106, 1
    %p110 = scmp.eq.s32.totalorder %s11, 1
    %p111 = scmp.ne.s32.totalorder %s106, %s108
    %p112 = scmp.eq.s32.totalorder %s11, 0
    %p113 = por %p111, %p112
    %p114 = scmp.ne.s32.totalorder %s106, %s108
    %p115 = scmp.eq.s32.totalorder %s16, 1
    %p116 = por %p114, %p115
    %p117 = scmp.ne.s32.totalorder %s108, %s109
    %p118 = scmp.eq.s32.totalorder %s16, 0
    %p119 = por %p117, %p118
    %p120 = scmp.ne.s32.totalorder %s108, %s109
    %p121 = scmp.eq.s32.totalorder %s17, 1
    %p122 = por %p120, %p121
    %p124 = scmp.ne.s32.totalorder %s109, %s123
    %p125 = scmp.eq.s32.totalorder %s17, 0
    %p126 = por %p124, %p125
    %s128 = sadd.s32 %s127, 1
    %p131 = scmp.eq.s32.totalorder %s11, 1
    %p132 = scmp.ne.s32.totalorder %s127, %s129
    %p133 = scmp.eq.s32.totalorder %s11, 0
    %p134 = por %p132, %p133
    %p135 = scmp.ne.s32.totalorder %s127, %s129
    %p136 = scmp.eq.s32.totalorder %s16, 1
    %p137 = por %p135, %p136
    %p138 = scmp.ne.s32.totalorder %s129, %s130
    %p139 = scmp.eq.s32.totalorder %s16, 0
    %p140 = por %p138, %p139
    %p141 = scmp.ne.s32.totalorder %s129, %s130
    %p142 = scmp.eq.s32.totalorder %s17, 1
    %p143 = por %p141, %p142
    %p145 = scmp.ne.s32.totalorder %s130, %s144
    %p146 = scmp.eq.s32.totalorder %s17, 0
    %p147 = por %p145, %p146
    %s148 = ssub.s32 %s18, %s30
    %s149 = ssub.s32 %s19, %s26
    %s150 = sor.u32 %s148, %s149
    %p151 = scmp.eq.s32.totalorder %s150, 0
    %s153 = sadd.s32 %s152, 1
    %s154 = scalar_select %p151, %s152, %s153
    %p157 = pneg %p151
    %p158 = scmp.eq.s32.totalorder %s11, 1
    %p159 = por %p157, %p158
    %p160 = scmp.ne.s32.totalorder %s152, %s155
    %p161 = scmp.eq.s32.totalorder %s11, 0
    %p162 = por %p160, %p161
    %p163 = scmp.ne.s32.totalorder %s152, %s155
    %p164 = scmp.eq.s32.totalorder %s16, 1
    %p165 = por %p163, %p164
    %p166 = scmp.ne.s32.totalorder %s155, %s156
    %p167 = scmp.eq.s32.totalorder %s16, 0
    %p168 = por %p166, %p167
    %p169 = scmp.ne.s32.totalorder %s155, %s156
    %p170 = scmp.eq.s32.totalorder %s17, 1
    %p171 = por %p169, %p170
    %p173 = scmp.ne.s32.totalorder %s156, %s172
    %p174 = scmp.eq.s32.totalorder %s17, 0
    %p175 = por %p173, %p174
    %p176 = scmp.le.s32.totalorder 1, %s11
    %p177 = scmp.lt.s32.totalorder %s11, 3
    %p178 = pnand %p176, %p177
    %p179 = pneg %p178
    // Predicated region
    $region9: #{efficientnet_features_forward.11} parent=5 // pred_check
      _
    $region10: #{efficientnet_features_forward.11} parent=5 // pred_check_branch
      %181 = sbr.rel (%p178) target = $region12
    $region11: #{efficientnet_features_forward.11} parent=5 // pred_region
      %s182 = ssub.s32 %s11, 1
      // Predicated region
      $region13: #{efficientnet_features_forward.11} parent=11 // pred_check
        %p183 = pneg %p98
      $region14: #{efficientnet_features_forward.11} parent=11 // pred_check_branch
        %185 = sbr.rel (%p183) target = $region16
      $region15: #{efficientnet_features_forward.11} parent=11 // pred_region
        _
      $region16: #{efficientnet_features_forward.11} parent=11 // pred_fallthru
        _
      // Predicated region
      $region17: #{efficientnet_features_forward.11} parent=11 // pred_check
        %p186 = pneg %p119
      $region18: #{efficientnet_features_forward.11} parent=11 // pred_check_branch
        %188 = sbr.rel (%p186) target = $region20
      $region19: #{efficientnet_features_forward.11} parent=11 // pred_region
        _
      $region20: #{efficientnet_features_forward.11} parent=11 // pred_fallthru
        _
      // Predicated region
      $region21: #{efficientnet_features_forward.11} parent=11 // pred_check
        %p189 = pneg %p140
      $region22: #{efficientnet_features_forward.11} parent=11 // pred_check_branch
        %191 = sbr.rel (%p189) target = $region24
      $region23: #{efficientnet_features_forward.11} parent=11 // pred_region
        _
      $region24: #{efficientnet_features_forward.11} parent=11 // pred_fallthru
        _
    $region12: #{efficientnet_features_forward.11} parent=5 // pred_fallthru
      _
    %p192 = scmp.lt.s32.totalorder %s11, 2
    // Predicated region
    $region25: #{efficientnet_features_forward.11} parent=5 // pred_check
      %p193 = pneg %p192
    $region26: #{efficientnet_features_forward.11} parent=5 // pred_check_branch
      %195 = sbr.rel (%p193) target = $region28
    $region27: #{efficientnet_features_forward.11} parent=5 // pred_region
      // Predicated region
      $region29: #{efficientnet_features_forward.11} parent=27 // pred_check
        %p196 = pneg %p45
      $region30: #{efficientnet_features_forward.11} parent=27 // pred_check_branch
        %198 = sbr.rel (%p196) target = $region32
      $region31: #{efficientnet_features_forward.11} parent=27 // pred_region
        %s199 = smul.u32 8, %s19
        %p200 = scmp.lt.s32.totalorder %s18, 1
        %s201 = scalar_select %p200, %s18, 1
        %p202 = scmp.lt.s32.totalorder %s199, 7
        %s203 = scalar_select %p202, %s199, 7
        %s204 = smul.addr %s201, 8
        %s205 = sadd.s32 %s203, %s204
        %s206 = smul.addr %s205, 4
        %s207 = scalar_lea.vmem %s0, %s206
        %s208 = smul.u32 8, %s19
      $region32: #{efficientnet_features_forward.11} parent=27 // pred_fallthru
        _
      // Predicated region
      $region33: #{efficientnet_features_forward.11} parent=27 // pred_check
        %p209 = pneg %p71
      $region34: #{efficientnet_features_forward.11} parent=27 // pred_check_branch
        %211 = sbr.rel (%p209) target = $region36
      $region35: #{efficientnet_features_forward.11} parent=27 // pred_region
        %p212 = scmp.lt.s32.totalorder %s18, 1
        %s213 = scalar_select %p212, %s18, 1
        %s214 = scalar_lea.vmem %s1, %s213
      $region36: #{efficientnet_features_forward.11} parent=27 // pred_fallthru
        _
    $region28: #{efficientnet_features_forward.11} parent=5 // pred_fallthru
      _
    %p215 = scmp.le.s32.totalorder 1, %s11
    %p216 = scmp.lt.s32.totalorder %s11, 3
    %p217 = pnand %p215, %p216
    %p218 = pneg %p217
    // Predicated region
    $region37: #{efficientnet_features_forward.11} parent=5 // pred_check
      _
    $region38: #{efficientnet_features_forward.11} parent=5 // pred_check_branch
      %220 = sbr.rel (%p217) target = $region40
    $region39: #{efficientnet_features_forward.11} parent=5 // pred_region
      %s221 = ssub.s32 %s11, 1
      %s222 = smul.u32 8, %s21
      %p223 = scmp.lt.s32.totalorder %s20, 1
      %s224 = scalar_select %p223, %s20, 1
      %p225 = scmp.lt.s32.totalorder %s222, 7
      %s226 = scalar_select %p225, %s222, 7
      %s227 = smul.addr %s224, 8
      %s228 = sadd.s32 %s226, %s227
      %s229 = smul.addr %s228, 4
      %s230 = scalar_lea.vmem %s0, %s229
      %p231 = pneg %p51
      %p232 = pneg %p48
      %p233 = scmp.lt.s32.totalorder %s20, 1
      %s234 = scalar_select %p233, %s20, 1
      %s235 = scalar_lea.vmem %s1, %s234
      %p236 = pneg %p77
      %p237 = pneg %p74
      %p238 = pneg %p98
      %p239 = pneg %p95
      %p240 = pneg %p119
      %p241 = pneg %p116
      %p242 = pneg %p140
      %p243 = pneg %p137
      %p244 = pneg %p168
      %p245 = pneg %p165
      %s246 = smul.u32 8, %s21
      %p247 = scmp.lt.s32.totalorder %s20, 1
      %s248 = scalar_select %p247, %s20, 1
      %p249 = scmp.lt.s32.totalorder %s246, 7
      %s250 = scalar_select %p249, %s246, 7
      %s251 = smul.addr %s248, 8
      %s252 = sadd.s32 %s250, %s251
      %s253 = smul.addr %s252, 4
      %s254 = scalar_lea.vmem %s5, %s253
      %s255 = smul.u32 8, %s21
      %p256 = scmp.lt.s32.totalorder %s20, 1
      %s257 = scalar_select %p256, %s20, 1
      %p258 = scmp.lt.s32.totalorder %s255, 7
      %s259 = scalar_select %p258, %s255, 7
      %s260 = smul.addr %s257, 8
      %s261 = sadd.s32 %s259, %s260
      %s262 = smul.addr %s261, 4
      %s263 = scalar_lea.vmem %s0, %s262
      %s264 = smul.u32 8, %s21
      %p265 = scmp.lt.s32.totalorder %s20, 1
      %s266 = scalar_select %p265, %s20, 1
      %s267 = scalar_lea.vmem %s1, %s266
      %s268 = smul.u32 8, %s21
      %p269 = scmp.lt.s32.totalorder %s20, 1
      %s270 = scalar_select %p269, %s20, 1
      %p271 = scmp.lt.s32.totalorder %s268, 7
      %s272 = scalar_select %p271, %s268, 7
      %s273 = smul.addr %s270, 8
      %s274 = sadd.s32 %s272, %s273
      %s275 = smul.addr %s274, 4
      %s276 = scalar_lea.vmem %s5, %s275
      %s277 = smul.u32 8, %s21
      %v279 = vld [vmem:[%s263] sm:$0xf]
      %v280 = vld [vmem:[%s263 + $0x4] sm:$0xf]
      %v281 = vld [vmem:[%s263 + $0x8] sm:$0xf]
      %v282 = vld [vmem:[%s263 + $0xc] sm:$0xf]
      %v283 = vld [vmem:[%s263 + $0x10] sm:$0xf]
      %v284 = vld [vmem:[%s263 + $0x14] sm:$0xf]
      %v285 = vld [vmem:[%s263 + $0x18] sm:$0xf]
      %v286 = vld [vmem:[%s263 + $0x1c] sm:$0xf]
      %v287 = vld [vmem:[%s267] sm:$0x1]
      %v289 = vpack.i.b16 %v287, %v287
      %v291 = vlaneseq
      %v292 = vshrl.u32 %v291, 7
      %v293 = vsub.s32 0, %v292
      %v294 = vrot.slane %v289, %v293
      %v296 = vunpack.c.l.b16 %v294
      %v297 = vpack.c.b16 %v296, %v296
      %v299 = vmul.bf16 %v279, %v297
      %v300 = vmul.bf16 %v280, %v297
      %v301 = vmul.bf16 %v281, %v297
      %v302 = vmul.bf16 %v282, %v297
      %v303 = vmul.bf16 %v283, %v297
      %v304 = vmul.bf16 %v284, %v297
      %v305 = vmul.bf16 %v285, %v297
      %v306 = vmul.bf16 %v286, %v297
      %v307 = vld [vmem:[%s2] sm:$0xf]
      %v308 = vld [vmem:[%s2 + $0x4] sm:$0xf]
      %v309 = vld [vmem:[%s2 + $0x8] sm:$0xf]
      %v310 = vld [vmem:[%s2 + $0xc] sm:$0xf]
      %v319 = vunpack.c.l.b16 %v299
      %v320 = vunpack.c.l.b16 %v300
      %v321 = vunpack.c.l.b16 %v301
      %v322 = vunpack.c.l.b16 %v302
      %v323 = vunpack.c.l.b16 %v303
      %v324 = vunpack.c.l.b16 %v304
      %v325 = vunpack.c.l.b16 %v305
      %v326 = vunpack.c.l.b16 %v306
      %v327 = vpack.c.b16 %v320, %v319
      %v328 = vpack.c.b16 %v322, %v321
      %v329 = vpack.c.b16 %v324, %v323
      %v330 = vpack.c.b16 %v326, %v325
      %v335 = vunpack.c.l.b16 %v307
      %v336 = vunpack.c.l.b16 %v308
      %v337 = vunpack.c.l.b16 %v309
      %v338 = vunpack.c.l.b16 %v310
      %v339 = vpack.c.b16 %v336, %v335
      %v340 = vpack.c.b16 %v338, %v337
      %vm343 = vcmask 261120
      %v345 = vsel %vm343, %v327, 0
      %v348 = vsel %vm343, %v328, 0
      %v351 = vsel %vm343, %v329, 0
      %v354 = vsel %vm343, %v330, 0
      %356 = vmatprep.subr.bf16.mxu0 0
      %357 = vmatpush1.bf16.msra.mxu0 %v339
      %358 = vmatprep.subr.bf16.mxu0 0
      %359 = vmatpush1.bf16.msra.mxu0 %v340
      %360 = vmatprep.subr.bf16.mxu0 0
      %361 = vmatpush1.bf16.msra.mxu0 0
      %362 = vmatprep.subr.bf16.mxu0 0
      %363 = vmatpush1.bf16.msra.mxu0 0
      %364 = vmatprep.subr.bf16.mxu0 0
      %365 = vmatpush1.bf16.msra.mxu0 0
      %366 = vmatprep.subr.bf16.mxu0 0
      %367 = vmatpush1.bf16.msra.mxu0 0
      %368 = vmatprep.subr.bf16.mxu0 0
      %369 = vmatpush1.bf16.msra.mxu0 0
      %370 = vmatprep.subr.bf16.mxu0 0
      %371 = vmatpush1.bf16.msra.mxu0 0
      %372 = vmatprep.subr.bf16.mxu0 0
      %373 = vmatpush1.bf16.msra.mxu0 0
      %374 = vmatprep.subr.bf16.mxu0 0
      %375 = vmatpush1.bf16.msra.mxu0 0
      %376 = vmatprep.subr.bf16.mxu0 0
      %377 = vmatpush1.bf16.msra.mxu0 0
      %378 = vmatprep.subr.bf16.mxu0 0
      %379 = vmatpush1.bf16.msra.mxu0 0
      %380 = vmatprep.subr.bf16.mxu0 0
      %381 = vmatpush1.bf16.msra.mxu0 0
      %382 = vmatprep.subr.bf16.mxu0 0
      %383 = vmatpush1.bf16.msra.mxu0 0
      %384 = vmatprep.subr.bf16.mxu0 0
      %385 = vmatpush1.bf16.msra.mxu0 0
      %386 = vmatprep.subr.bf16.mxu0 0
      %387 = vmatpush1.bf16.msra.mxu0 0
      %388 = vmatprep.mubr.bf16.mxu0 0
      %389 = vmatmul.mubr.bf16.gmra.mrb[0].mxu0 %v345
      %v390 = vpop.f32.mrb[0].mxu0
      %v391 = vadd.f32 0.0, %v390
      %v392 = vpop.f32.mrb[0].mxu0
      %v393 = vpop.f32.mrb[0].mxu0
      %v394 = vadd.f32 0.0, %v393
      %v395 = vpop.f32.mrb[0].mxu0
      %396 = vmatprep.mubr.bf16.mxu0 0
      %397 = vmatmul.mubr.bf16.gmra.mrb[0].mxu0 %v348
      %v398 = vpop.f32.mrb[0].mxu0
      %v399 = vadd.f32 0.0, %v398
      %v400 = vpop.f32.mrb[0].mxu0
      %v401 = vpop.f32.mrb[0].mxu0
      %v402 = vadd.f32 0.0, %v401
      %v403 = vpop.f32.mrb[0].mxu0
      %404 = vmatprep.mubr.bf16.mxu0 0
      %405 = vmatmul.mubr.bf16.gmra.mrb[0].mxu0 %v351
      %v406 = vpop.f32.mrb[0].mxu0
      %v407 = vadd.f32 0.0, %v406
      %v408 = vpop.f32.mrb[0].mxu0
      %v409 = vpop.f32.mrb[0].mxu0
      %v410 = vadd.f32 0.0, %v409
      %v411 = vpop.f32.mrb[0].mxu0
      %412 = vmatprep.mubr.bf16.mxu0 0
      %413 = vmatmul.mubr.bf16.gmra.mrb[0].mxu0 %v354
      %v414 = vpop.f32.mrb[0].mxu0
      %v415 = vadd.f32 0.0, %v414
      %v416 = vpop.f32.mrb[0].mxu0
      %v417 = vpop.f32.mrb[0].mxu0
      %v418 = vadd.f32 0.0, %v417
      %v419 = vpop.f32.mrb[0].mxu0
      %420 = vdwg.mxu0
      %v421 = vld [vmem:[%s3] sm:$0x1]
      %v423 = vlaneseq
      %v424 = vshrl.u32 %v423, 7
      %v425 = vsub.s32 0, %v424
      %v426 = vrot.slane %v421, %v425
      %v428 = vmul.f32 %v391, %v426
      %v429 = vmul.f32 %v394, %v426
      %v430 = vmul.f32 %v399, %v426
      %v431 = vmul.f32 %v402, %v426
      %v432 = vmul.f32 %v407, %v426
      %v433 = vmul.f32 %v410, %v426
      %v434 = vmul.f32 %v415, %v426
      %v435 = vmul.f32 %v418, %v426
      %v436 = vld [vmem:[%s4] sm:$0x1]
      %v438 = vlaneseq
      %v439 = vshrl.u32 %v438, 7
      %v440 = vsub.s32 0, %v439
      %v441 = vrot.slane %v436, %v440
      %v443 = vadd.f32 %v428, %v441
      %v444 = vadd.f32 %v429, %v441
      %v445 = vadd.f32 %v430, %v441
      %v446 = vadd.f32 %v431, %v441
      %v447 = vadd.f32 %v432, %v441
      %v448 = vadd.f32 %v433, %v441
      %v449 = vadd.f32 %v434, %v441
      %v450 = vadd.f32 %v435, %v441
      %v451 = vpack.c.bf16 %v444, %v443
      %v452 = vpack.c.bf16 %v446, %v445
      %v453 = vpack.c.bf16 %v448, %v447
      %v454 = vpack.c.bf16 %v450, %v449
      %v459 = vunpack.c.l.b16 %v451
      %v460 = vunpack.c.h.b16 %v451
      %v461 = vunpack.c.l.b16 %v452
      %v462 = vunpack.c.h.b16 %v452
      %v463 = vunpack.c.l.b16 %v453
      %v464 = vunpack.c.h.b16 %v453
      %v465 = vunpack.c.l.b16 %v454
      %v466 = vunpack.c.h.b16 %v454
      %v467 = vpack.c.b16 %v459, %v459
      %v468 = vpack.c.b16 %v460, %v460
      %v469 = vpack.c.b16 %v461, %v461
      %v470 = vpack.c.b16 %v462, %v462
      %v471 = vpack.c.b16 %v463, %v463
      %v472 = vpack.c.b16 %v464, %v464
      %v473 = vpack.c.b16 %v465, %v465
      %v474 = vpack.c.b16 %v466, %v466
      %vm483 = vcmask 125952
      %484 = vst.msk [vmem:[%s276] sm:$0xf] %vm483, %v467
      %485 = vst.msk [vmem:[%s276 + $0x4] sm:$0xf] %vm483, %v468
      %486 = vst.msk [vmem:[%s276 + $0x8] sm:$0xf] %vm483, %v469
      %487 = vst.msk [vmem:[%s276 + $0xc] sm:$0xf] %vm483, %v470
      %488 = vst.msk [vmem:[%s276 + $0x10] sm:$0xf] %vm483, %v471
      %489 = vst.msk [vmem:[%s276 + $0x14] sm:$0xf] %vm483, %v472
      %490 = vst.msk [vmem:[%s276 + $0x18] sm:$0xf] %vm483, %v473
      %491 = vst.msk [vmem:[%s276 + $0x1c] sm:$0xf] %vm483, %v474
      %s492 = smul.u32 8, %s21
      %p493 = scmp.lt.s32.totalorder %s20, 1
      %s494 = scalar_select %p493, %s20, 1
      %p495 = scmp.lt.s32.totalorder %s492, 7
      %s496 = scalar_select %p495, %s492, 7
      %s497 = smul.addr %s494, 8
      %s498 = sadd.s32 %s496, %s497
      %s499 = smul.addr %s498, 4
      %s500 = scalar_lea.vmem %s5, %s499
      // Predicated region
      $region41: #{efficientnet_features_forward.11} parent=39 // pred_check
        %p501 = pneg %p165
      $region42: #{efficientnet_features_forward.11} parent=39 // pred_check_branch
        %503 = sbr.rel (%p501) target = $region44
      $region43: #{efficientnet_features_forward.11} parent=39 // pred_region
        %s504 = smul.u32 8, %s21
      $region44: #{efficientnet_features_forward.11} parent=39 // pred_fallthru
        _
    $region40: #{efficientnet_features_forward.11} parent=5 // pred_fallthru
      _
    %p505 = scmp.le.s32.totalorder 2, %s11
    // Predicated region
    $region45: #{efficientnet_features_forward.11} parent=5 // pred_check
      %p506 = pneg %p505
    $region46: #{efficientnet_features_forward.11} parent=5 // pred_check_branch
      %508 = sbr.rel (%p506) target = $region48
    $region47: #{efficientnet_features_forward.11} parent=5 // pred_region
      %s509 = ssub.s32 %s11, 2
      // Predicated region
      $region49: #{efficientnet_features_forward.11} parent=47 // pred_check
        %p510 = pneg %p171
      $region50: #{efficientnet_features_forward.11} parent=47 // pred_check_branch
        %512 = sbr.rel (%p510) target = $region52
      $region51: #{efficientnet_features_forward.11} parent=47 // pred_region
        %s513 = smul.u32 8, %s23
        %p514 = scmp.lt.s32.totalorder %s22, 1
        %s515 = scalar_select %p514, %s22, 1
        %p516 = scmp.lt.s32.totalorder %s513, 7
        %s517 = scalar_select %p516, %s513, 7
        %s518 = smul.addr %s515, 8
        %s519 = sadd.s32 %s517, %s518
        %s520 = smul.addr %s519, 4
        %s521 = scalar_lea.vmem %s5, %s520
      $region52: #{efficientnet_features_forward.11} parent=47 // pred_fallthru
        _
    $region48: #{efficientnet_features_forward.11} parent=5 // pred_fallthru
      _
  $region6: #{efficientnet_features_forward.11} parent=0 // loop_footer
    %s15 = sadd.s32 1, %s11
  $region7: #{efficientnet_features_forward.11} parent=0 // loop_footer_branch
    %10 = sbr.rel target = $region3
  $region8: #{efficientnet_features_forward.11} parent=0 // loop_exit
    _

// kernel: efficientnet_features_forward.12
$region0: #{efficientnet_features_forward.12}
  #allocation0 [shape = 'u32[]', space=smem, size = 0x4, offset = 0x4, fixed_abs, tag = 'smem constant byte address 0x4 - core index']
  #allocation1 [shape = 'u32[144,128]{1,0:T(1,128)}', space=vmem, size = 0x12000, scoped, tag = 'internal scratch']
  %s0 = inlined_call_operand.vmem [shape: bf16[2,64,16], index: 0, kind: input, shape index: {}]
  %s1 = inlined_call_operand.vmem [shape: bf16[16,96], index: 1, kind: input, shape index: {}]
  %s2 = inlined_call_operand.vmem [shape: f32[1,96], index: 2, kind: input, shape index: {}]
  %s3 = inlined_call_operand.vmem [shape: f32[1,96], index: 3, kind: input, shape index: {}]
  %s4 = inlined_call_operand.vmem [shape: bf16[2,64,96], index: 4, kind: output, shape index: {}]
  %s5 = sld [smem:[#allocation0]]
  $region49: #{efficientnet_features_forward.12} parent=0
    _
  %s7 = ssub.s32 1, %s5
  %s8 = scalar_select 0, %s7, %s5
  loop: start=0, step=1, limit=4
  $region2: #{efficientnet_features_forward.12} parent=0 // loop_pre_header
    _
  $region3: #{efficientnet_features_forward.12} parent=0 // loop_header
    %s10 = sphi 0, %s14
    %p11 = scmp.ge.s32.totalorder %s10, 4
    %s17 = sphi 0, %s29
    %s18 = sphi 0, %s25
    %s19 = sphi 0, %s17
    %s20 = sphi 0, %s18
    %s21 = sphi 0, %s19
    %s22 = sphi 0, %s20
    %s34 = sphi 0, %s36
    %s37 = sphi 0, %s34
    %s38 = sphi 0, %s37
    %s54 = sphi 0, %s38
    %s58 = sphi 0, %s58
    %s60 = sphi 0, %s58
    %s61 = sphi 0, %s60
    %s75 = sphi 0, %s61
    %s79 = sphi 0, %s79
    %s81 = sphi 0, %s79
    %s82 = sphi 0, %s81
    %s96 = sphi 0, %s82
    %s100 = sphi 0, %s100
    %s102 = sphi 0, %s100
    %s103 = sphi 0, %s102
    %s117 = sphi 0, %s103
    %s125 = sphi 0, %s127
    %s128 = sphi 0, %s125
    %s129 = sphi 0, %s128
    %s145 = sphi 0, %s129
  $region4: #{efficientnet_features_forward.12} parent=0 // loop_header_branch
    %13 = sbr.rel (%p11) target = $region8
  $region5: #{efficientnet_features_forward.12} parent=0 // loop_body
    %s15 = ssub.s32 %s10, 1
    %s16 = ssub.s32 %s10, 2
    %s23 = sadd.s32 1, %s18
    %p24 = scmp.ge.s32.totalorder %s23, 1
    %s25 = scalar_select %p24, 0, %s23
    %s26 = sadd.s32 1, %s17
    %s27 = scalar_select %p24, %s26, %s17
    %p28 = scmp.ge.s32.totalorder %s27, 2
    %s29 = scalar_select %p28, 0, %s27
    %s30 = ssub.s32 %s17, %s29
    %s31 = ssub.s32 %s18, %s25
    %s32 = sor.u32 %s30, %s31
    %p33 = scmp.eq.s32.totalorder %s32, 0
    %s35 = sadd.s32 %s34, 1
    %s36 = scalar_select %p33, %s34, %s35
    %p39 = pneg %p33
    %p40 = scmp.eq.s32.totalorder %s10, 1
    %p41 = por %p39, %p40
    %p42 = scmp.ne.s32.totalorder %s34, %s37
    %p43 = scmp.eq.s32.totalorder %s10, 0
    %p44 = por %p42, %p43
    %p45 = scmp.ne.s32.totalorder %s34, %s37
    %p46 = scmp.eq.s32.totalorder %s15, 1
    %p47 = por %p45, %p46
    %p48 = scmp.ne.s32.totalorder %s37, %s38
    %p49 = scmp.eq.s32.totalorder %s15, 0
    %p50 = por %p48, %p49
    %p51 = scmp.ne.s32.totalorder %s37, %s38
    %p52 = scmp.eq.s32.totalorder %s16, 1
    %p53 = por %p51, %p52
    %p55 = scmp.ne.s32.totalorder %s38, %s54
    %p56 = scmp.eq.s32.totalorder %s16, 0
    %p57 = por %p55, %p56
    %s59 = sadd.s32 %s58, 1
    %p62 = scmp.eq.s32.totalorder %s10, 1
    %p63 = scmp.ne.s32.totalorder %s58, %s60
    %p64 = scmp.eq.s32.totalorder %s10, 0
    %p65 = por %p63, %p64
    %p66 = scmp.ne.s32.totalorder %s58, %s60
    %p67 = scmp.eq.s32.totalorder %s15, 1
    %p68 = por %p66, %p67
    %p69 = scmp.ne.s32.totalorder %s60, %s61
    %p70 = scmp.eq.s32.totalorder %s15, 0
    %p71 = por %p69, %p70
    %p72 = scmp.ne.s32.totalorder %s60, %s61
    %p73 = scmp.eq.s32.totalorder %s16, 1
    %p74 = por %p72, %p73
    %p76 = scmp.ne.s32.totalorder %s61, %s75
    %p77 = scmp.eq.s32.totalorder %s16, 0
    %p78 = por %p76, %p77
    %s80 = sadd.s32 %s79, 1
    %p83 = scmp.eq.s32.totalorder %s10, 1
    %p84 = scmp.ne.s32.totalorder %s79, %s81
    %p85 = scmp.eq.s32.totalorder %s10, 0
    %p86 = por %p84, %p85
    %p87 = scmp.ne.s32.totalorder %s79, %s81
    %p88 = scmp.eq.s32.totalorder %s15, 1
    %p89 = por %p87, %p88
    %p90 = scmp.ne.s32.totalorder %s81, %s82
    %p91 = scmp.eq.s32.totalorder %s15, 0
    %p92 = por %p90, %p91
    %p93 = scmp.ne.s32.totalorder %s81, %s82
    %p94 = scmp.eq.s32.totalorder %s16, 1
    %p95 = por %p93, %p94
    %p97 = scmp.ne.s32.totalorder %s82, %s96
    %p98 = scmp.eq.s32.totalorder %s16, 0
    %p99 = por %p97, %p98
    %s101 = sadd.s32 %s100, 1
    %p104 = scmp.eq.s32.totalorder %s10, 1
    %p105 = scmp.ne.s32.totalorder %s100, %s102
    %p106 = scmp.eq.s32.totalorder %s10, 0
    %p107 = por %p105, %p106
    %p108 = scmp.ne.s32.totalorder %s100, %s102
    %p109 = scmp.eq.s32.totalorder %s15, 1
    %p110 = por %p108, %p109
    %p111 = scmp.ne.s32.totalorder %s102, %s103
    %p112 = scmp.eq.s32.totalorder %s15, 0
    %p113 = por %p111, %p112
    %p114 = scmp.ne.s32.totalorder %s102, %s103
    %p115 = scmp.eq.s32.totalorder %s16, 1
    %p116 = por %p114, %p115
    %p118 = scmp.ne.s32.totalorder %s103, %s117
    %p119 = scmp.eq.s32.totalorder %s16, 0
    %p120 = por %p118, %p119
    %s121 = ssub.s32 %s17, %s29
    %s122 = ssub.s32 %s18, %s25
    %s123 = sor.u32 %s121, %s122
    %p124 = scmp.eq.s32.totalorder %s123, 0
    %s126 = sadd.s32 %s125, 1
    %s127 = scalar_select %p124, %s125, %s126
    %p130 = pneg %p124
    %p131 = scmp.eq.s32.totalorder %s10, 1
    %p132 = por %p130, %p131
    %p133 = scmp.ne.s32.totalorder %s125, %s128
    %p134 = scmp.eq.s32.totalorder %s10, 0
    %p135 = por %p133, %p134
    %p136 = scmp.ne.s32.totalorder %s125, %s128
    %p137 = scmp.eq.s32.totalorder %s15, 1
    %p138 = por %p136, %p137
    %p139 = scmp.ne.s32.totalorder %s128, %s129
    %p140 = scmp.eq.s32.totalorder %s15, 0
    %p141 = por %p139, %p140
    %p142 = scmp.ne.s32.totalorder %s128, %s129
    %p143 = scmp.eq.s32.totalorder %s16, 1
    %p144 = por %p142, %p143
    %p146 = scmp.ne.s32.totalorder %s129, %s145
    %p147 = scmp.eq.s32.totalorder %s16, 0
    %p148 = por %p146, %p147
    %p149 = scmp.le.s32.totalorder 1, %s10
    %p150 = scmp.lt.s32.totalorder %s10, 3
    %p151 = pnand %p149, %p150
    %p152 = pneg %p151
    // Predicated region
    $region9: #{efficientnet_features_forward.12} parent=5 // pred_check
      _
    $region10: #{efficientnet_features_forward.12} parent=5 // pred_check_branch
      %154 = sbr.rel (%p151) target = $region12
    $region11: #{efficientnet_features_forward.12} parent=5 // pred_region
      %s155 = ssub.s32 %s10, 1
      // Predicated region
      $region13: #{efficientnet_features_forward.12} parent=11 // pred_check
        %p156 = pneg %p71
      $region14: #{efficientnet_features_forward.12} parent=11 // pred_check_branch
        %158 = sbr.rel (%p156) target = $region16
      $region15: #{efficientnet_features_forward.12} parent=11 // pred_region
        _
      $region16: #{efficientnet_features_forward.12} parent=11 // pred_fallthru
        _
      // Predicated region
      $region17: #{efficientnet_features_forward.12} parent=11 // pred_check
        %p159 = pneg %p92
      $region18: #{efficientnet_features_forward.12} parent=11 // pred_check_branch
        %161 = sbr.rel (%p159) target = $region20
      $region19: #{efficientnet_features_forward.12} parent=11 // pred_region
        _
      $region20: #{efficientnet_features_forward.12} parent=11 // pred_fallthru
        _
      // Predicated region
      $region21: #{efficientnet_features_forward.12} parent=11 // pred_check
        %p162 = pneg %p113
      $region22: #{efficientnet_features_forward.12} parent=11 // pred_check_branch
        %164 = sbr.rel (%p162) target = $region24
      $region23: #{efficientnet_features_forward.12} parent=11 // pred_region
        _
      $region24: #{efficientnet_features_forward.12} parent=11 // pred_fallthru
        _
    $region12: #{efficientnet_features_forward.12} parent=5 // pred_fallthru
      _
    %p165 = scmp.lt.s32.totalorder %s10, 2
    // Predicated region
    $region25: #{efficientnet_features_forward.12} parent=5 // pred_check
      %p166 = pneg %p165
    $region26: #{efficientnet_features_forward.12} parent=5 // pred_check_branch
      %168 = sbr.rel (%p166) target = $region28
    $region27: #{efficientnet_features_forward.12} parent=5 // pred_region
      // Predicated region
      $region29: #{efficientnet_features_forward.12} parent=27 // pred_check
        %p169 = pneg %p44
      $region30: #{efficientnet_features_forward.12} parent=27 // pred_check_branch
        %171 = sbr.rel (%p169) target = $region32
      $region31: #{efficientnet_features_forward.12} parent=27 // pred_region
        %s172 = smul.u32 8, %s18
        %p173 = scmp.lt.s32.totalorder %s17, 1
        %s174 = scalar_select %p173, %s17, 1
        %p175 = scmp.lt.s32.totalorder %s172, 7
        %s176 = scalar_select %p175, %s172, 7
        %s177 = smul.addr %s174, 8
        %s178 = sadd.s32 %s176, %s177
        %s179 = smul.addr %s178, 4
        %s180 = scalar_lea.vmem %s0, %s179
        %s181 = smul.u32 8, %s18
      $region32: #{efficientnet_features_forward.12} parent=27 // pred_fallthru
        _
    $region28: #{efficientnet_features_forward.12} parent=5 // pred_fallthru
      _
    %p182 = scmp.le.s32.totalorder 1, %s10
    %p183 = scmp.lt.s32.totalorder %s10, 3
    %p184 = pnand %p182, %p183
    %p185 = pneg %p184
    // Predicated region
    $region33: #{efficientnet_features_forward.12} parent=5 // pred_check
      _
    $region34: #{efficientnet_features_forward.12} parent=5 // pred_check_branch
      %187 = sbr.rel (%p184) target = $region36
    $region35: #{efficientnet_features_forward.12} parent=5 // pred_region
      %s188 = ssub.s32 %s10, 1
      %s189 = smul.u32 8, %s20
      %p190 = scmp.lt.s32.totalorder %s19, 1
      %s191 = scalar_select %p190, %s19, 1
      %p192 = scmp.lt.s32.totalorder %s189, 7
      %s193 = scalar_select %p192, %s189, 7
      %s194 = smul.addr %s191, 8
      %s195 = sadd.s32 %s193, %s194
      %s196 = smul.addr %s195, 4
      %s197 = scalar_lea.vmem %s0, %s196
      %p198 = pneg %p50
      %p199 = pneg %p47
      %p200 = pneg %p71
      %p201 = pneg %p68
      %p202 = pneg %p92
      %p203 = pneg %p89
      %p204 = pneg %p113
      %p205 = pneg %p110
      %p206 = pneg %p141
      %p207 = pneg %p138
      %s208 = smul.u32 8, %s20
      %p209 = scmp.lt.s32.totalorder %s19, 1
      %s210 = scalar_select %p209, %s19, 1
      %p211 = scmp.lt.s32.totalorder %s208, 7
      %s212 = scalar_select %p211, %s208, 7
      %s213 = smul.addr %s210, 8
      %s214 = sadd.s32 %s212, %s213
      %s215 = smul.addr %s214, 4
      %s216 = scalar_lea.vmem %s4, %s215
      %s217 = smul.u32 8, %s20
      %p218 = scmp.lt.s32.totalorder %s19, 1
      %s219 = scalar_select %p218, %s19, 1
      %p220 = scmp.lt.s32.totalorder %s217, 7
      %s221 = scalar_select %p220, %s217, 7
      %s222 = smul.addr %s219, 8
      %s223 = sadd.s32 %s221, %s222
      %s224 = smul.addr %s223, 4
      %s225 = scalar_lea.vmem %s0, %s224
      %s226 = smul.u32 8, %s20
      %s227 = smul.u32 8, %s20
      %p228 = scmp.lt.s32.totalorder %s19, 1
      %s229 = scalar_select %p228, %s19, 1
      %p230 = scmp.lt.s32.totalorder %s227, 7
      %s231 = scalar_select %p230, %s227, 7
      %s232 = smul.addr %s229, 8
      %s233 = sadd.s32 %s231, %s232
      %s234 = smul.addr %s233, 4
      %s235 = scalar_lea.vmem %s4, %s234
      %s236 = smul.u32 8, %s20
      %v238 = vld [vmem:[%s225] sm:$0xf]
      %v239 = vld [vmem:[%s225 + $0x4] sm:$0xf]
      %v240 = vld [vmem:[%s225 + $0x8] sm:$0xf]
      %v241 = vld [vmem:[%s225 + $0xc] sm:$0xf]
      %v242 = vld [vmem:[%s225 + $0x10] sm:$0xf]
      %v243 = vld [vmem:[%s225 + $0x14] sm:$0xf]
      %v244 = vld [vmem:[%s225 + $0x18] sm:$0xf]
      %v245 = vld [vmem:[%s225 + $0x1c] sm:$0xf]
      %v246 = vld [vmem:[%s1] sm:$0xf]
      %v247 = vld [vmem:[%s1 + $0x4] sm:$0xf]
      %v256 = vunpack.c.l.b16 %v238
      %v257 = vunpack.c.l.b16 %v239
      %v258 = vunpack.c.l.b16 %v240
      %v259 = vunpack.c.l.b16 %v241
      %v260 = vunpack.c.l.b16 %v242
      %v261 = vunpack.c.l.b16 %v243
      %v262 = vunpack.c.l.b16 %v244
      %v263 = vunpack.c.l.b16 %v245
      %v264 = vpack.c.b16 %v257, %v256
      %v265 = vpack.c.b16 %v259, %v258
      %v266 = vpack.c.b16 %v261, %v260
      %v267 = vpack.c.b16 %v263, %v262
      %v270 = vunpack.c.l.b16 %v246
      %v271 = vunpack.c.l.b16 %v247
      %v272 = vpack.c.b16 %v271, %v270
      %vm274 = vcmask 130048
      %v276 = vsel %vm274, %v264, 0
      %v279 = vsel %vm274, %v265, 0
      %v282 = vsel %vm274, %v266, 0
      %v285 = vsel %vm274, %v267, 0
      %287 = vmatprep.subr.bf16.mxu0 0
      %288 = vmatpush1.bf16.msra.mxu0 %v272
      %289 = vmatprep.subr.bf16.mxu0 0
      %290 = vmatpush1.bf16.msra.mxu0 0
      %291 = vmatprep.subr.bf16.mxu0 0
      %292 = vmatpush1.bf16.msra.mxu0 0
      %293 = vmatprep.subr.bf16.mxu0 0
      %294 = vmatpush1.bf16.msra.mxu0 0
      %295 = vmatprep.subr.bf16.mxu0 0
      %296 = vmatpush1.bf16.msra.mxu0 0
      %297 = vmatprep.subr.bf16.mxu0 0
      %298 = vmatpush1.bf16.msra.mxu0 0
      %299 = vmatprep.subr.bf16.mxu0 0
      %300 = vmatpush1.bf16.msra.mxu0 0
      %301 = vmatprep.subr.bf16.mxu0 0
      %302 = vmatpush1.bf16.msra.mxu0 0
      %303 = vmatprep.subr.bf16.mxu0 0
      %304 = vmatpush1.bf16.msra.mxu0 0
      %305 = vmatprep.subr.bf16.mxu0 0
      %306 = vmatpush1.bf16.msra.mxu0 0
      %307 = vmatprep.subr.bf16.mxu0 0
      %308 = vmatpush1.bf16.msra.mxu0 0
      %309 = vmatprep.subr.bf16.mxu0 0
      %310 = vmatpush1.bf16.msra.mxu0 0
      %311 = vmatprep.subr.bf16.mxu0 0
      %312 = vmatpush1.bf16.msra.mxu0 0
      %313 = vmatprep.subr.bf16.mxu0 0
      %314 = vmatpush1.bf16.msra.mxu0 0
      %315 = vmatprep.subr.bf16.mxu0 0
      %316 = vmatpush1.bf16.msra.mxu0 0
      %317 = vmatprep.subr.bf16.mxu0 0
      %318 = vmatpush1.bf16.msra.mxu0 0
      %319 = vmatprep.mubr.bf16.mxu0 0
      %320 = vmatmul.mubr.bf16.gmra.mrb[0].mxu0 %v276
      %v321 = vpop.f32.mrb[0].mxu0
      %v322 = vadd.f32 0.0, %v321
      %v323 = vpop.f32.mrb[0].mxu0
      %v324 = vpop.f32.mrb[0].mxu0
      %v325 = vadd.f32 0.0, %v324
      %v326 = vpop.f32.mrb[0].mxu0
      %327 = vmatprep.mubr.bf16.mxu0 0
      %328 = vmatmul.mubr.bf16.gmra.mrb[0].mxu0 %v279
      %v329 = vpop.f32.mrb[0].mxu0
      %v330 = vadd.f32 0.0, %v329
      %v331 = vpop.f32.mrb[0].mxu0
      %v332 = vpop.f32.mrb[0].mxu0
      %v333 = vadd.f32 0.0, %v332
      %v334 = vpop.f32.mrb[0].mxu0
      %335 = vmatprep.mubr.bf16.mxu0 0
      %336 = vmatmul.mubr.bf16.gmra.mrb[0].mxu0 %v282
      %v337 = vpop.f32.mrb[0].mxu0
      %v338 = vadd.f32 0.0, %v337
      %v339 = vpop.f32.mrb[0].mxu0
      %v340 = vpop.f32.mrb[0].mxu0
      %v341 = vadd.f32 0.0, %v340
      %v342 = vpop.f32.mrb[0].mxu0
      %343 = vmatprep.mubr.bf16.mxu0 0
      %344 = vmatmul.mubr.bf16.gmra.mrb[0].mxu0 %v285
      %v345 = vpop.f32.mrb[0].mxu0
      %v346 = vadd.f32 0.0, %v345
      %v347 = vpop.f32.mrb[0].mxu0
      %v348 = vpop.f32.mrb[0].mxu0
      %v349 = vadd.f32 0.0, %v348
      %v350 = vpop.f32.mrb[0].mxu0
      %351 = vdwg.mxu0
      %v352 = vld [vmem:[%s2] sm:$0x1]
      %v354 = vlaneseq
      %v355 = vshrl.u32 %v354, 7
      %v356 = vsub.s32 0, %v355
      %v357 = vrot.slane %v352, %v356
      %v359 = vmul.f32 %v322, %v357
      %v360 = vmul.f32 %v325, %v357
      %v361 = vmul.f32 %v330, %v357
      %v362 = vmul.f32 %v333, %v357
      %v363 = vmul.f32 %v338, %v357
      %v364 = vmul.f32 %v341, %v357
      %v365 = vmul.f32 %v346, %v357
      %v366 = vmul.f32 %v349, %v357
      %v367 = vld [vmem:[%s3] sm:$0x1]
      %v369 = vlaneseq
      %v370 = vshrl.u32 %v369, 7
      %v371 = vsub.s32 0, %v370
      %v372 = vrot.slane %v367, %v371
      %v374 = vadd.f32 %v359, %v372
      %v375 = vadd.f32 %v360, %v372
      %v376 = vadd.f32 %v361, %v372
      %v377 = vadd.f32 %v362, %v372
      %v378 = vadd.f32 %v363, %v372
      %v379 = vadd.f32 %v364, %v372
      %v380 = vadd.f32 %v365, %v372
      %v381 = vadd.f32 %v366, %v372
      %v382 = vmax.f32 %v374, 0.0
      %v383 = vmax.f32 %v375, 0.0
      %v384 = vmax.f32 %v376, 0.0
      %v385 = vmax.f32 %v377, 0.0
      %v386 = vmax.f32 %v378, 0.0
      %v387 = vmax.f32 %v379, 0.0
      %v388 = vmax.f32 %v380, 0.0
      %v389 = vmax.f32 %v381, 0.0
      %v390 = vpack.c.bf16 %v383, %v382
      %v391 = vpack.c.bf16 %v385, %v384
      %v392 = vpack.c.bf16 %v387, %v386
      %v393 = vpack.c.bf16 %v389, %v388
      %v398 = vunpack.c.l.b16 %v390
      %v399 = vunpack.c.h.b16 %v390
      %v400 = vunpack.c.l.b16 %v391
      %v401 = vunpack.c.h.b16 %v391
      %v402 = vunpack.c.l.b16 %v392
      %v403 = vunpack.c.h.b16 %v392
      %v404 = vunpack.c.l.b16 %v393
      %v405 = vunpack.c.h.b16 %v393
      %v406 = vpack.c.b16 %v398, %v398
      %v407 = vpack.c.b16 %v399, %v399
      %v408 = vpack.c.b16 %v400, %v400
      %v409 = vpack.c.b16 %v401, %v401
      %v410 = vpack.c.b16 %v402, %v402
      %v411 = vpack.c.b16 %v403, %v403
      %v412 = vpack.c.b16 %v404, %v404
      %v413 = vpack.c.b16 %v405, %v405
      %vm422 = vcmask 781312
      %423 = vst.msk [vmem:[%s235] sm:$0xf] %vm422, %v406
      %424 = vst.msk [vmem:[%s235 + $0x4] sm:$0xf] %vm422, %v407
      %425 = vst.msk [vmem:[%s235 + $0x8] sm:$0xf] %vm422, %v408
      %426 = vst.msk [vmem:[%s235 + $0xc] sm:$0xf] %vm422, %v409
      %427 = vst.msk [vmem:[%s235 + $0x10] sm:$0xf] %vm422, %v410
      %428 = vst.msk [vmem:[%s235 + $0x14] sm:$0xf] %vm422, %v411
      %429 = vst.msk [vmem:[%s235 + $0x18] sm:$0xf] %vm422, %v412
      %430 = vst.msk [vmem:[%s235 + $0x1c] sm:$0xf] %vm422, %v413
      %s431 = smul.u32 8, %s20
      %p432 = scmp.lt.s32.totalorder %s19, 1
      %s433 = scalar_select %p432, %s19, 1
      %p434 = scmp.lt.s32.totalorder %s431, 7
      %s435 = scalar_select %p434, %s431, 7
      %s436 = smul.addr %s433, 8
      %s437 = sadd.s32 %s435, %s436
      %s438 = smul.addr %s437, 4
      %s439 = scalar_lea.vmem %s4, %s438
      // Predicated region
      $region37: #{efficientnet_features_forward.12} parent=35 // pred_check
        %p440 = pneg %p138
      $region38: #{efficientnet_features_forward.12} parent=35 // pred_check_branch
        %442 = sbr.rel (%p440) target = $region40
      $region39: #{efficientnet_features_forward.12} parent=35 // pred_region
        %s443 = smul.u32 8, %s20
      $region40: #{efficientnet_features_forward.12} parent=35 // pred_fallthru
        _
    $region36: #{efficientnet_features_forward.12} parent=5 // pred_fallthru
      _
    %p444 = scmp.le.s32.totalorder 2, %s10
    // Predicated region
    $region41: #{efficientnet_features_forward.12} parent=5 // pred_check
      %p445 = pneg %p444
    $region42: #{efficientnet_features_forward.12} parent=5 // pred_check_branch
      %447 = sbr.rel (%p445) target = $region44
    $region43: #{efficientnet_features_forward.12} parent=5 // pred_region
      %s448 = ssub.s32 %s10, 2
      // Predicated region
      $region45: #{efficientnet_features_forward.12} parent=43 // pred_check
        %p449 = pneg %p144
      $region46: #{efficientnet_features_forward.12} parent=43 // pred_check_branch
        %451 = sbr.rel (%p449) target = $region48
      $region47: #{efficientnet_features_forward.12} parent=43 // pred_region
        %s452 = smul.u32 8, %s22
        %p453 = scmp.lt.s32.totalorder %s21, 1
        %s454 = scalar_select %p453, %s21, 1
        %p455 = scmp.lt.s32.totalorder %s452, 7
        %s456 = scalar_select %p455, %s452, 7
        %s457 = smul.addr %s454, 8
        %s458 = sadd.s32 %s456, %s457
        %s459 = smul.addr %s458, 4
        %s460 = scalar_lea.vmem %s4, %s459
      $region48: #{efficientnet_features_forward.12} parent=43 // pred_fallthru
        _
    $region44: #{efficientnet_features_forward.12} parent=5 // pred_fallthru
      _
  $region6: #{efficientnet_features_forward.12} parent=0 // loop_footer
    %s14 = sadd.s32 1, %s10
  $region7: #{efficientnet_features_forward.12} parent=0 // loop_footer_branch
    %9 = sbr.rel target = $region3
  $region8: #{efficientnet_features_forward.12} parent=0 // loop_exit
    _

// kernel: efficientnet_features_forward.14
$region0: #{efficientnet_features_forward.14}
  #allocation0 [shape = 'u32[]', space=smem, size = 0x4, offset = 0x4, fixed_abs, tag = 'smem constant byte address 0x4 - core index']
  #allocation1 [shape = 'u32[144,128]{1,0:T(1,128)}', space=vmem, size = 0x12000, scoped, tag = 'internal scratch']
  %s0 = inlined_call_operand.vmem [shape: bf16[2,16,96], index: 0, kind: input, shape index: {}]
  %s1 = inlined_call_operand.vmem [shape: bf16[2,1,96], index: 1, kind: input, shape index: {}]
  %s2 = inlined_call_operand.vmem [shape: bf16[96,24], index: 2, kind: input, shape index: {}]
  %s3 = inlined_call_operand.vmem [shape: f32[1,24], index: 3, kind: input, shape index: {}]
  %s4 = inlined_call_operand.vmem [shape: f32[1,24], index: 4, kind: input, shape index: {}]
  %s5 = inlined_call_operand.vmem [shape: bf16[2,16,24], index: 5, kind: output, shape index: {}]
  %s6 = sld [smem:[#allocation0]]
  $region53: #{efficientnet_features_forward.14} parent=0
    _
  %s8 = ssub.s32 1, %s6
  %s9 = scalar_select 0, %s8, %s6
  loop: start=0, step=1, limit=4
  $region2: #{efficientnet_features_forward.14} parent=0 // loop_pre_header
    _
  $region3: #{efficientnet_features_forward.14} parent=0 // loop_header
    %s11 = sphi 0, %s15
    %p12 = scmp.ge.s32.totalorder %s11, 4
    %s18 = sphi 0, %s30
    %s19 = sphi 0, %s26
    %s20 = sphi 0, %s18
    %s21 = sphi 0, %s19
    %s22 = sphi 0, %s20
    %s23 = sphi 0, %s21
    %s35 = sphi 0, %s37
    %s38 = sphi 0, %s35
    %s39 = sphi 0, %s38
    %s55 = sphi 0, %s39
    %s61 = sphi 0, %s63
    %s64 = sphi 0, %s61
    %s65 = sphi 0, %s64
    %s81 = sphi 0, %s65
    %s85 = sphi 0, %s85
    %s87 = sphi 0, %s85
    %s88 = sphi 0, %s87
    %s102 = sphi 0, %s88
    %s106 = sphi 0, %s106
    %s108 = sphi 0, %s106
    %s109 = sphi 0, %s108
    %s123 = sphi 0, %s109
    %s127 = sphi 0, %s127
    %s129 = sphi 0, %s127
    %s130 = sphi 0, %s129
    %s144 = sphi 0, %s130
    %s152 = sphi 0, %s154
    %s155 = sphi 0, %s152
    %s156 = sphi 0, %s155
    %s172 = sphi 0, %s156
  $region4: #{efficientnet_features_forward.14} parent=0 // loop_header_branch
    %14 = sbr.rel (%p12) target = $region8
  $region5: #{efficientnet_features_forward.14} parent=0 // loop_body
    %s16 = ssub.s32 %s11, 1
    %s17 = ssub.s32 %s11, 2
    %s24 = sadd.s32 1, %s19
    %p25 = scmp.ge.s32.totalorder %s24, 1
    %s26 = scalar_select %p25, 0, %s24
    %s27 = sadd.s32 1, %s18
    %s28 = scalar_select %p25, %s27, %s18
    %p29 = scmp.ge.s32.totalorder %s28, 2
    %s30 = scalar_select %p29, 0, %s28
    %s31 = ssub.s32 %s18, %s30
    %s32 = ssub.s32 %s19, %s26
    %s33 = sor.u32 %s31, %s32
    %p34 = scmp.eq.s32.totalorder %s33, 0
    %s36 = sadd.s32 %s35, 1
    %s37 = scalar_select %p34, %s35, %s36
    %p40 = pneg %p34
    %p41 = scmp.eq.s32.totalorder %s11, 1
    %p42 = por %p40, %p41
    %p43 = scmp.ne.s32.totalorder %s35, %s38
    %p44 = scmp.eq.s32.totalorder %s11, 0
    %p45 = por %p43, %p44
    %p46 = scmp.ne.s32.totalorder %s35, %s38
    %p47 = scmp.eq.s32.totalorder %s16, 1
    %p48 = por %p46, %p47
    %p49 = scmp.ne.s32.totalorder %s38, %s39
    %p50 = scmp.eq.s32.totalorder %s16, 0
    %p51 = por %p49, %p50
    %p52 = scmp.ne.s32.totalorder %s38, %s39
    %p53 = scmp.eq.s32.totalorder %s17, 1
    %p54 = por %p52, %p53
    %p56 = scmp.ne.s32.totalorder %s39, %s55
    %p57 = scmp.eq.s32.totalorder %s17, 0
    %p58 = por %p56, %p57
    %s59 = ssub.s32 %s18, %s30
    %p60 = scmp.eq.s32.totalorder %s59, 0
    %s62 = sadd.s32 %s61, 1
    %s63 = scalar_select %p60, %s61, %s62
    %p66 = pneg %p60
    %p67 = scmp.eq.s32.totalorder %s11, 1
    %p68 = por %p66, %p67
    %p69 = scmp.ne.s32.totalorder %s61, %s64
    %p70 = scmp.eq.s32.totalorder %s11, 0
    %p71 = por %p69, %p70
    %p72 = scmp.ne.s32.totalorder %s61, %s64
    %p73 = scmp.eq.s32.totalorder %s16, 1
    %p74 = por %p72, %p73
    %p75 = scmp.ne.s32.totalorder %s64, %s65
    %p76 = scmp.eq.s32.totalorder %s16, 0
    %p77 = por %p75, %p76
    %p78 = scmp.ne.s32.totalorder %s64, %s65
    %p79 = scmp.eq.s32.totalorder %s17, 1
    %p80 = por %p78, %p79
    %p82 = scmp.ne.s32.totalorder %s65, %s81
    %p83 = scmp.eq.s32.totalorder %s17, 0
    %p84 = por %p82, %p83
    %s86 = sadd.s32 %s85, 1
    %p89 = scmp.eq.s32.totalorder %s11, 1
    %p90 = scmp.ne.s32.totalorder %s85, %s87
    %p91 = scmp.eq.s32.totalorder %s11, 0
    %p92 = por %p90, %p91
    %p93 = scmp.ne.s32.totalorder %s85, %s87
    %p94 = scmp.eq.s32.totalorder %s16, 1
    %p95 = por %p93, %p94
    %p96 = scmp.ne.s32.totalorder %s87, %s88
    %p97 = scmp.eq.s32.totalorder %s16, 0
    %p98 = por %p96, %p97
    %p99 = scmp.ne.s32.totalorder %s87, %s88
    %p100 = scmp.eq.s32.totalorder %s17, 1
    %p101 = por %p99, %p100
    %p103 = scmp.ne.s32.totalorder %s88, %s102
    %p104 = scmp.eq.s32.totalorder %s17, 0
    %p105 = por %p103, %p104
    %s107 = sadd.s32 %s106, 1
    %p110 = scmp.eq.s32.totalorder %s11, 1
    %p111 = scmp.ne.s32.totalorder %s106, %s108
    %p112 = scmp.eq.s32.totalorder %s11, 0
    %p113 = por %p111, %p112
    %p114 = scmp.ne.s32.totalorder %s106, %s108
    %p115 = scmp.eq.s32.totalorder %s16, 1
    %p116 = por %p114, %p115
    %p117 = scmp.ne.s32.totalorder %s108, %s109
    %p118 = scmp.eq.s32.totalorder %s16, 0
    %p119 = por %p117, %p118
    %p120 = scmp.ne.s32.totalorder %s108, %s109
    %p121 = scmp.eq.s32.totalorder %s17, 1
    %p122 = por %p120, %p121
    %p124 = scmp.ne.s32.totalorder %s109, %s123
    %p125 = scmp.eq.s32.totalorder %s17, 0
    %p126 = por %p124, %p125
    %s128 = sadd.s32 %s127, 1
    %p131 = scmp.eq.s32.totalorder %s11, 1
    %p132 = scmp.ne.s32.totalorder %s127, %s129
    %p133 = scmp.eq.s32.totalorder %s11, 0
    %p134 = por %p132, %p133
    %p135 = scmp.ne.s32.totalorder %s127, %s129
    %p136 = scmp.eq.s32.totalorder %s16, 1
    %p137 = por %p135, %p136
    %p138 = scmp.ne.s32.totalorder %s129, %s130
    %p139 = scmp.eq.s32.totalorder %s16, 0
    %p140 = por %p138, %p139
    %p141 = scmp.ne.s32.totalorder %s129, %s130
    %p142 = scmp.eq.s32.totalorder %s17, 1
    %p143 = por %p141, %p142
    %p145 = scmp.ne.s32.totalorder %s130, %s144
    %p146 = scmp.eq.s32.totalorder %s17, 0
    %p147 = por %p145, %p146
    %s148 = ssub.s32 %s18, %s30
    %s149 = ssub.s32 %s19, %s26
    %s150 = sor.u32 %s148, %s149
    %p151 = scmp.eq.s32.totalorder %s150, 0
    %s153 = sadd.s32 %s152, 1
    %s154 = scalar_select %p151, %s152, %s153
    %p157 = pneg %p151
    %p158 = scmp.eq.s32.totalorder %s11, 1
    %p159 = por %p157, %p158
    %p160 = scmp.ne.s32.totalorder %s152, %s155
    %p161 = scmp.eq.s32.totalorder %s11, 0
    %p162 = por %p160, %p161
    %p163 = scmp.ne.s32.totalorder %s152, %s155
    %p164 = scmp.eq.s32.totalorder %s16, 1
    %p165 = por %p163, %p164
    %p166 = scmp.ne.s32.totalorder %s155, %s156
    %p167 = scmp.eq.s32.totalorder %s16, 0
    %p168 = por %p166, %p167
    %p169 = scmp.ne.s32.totalorder %s155, %s156
    %p170 = scmp.eq.s32.totalorder %s17, 1
    %p171 = por %p169, %p170
    %p173 = scmp.ne.s32.totalorder %s156, %s172
    %p174 = scmp.eq.s32.totalorder %s17, 0
    %p175 = por %p173, %p174
    %p176 = scmp.le.s32.totalorder 1, %s11
    %p177 = scmp.lt.s32.totalorder %s11, 3
    %p178 = pnand %p176, %p177
    %p179 = pneg %p178
    // Predicated region
    $region9: #{efficientnet_features_forward.14} parent=5 // pred_check
      _
    $region10: #{efficientnet_features_forward.14} parent=5 // pred_check_branch
      %181 = sbr.rel (%p178) target = $region12
    $region11: #{efficientnet_features_forward.14} parent=5 // pred_region
      %s182 = ssub.s32 %s11, 1
      // Predicated region
      $region13: #{efficientnet_features_forward.14} parent=11 // pred_check
        %p183 = pneg %p98
      $region14: #{efficientnet_features_forward.14} parent=11 // pred_check_branch
        %185 = sbr.rel (%p183) target = $region16
      $region15: #{efficientnet_features_forward.14} parent=11 // pred_region
        _
      $region16: #{efficientnet_features_forward.14} parent=11 // pred_fallthru
        _
      // Predicated region
      $region17: #{efficientnet_features_forward.14} parent=11 // pred_check
        %p186 = pneg %p119
      $region18: #{efficientnet_features_forward.14} parent=11 // pred_check_branch
        %188 = sbr.rel (%p186) target = $region20
      $region19: #{efficientnet_features_forward.14} parent=11 // pred_region
        _
      $region20: #{efficientnet_features_forward.14} parent=11 // pred_fallthru
        _
      // Predicated region
      $region21: #{efficientnet_features_forward.14} parent=11 // pred_check
        %p189 = pneg %p140
      $region22: #{efficientnet_features_forward.14} parent=11 // pred_check_branch
        %191 = sbr.rel (%p189) target = $region24
      $region23: #{efficientnet_features_forward.14} parent=11 // pred_region
        _
      $region24: #{efficientnet_features_forward.14} parent=11 // pred_fallthru
        _
    $region12: #{efficientnet_features_forward.14} parent=5 // pred_fallthru
      _
    %p192 = scmp.lt.s32.totalorder %s11, 2
    // Predicated region
    $region25: #{efficientnet_features_forward.14} parent=5 // pred_check
      %p193 = pneg %p192
    $region26: #{efficientnet_features_forward.14} parent=5 // pred_check_branch
      %195 = sbr.rel (%p193) target = $region28
    $region27: #{efficientnet_features_forward.14} parent=5 // pred_region
      // Predicated region
      $region29: #{efficientnet_features_forward.14} parent=27 // pred_check
        %p196 = pneg %p45
      $region30: #{efficientnet_features_forward.14} parent=27 // pred_check_branch
        %198 = sbr.rel (%p196) target = $region32
      $region31: #{efficientnet_features_forward.14} parent=27 // pred_region
        %s199 = smul.u32 2, %s19
        %p200 = scmp.lt.s32.totalorder %s18, 1
        %s201 = scalar_select %p200, %s18, 1
        %p202 = scmp.lt.s32.totalorder %s199, 1
        %s203 = scalar_select %p202, %s199, 1
        %s204 = smul.addr %s201, 2
        %s205 = sadd.s32 %s203, %s204
        %s206 = smul.addr %s205, 4
        %s207 = scalar_lea.vmem %s0, %s206
        %s208 = smul.u32 2, %s19
      $region32: #{efficientnet_features_forward.14} parent=27 // pred_fallthru
        _
      // Predicated region
      $region33: #{efficientnet_features_forward.14} parent=27 // pred_check
        %p209 = pneg %p71
      $region34: #{efficientnet_features_forward.14} parent=27 // pred_check_branch
        %211 = sbr.rel (%p209) target = $region36
      $region35: #{efficientnet_features_forward.14} parent=27 // pred_region
        %p212 = scmp.lt.s32.totalorder %s18, 1
        %s213 = scalar_select %p212, %s18, 1
        %s214 = scalar_lea.vmem %s1, %s213
      $region36: #{efficientnet_features_forward.14} parent=27 // pred_fallthru
        _
    $region28: #{efficientnet_features_forward.14} parent=5 // pred_fallthru
      _
    %p215 = scmp.le.s32.totalorder 1, %s11
    %p216 = scmp.lt.s32.totalorder %s11, 3
    %p217 = pnand %p215, %p216
    %p218 = pneg %p217
    // Predicated region
    $region37: #{efficientnet_features_forward.14} parent=5 // pred_check
      _
    $region38: #{efficientnet_features_forward.14} parent=5 // pred_check_branch
      %220 = sbr.rel (%p217) target = $region40
    $region39: #{efficientnet_features_forward.14} parent=5 // pred_region
      %s221 = ssub.s32 %s11, 1
      %s222 = smul.u32 2, %s21
      %p223 = scmp.lt.s32.totalorder %s20, 1
      %s224 = scalar_select %p223, %s20, 1
      %p225 = scmp.lt.s32.totalorder %s222, 1
      %s226 = scalar_select %p225, %s222, 1
      %s227 = smul.addr %s224, 2
      %s228 = sadd.s32 %s226, %s227
      %s229 = smul.addr %s228, 4
      %s230 = scalar_lea.vmem %s0, %s229
      %p231 = pneg %p51
      %p232 = pneg %p48
      %p233 = scmp.lt.s32.totalorder %s20, 1
      %s234 = scalar_select %p233, %s20, 1
      %s235 = scalar_lea.vmem %s1, %s234
      %p236 = pneg %p77
      %p237 = pneg %p74
      %p238 = pneg %p98
      %p239 = pneg %p95
      %p240 = pneg %p119
      %p241 = pneg %p116
      %p242 = pneg %p140
      %p243 = pneg %p137
      %p244 = pneg %p168
      %p245 = pneg %p165
      %s246 = smul.u32 2, %s21
      %p247 = scmp.lt.s32.totalorder %s20, 1
      %s248 = scalar_select %p247, %s20, 1
      %p249 = scmp.lt.s32.totalorder %s246, 1
      %s250 = scalar_select %p249, %s246, 1
      %s251 = smul.addr %s248, 2
      %s252 = sadd.s32 %s250, %s251
      %s253 = smul.addr %s252, 4
      %s254 = scalar_lea.vmem %s5, %s253
      %s255 = smul.u32 2, %s21
      %p256 = scmp.lt.s32.totalorder %s20, 1
      %s257 = scalar_select %p256, %s20, 1
      %p258 = scmp.lt.s32.totalorder %s255, 1
      %s259 = scalar_select %p258, %s255, 1
      %s260 = smul.addr %s257, 2
      %s261 = sadd.s32 %s259, %s260
      %s262 = smul.addr %s261, 4
      %s263 = scalar_lea.vmem %s0, %s262
      %s264 = smul.u32 2, %s21
      %p265 = scmp.lt.s32.totalorder %s20, 1
      %s266 = scalar_select %p265, %s20, 1
      %s267 = scalar_lea.vmem %s1, %s266
      %s268 = smul.u32 2, %s21
      %p269 = scmp.lt.s32.totalorder %s20, 1
      %s270 = scalar_select %p269, %s20, 1
      %p271 = scmp.lt.s32.totalorder %s268, 1
      %s272 = scalar_select %p271, %s268, 1
      %s273 = smul.addr %s270, 2
      %s274 = sadd.s32 %s272, %s273
      %s275 = smul.addr %s274, 4
      %s276 = scalar_lea.vmem %s5, %s275
      %s277 = smul.u32 2, %s21
      %v279 = vld [vmem:[%s263] sm:$0xf]
      %v280 = vld [vmem:[%s263 + $0x4] sm:$0xf]
      %v281 = vld [vmem:[%s267] sm:$0x1]
      %v283 = vpack.i.b16 %v281, %v281
      %v285 = vlaneseq
      %v286 = vshrl.u32 %v285, 7
      %v287 = vsub.s32 0, %v286
      %v288 = vrot.slane %v283, %v287
      %v290 = vunpack.c.l.b16 %v288
      %v291 = vpack.c.b16 %v290, %v290
      %v293 = vmul.bf16 %v279, %v291
      %v294 = vmul.bf16 %v280, %v291
      %v295 = vld [vmem:[%s2] sm:$0xf]
      %v296 = vld [vmem:[%s2 + $0x4] sm:$0xf]
      %v297 = vld [vmem:[%s2 + $0x8] sm:$0xf]
      %v298 = vld [vmem:[%s2 + $0xc] sm:$0xf]
      %v299 = vld [vmem:[%s2 + $0x10] sm:$0xf]
      %v300 = vld [vmem:[%s2 + $0x14] sm:$0xf]
      %v301 = vld [vmem:[%s2 + $0x18] sm:$0xf]
      %v302 = vld [vmem:[%s2 + $0x1c] sm:$0xf]
      %v303 = vld [vmem:[%s2 + $0x20] sm:$0xf]
      %v304 = vld [vmem:[%s2 + $0x24] sm:$0xf]
      %v305 = vld [vmem:[%s2 + $0x28] sm:$0xf]
      %v306 = vld [vmem:[%s2 + $0x2c] sm:$0xf]
      %v309 = vunpack.c.l.b16 %v293
      %v310 = vunpack.c.l.b16 %v294
      %v311 = vpack.c.b16 %v310, %v309
      %v324 = vunpack.c.l.b16 %v295
      %v325 = vunpack.c.l.b16 %v296
      %v326 = vunpack.c.l.b16 %v297
      %v327 = vunpack.c.l.b16 %v298
      %v328 = vunpack.c.l.b16 %v299
      %v329 = vunpack.c.l.b16 %v300
      %v330 = vunpack.c.l.b16 %v301
      %v331 = vunpack.c.l.b16 %v302
      %v332 = vunpack.c.l.b16 %v303
      %v333 = vunpack.c.l.b16 %v304
      %v334 = vunpack.c.l.b16 %v305
      %v335 = vunpack.c.l.b16 %v306
      %v336 = vpack.c.b16 %v325, %v324
      %v337 = vpack.c.b16 %v327, %v326
      %v338 = vpack.c.b16 %v329, %v328
      %v339 = vpack.c.b16 %v331, %v330
      %v340 = vpack.c.b16 %v333, %v332
      %v341 = vpack.c.b16 %v335, %v334
      %vm348 = vcmask 785408
      %v350 = vsel %vm348, %v311, 0
      %352 = vmatprep.subr.bf16.mxu0 0
      %353 = vmatpush1.bf16.msra.mxu0 %v336
      %354 = vmatprep.subr.bf16.mxu0 0
      %355 = vmatpush1.bf16.msra.mxu0 %v337
      %356 = vmatprep.subr.bf16.mxu0 0
      %357 = vmatpush1.bf16.msra.mxu0 %v338
      %358 = vmatprep.subr.bf16.mxu0 0
      %359 = vmatpush1.bf16.msra.mxu0 %v339
      %360 = vmatprep.subr.bf16.mxu0 0
      %361 = vmatpush1.bf16.msra.mxu0 %v340
      %362 = vmatprep.subr.bf16.mxu0 0
      %363 = vmatpush1.bf16.msra.mxu0 %v341
      %364 = vmatprep.subr.bf16.mxu0 0
      %365 = vmatpush1.bf16.msra.mxu0 0
      %366 = vmatprep.subr.bf16.mxu0 0
      %367 = vmatpush1.bf16.msra.mxu0 0
      %368 = vmatprep.subr.bf16.mxu0 0
      %369 = vmatpush1.bf16.msra.mxu0 0
      %370 = vmatprep.subr.bf16.mxu0 0
      %371 = vmatpush1.bf16.msra.mxu0 0
      %372 = vmatprep.subr.bf16.mxu0 0
      %373 = vmatpush1.bf16.msra.mxu0 0
      %374 = vmatprep.subr.bf16.mxu0 0
      %375 = vmatpush1.bf16.msra.mxu0 0
      %376 = vmatprep.subr.bf16.mxu0 0
      %377 = vmatpush1.bf16.msra.mxu0 0
      %378 = vmatprep.subr.bf16.mxu0 0
      %379 = vmatpush1.bf16.msra.mxu0 0
      %380 = vmatprep.subr.bf16.mxu0 0
      %381 = vmatpush1.bf16.msra.mxu0 0
      %382 = vmatprep.subr.bf16.mxu0 0
      %383 = vmatpush1.bf16.msra.mxu0 0
      %384 = vmatprep.mubr.bf16.mxu0 0
      %385 = vmatmul.mubr.bf16.gmra.mrb[0].mxu0 %v350
      %v386 = vpop.f32.mrb[0].mxu0
      %v387 = vadd.f32 0.0, %v386
      %v388 = vpop.f32.mrb[0].mxu0
      %v389 = vpop.f32.mrb[0].mxu0
      %v390 = vadd.f32 0.0, %v389
      %v391 = vpop.f32.mrb[0].mxu0
      %392 = vdwg.mxu0
      %v393 = vld [vmem:[%s3] sm:$0x1]
      %v395 = vlaneseq
      %v396 = vshrl.u32 %v395, 7
      %v397 = vsub.s32 0, %v396
      %v398 = vrot.slane %v393, %v397
      %v400 = vmul.f32 %v387, %v398
      %v401 = vmul.f32 %v390, %v398
      %v402 = vld [vmem:[%s4] sm:$0x1]
      %v404 = vlaneseq
      %v405 = vshrl.u32 %v404, 7
      %v406 = vsub.s32 0, %v405
      %v407 = vrot.slane %v402, %v406
      %v409 = vadd.f32 %v400, %v407
      %v410 = vadd.f32 %v401, %v407
      %v411 = vpack.c.bf16 %v410, %v409
      %v413 = vunpack.c.l.b16 %v411
      %v414 = vunpack.c.h.b16 %v411
      %v415 = vpack.c.b16 %v413, %v413
      %v416 = vpack.c.b16 %v414, %v414
      %vm419 = vcmask 191488
      %420 = vst.msk [vmem:[%s276] sm:$0xf] %vm419, %v415
      %421 = vst.msk [vmem:[%s276 + $0x4] sm:$0xf] %vm419, %v416
      %s422 = smul.u32 2, %s21
      %p423 = scmp.lt.s32.totalorder %s20, 1
      %s424 = scalar_select %p423, %s20, 1
      %p425 = scmp.lt.s32.totalorder %s422, 1
      %s426 = scalar_select %p425, %s422, 1
      %s427 = smul.addr %s424, 2
      %s428 = sadd.s32 %s426, %s427
      %s429 = smul.addr %s428, 4
      %s430 = scalar_lea.vmem %s5, %s429
      // Predicated region
      $region41: #{efficientnet_features_forward.14} parent=39 // pred_check
        %p431 = pneg %p165
      $region42: #{efficientnet_features_forward.14} parent=39 // pred_check_branch
        %433 = sbr.rel (%p431) target = $region44
      $region43: #{efficientnet_features_forward.14} parent=39 // pred_region
        %s434 = smul.u32 2, %s21
      $region44: #{efficientnet_features_forward.14} parent=39 // pred_fallthru
        _
    $region40: #{efficientnet_features_forward.14} parent=5 // pred_fallthru
      _
    %p435 = scmp.le.s32.totalorder 2, %s11
    // Predicated region
    $region45: #{efficientnet_features_forward.14} parent=5 // pred_check
      %p436 = pneg %p435
    $region46: #{efficientnet_features_forward.14} parent=5 // pred_check_branch
      %438 = sbr.rel (%p436) target = $region48
    $region47: #{efficientnet_features_forward.14} parent=5 // pred_region
      %s439 = ssub.s32 %s11, 2
      // Predicated region
      $region49: #{efficientnet_features_forward.14} parent=47 // pred_check
        %p440 = pneg %p171
      $region50: #{efficientnet_features_forward.14} parent=47 // pred_check_branch
        %442 = sbr.rel (%p440) target = $region52
      $region51: #{efficientnet_features_forward.14} parent=47 // pred_region
        %s443 = smul.u32 2, %s23
        %p444 = scmp.lt.s32.totalorder %s22, 1
        %s445 = scalar_select %p444, %s22, 1
        %p446 = scmp.lt.s32.totalorder %s443, 1
        %s447 = scalar_select %p446, %s443, 1
        %s448 = smul.addr %s445, 2
        %s449 = sadd.s32 %s447, %s448
        %s450 = smul.addr %s449, 4
        %s451 = scalar_lea.vmem %s5, %s450
      $region52: #{efficientnet_features_forward.14} parent=47 // pred_fallthru
        _
    $region48: #{efficientnet_features_forward.14} parent=5 // pred_fallthru
      _
  $region6: #{efficientnet_features_forward.14} parent=0 // loop_footer
    %s15 = sadd.s32 1, %s11
  $region7: #{efficientnet_features_forward.14} parent=0 // loop_footer_branch
    %10 = sbr.rel target = $region3
  $region8: #{efficientnet_features_forward.14} parent=0 // loop_exit
    _

// kernel: efficientnet_features_forward.15
$region0: #{efficientnet_features_forward.15}
  #allocation0 [shape = 'u32[]', space=smem, size = 0x4, offset = 0x4, fixed_abs, tag = 'smem constant byte address 0x4 - core index']
  #allocation1 [shape = 'u32[144,128]{1,0:T(1,128)}', space=vmem, size = 0x12000, scoped, tag = 'internal scratch']
  %s0 = inlined_call_operand.vmem [shape: bf16[2,16,24], index: 0, kind: input, shape index: {}]
  %s1 = inlined_call_operand.vmem [shape: bf16[24,144], index: 1, kind: input, shape index: {}]
  %s2 = inlined_call_operand.vmem [shape: f32[1,144], index: 2, kind: input, shape index: {}]
  %s3 = inlined_call_operand.vmem [shape: f32[1,144], index: 3, kind: input, shape index: {}]
  %s4 = inlined_call_operand.vmem [shape: bf16[2,16,144], index: 4, kind: output, shape index: {}]
  %s5 = sld [smem:[#allocation0]]
  $region49: #{efficientnet_features_forward.15} parent=0
    _
  %s7 = ssub.s32 1, %s5
  %s8 = scalar_select 0, %s7, %s5
  loop: start=0, step=1, limit=4
  $region2: #{efficientnet_features_forward.15} parent=0 // loop_pre_header
    _
  $region3: #{efficientnet_features_forward.15} parent=0 // loop_header
    %s10 = sphi 0, %s14
    %p11 = scmp.ge.s32.totalorder %s10, 4
    %s17 = sphi 0, %s29
    %s18 = sphi 0, %s25
    %s19 = sphi 0, %s17
    %s20 = sphi 0, %s18
    %s21 = sphi 0, %s19
    %s22 = sphi 0, %s20
    %s34 = sphi 0, %s36
    %s37 = sphi 0, %s34
    %s38 = sphi 0, %s37
    %s54 = sphi 0, %s38
    %s58 = sphi 0, %s58
    %s60 = sphi 0, %s58
    %s61 = sphi 0, %s60
    %s75 = sphi 0, %s61
    %s79 = sphi 0, %s79
    %s81 = sphi 0, %s79
    %s82 = sphi 0, %s81
    %s96 = sphi 0, %s82
    %s100 = sphi 0, %s100
    %s102 = sphi 0, %s100
    %s103 = sphi 0, %s102
    %s117 = sphi 0, %s103
    %s125 = sphi 0, %s127
    %s128 = sphi 0, %s125
    %s129 = sphi 0, %s128
    %s145 = sphi 0, %s129
  $region4: #{efficientnet_features_forward.15} parent=0 // loop_header_branch
    %13 = sbr.rel (%p11) target = $region8
  $region5: #{efficientnet_features_forward.15} parent=0 // loop_body
    %s15 = ssub.s32 %s10, 1
    %s16 = ssub.s32 %s10, 2
    %s23 = sadd.s32 1, %s18
    %p24 = scmp.ge.s32.totalorder %s23, 1
    %s25 = scalar_select %p24, 0, %s23
    %s26 = sadd.s32 1, %s17
    %s27 = scalar_select %p24, %s26, %s17
    %p28 = scmp.ge.s32.totalorder %s27, 2
    %s29 = scalar_select %p28, 0, %s27
    %s30 = ssub.s32 %s17, %s29
    %s31 = ssub.s32 %s18, %s25
    %s32 = sor.u32 %s30, %s31
    %p33 = scmp.eq.s32.totalorder %s32, 0
    %s35 = sadd.s32 %s34, 1
    %s36 = scalar_select %p33, %s34, %s35
    %p39 = pneg %p33
    %p40 = scmp.eq.s32.totalorder %s10, 1
    %p41 = por %p39, %p40
    %p42 = scmp.ne.s32.totalorder %s34, %s37
    %p43 = scmp.eq.s32.totalorder %s10, 0
    %p44 = por %p42, %p43
    %p45 = scmp.ne.s32.totalorder %s34, %s37
    %p46 = scmp.eq.s32.totalorder %s15, 1
    %p47 = por %p45, %p46
    %p48 = scmp.ne.s32.totalorder %s37, %s38
    %p49 = scmp.eq.s32.totalorder %s15, 0
    %p50 = por %p48, %p49
    %p51 = scmp.ne.s32.totalorder %s37, %s38
    %p52 = scmp.eq.s32.totalorder %s16, 1
    %p53 = por %p51, %p52
    %p55 = scmp.ne.s32.totalorder %s38, %s54
    %p56 = scmp.eq.s32.totalorder %s16, 0
    %p57 = por %p55, %p56
    %s59 = sadd.s32 %s58, 1
    %p62 = scmp.eq.s32.totalorder %s10, 1
    %p63 = scmp.ne.s32.totalorder %s58, %s60
    %p64 = scmp.eq.s32.totalorder %s10, 0
    %p65 = por %p63, %p64
    %p66 = scmp.ne.s32.totalorder %s58, %s60
    %p67 = scmp.eq.s32.totalorder %s15, 1
    %p68 = por %p66, %p67
    %p69 = scmp.ne.s32.totalorder %s60, %s61
    %p70 = scmp.eq.s32.totalorder %s15, 0
    %p71 = por %p69, %p70
    %p72 = scmp.ne.s32.totalorder %s60, %s61
    %p73 = scmp.eq.s32.totalorder %s16, 1
    %p74 = por %p72, %p73
    %p76 = scmp.ne.s32.totalorder %s61, %s75
    %p77 = scmp.eq.s32.totalorder %s16, 0
    %p78 = por %p76, %p77
    %s80 = sadd.s32 %s79, 1
    %p83 = scmp.eq.s32.totalorder %s10, 1
    %p84 = scmp.ne.s32.totalorder %s79, %s81
    %p85 = scmp.eq.s32.totalorder %s10, 0
    %p86 = por %p84, %p85
    %p87 = scmp.ne.s32.totalorder %s79, %s81
    %p88 = scmp.eq.s32.totalorder %s15, 1
    %p89 = por %p87, %p88
    %p90 = scmp.ne.s32.totalorder %s81, %s82
    %p91 = scmp.eq.s32.totalorder %s15, 0
    %p92 = por %p90, %p91
    %p93 = scmp.ne.s32.totalorder %s81, %s82
    %p94 = scmp.eq.s32.totalorder %s16, 1
    %p95 = por %p93, %p94
    %p97 = scmp.ne.s32.totalorder %s82, %s96
    %p98 = scmp.eq.s32.totalorder %s16, 0
    %p99 = por %p97, %p98
    %s101 = sadd.s32 %s100, 1
    %p104 = scmp.eq.s32.totalorder %s10, 1
    %p105 = scmp.ne.s32.totalorder %s100, %s102
    %p106 = scmp.eq.s32.totalorder %s10, 0
    %p107 = por %p105, %p106
    %p108 = scmp.ne.s32.totalorder %s100, %s102
    %p109 = scmp.eq.s32.totalorder %s15, 1
    %p110 = por %p108, %p109
    %p111 = scmp.ne.s32.totalorder %s102, %s103
    %p112 = scmp.eq.s32.totalorder %s15, 0
    %p113 = por %p111, %p112
    %p114 = scmp.ne.s32.totalorder %s102, %s103
    %p115 = scmp.eq.s32.totalorder %s16, 1
    %p116 = por %p114, %p115
    %p118 = scmp.ne.s32.totalorder %s103, %s117
    %p119 = scmp.eq.s32.totalorder %s16, 0
    %p120 = por %p118, %p119
    %s121 = ssub.s32 %s17, %s29
    %s122 = ssub.s32 %s18, %s25
    %s123 = sor.u32 %s121, %s122
    %p124 = scmp.eq.s32.totalorder %s123, 0
    %s126 = sadd.s32 %s125, 1
    %s127 = scalar_select %p124, %s125, %s126
    %p130 = pneg %p124
    %p131 = scmp.eq.s32.totalorder %s10, 1
    %p132 = por %p130, %p131
    %p133 = scmp.ne.s32.totalorder %s125, %s128
    %p134 = scmp.eq.s32.totalorder %s10, 0
    %p135 = por %p133, %p134
    %p136 = scmp.ne.s32.totalorder %s125, %s128
    %p137 = scmp.eq.s32.totalorder %s15, 1
    %p138 = por %p136, %p137
    %p139 = scmp.ne.s32.totalorder %s128, %s129
    %p140 = scmp.eq.s32.totalorder %s15, 0
    %p141 = por %p139, %p140
    %p142 = scmp.ne.s32.totalorder %s128, %s129
    %p143 = scmp.eq.s32.totalorder %s16, 1
    %p144 = por %p142, %p143
    %p146 = scmp.ne.s32.totalorder %s129, %s145
    %p147 = scmp.eq.s32.totalorder %s16, 0
    %p148 = por %p146, %p147
    %p149 = scmp.le.s32.totalorder 1, %s10
    %p150 = scmp.lt.s32.totalorder %s10, 3
    %p151 = pnand %p149, %p150
    %p152 = pneg %p151
    // Predicated region
    $region9: #{efficientnet_features_forward.15} parent=5 // pred_check
      _
    $region10: #{efficientnet_features_forward.15} parent=5 // pred_check_branch
      %154 = sbr.rel (%p151) target = $region12
    $region11: #{efficientnet_features_forward.15} parent=5 // pred_region
      %s155 = ssub.s32 %s10, 1
      // Predicated region
      $region13: #{efficientnet_features_forward.15} parent=11 // pred_check
        %p156 = pneg %p71
      $region14: #{efficientnet_features_forward.15} parent=11 // pred_check_branch
        %158 = sbr.rel (%p156) target = $region16
      $region15: #{efficientnet_features_forward.15} parent=11 // pred_region
        _
      $region16: #{efficientnet_features_forward.15} parent=11 // pred_fallthru
        _
      // Predicated region
      $region17: #{efficientnet_features_forward.15} parent=11 // pred_check
        %p159 = pneg %p92
      $region18: #{efficientnet_features_forward.15} parent=11 // pred_check_branch
        %161 = sbr.rel (%p159) target = $region20
      $region19: #{efficientnet_features_forward.15} parent=11 // pred_region
        _
      $region20: #{efficientnet_features_forward.15} parent=11 // pred_fallthru
        _
      // Predicated region
      $region21: #{efficientnet_features_forward.15} parent=11 // pred_check
        %p162 = pneg %p113
      $region22: #{efficientnet_features_forward.15} parent=11 // pred_check_branch
        %164 = sbr.rel (%p162) target = $region24
      $region23: #{efficientnet_features_forward.15} parent=11 // pred_region
        _
      $region24: #{efficientnet_features_forward.15} parent=11 // pred_fallthru
        _
    $region12: #{efficientnet_features_forward.15} parent=5 // pred_fallthru
      _
    %p165 = scmp.lt.s32.totalorder %s10, 2
    // Predicated region
    $region25: #{efficientnet_features_forward.15} parent=5 // pred_check
      %p166 = pneg %p165
    $region26: #{efficientnet_features_forward.15} parent=5 // pred_check_branch
      %168 = sbr.rel (%p166) target = $region28
    $region27: #{efficientnet_features_forward.15} parent=5 // pred_region
      // Predicated region
      $region29: #{efficientnet_features_forward.15} parent=27 // pred_check
        %p169 = pneg %p44
      $region30: #{efficientnet_features_forward.15} parent=27 // pred_check_branch
        %171 = sbr.rel (%p169) target = $region32
      $region31: #{efficientnet_features_forward.15} parent=27 // pred_region
        %s172 = smul.u32 2, %s18
        %p173 = scmp.lt.s32.totalorder %s17, 1
        %s174 = scalar_select %p173, %s17, 1
        %p175 = scmp.lt.s32.totalorder %s172, 1
        %s176 = scalar_select %p175, %s172, 1
        %s177 = smul.addr %s174, 2
        %s178 = sadd.s32 %s176, %s177
        %s179 = smul.addr %s178, 4
        %s180 = scalar_lea.vmem %s0, %s179
        %s181 = smul.u32 2, %s18
      $region32: #{efficientnet_features_forward.15} parent=27 // pred_fallthru
        _
    $region28: #{efficientnet_features_forward.15} parent=5 // pred_fallthru
      _
    %p182 = scmp.le.s32.totalorder 1, %s10
    %p183 = scmp.lt.s32.totalorder %s10, 3
    %p184 = pnand %p182, %p183
    %p185 = pneg %p184
    // Predicated region
    $region33: #{efficientnet_features_forward.15} parent=5 // pred_check
      _
    $region34: #{efficientnet_features_forward.15} parent=5 // pred_check_branch
      %187 = sbr.rel (%p184) target = $region36
    $region35: #{efficientnet_features_forward.15} parent=5 // pred_region
      %s188 = ssub.s32 %s10, 1
      %s189 = smul.u32 2, %s20
      %p190 = scmp.lt.s32.totalorder %s19, 1
      %s191 = scalar_select %p190, %s19, 1
      %p192 = scmp.lt.s32.totalorder %s189, 1
      %s193 = scalar_select %p192, %s189, 1
      %s194 = smul.addr %s191, 2
      %s195 = sadd.s32 %s193, %s194
      %s196 = smul.addr %s195, 4
      %s197 = scalar_lea.vmem %s0, %s196
      %p198 = pneg %p50
      %p199 = pneg %p47
      %p200 = pneg %p71
      %p201 = pneg %p68
      %p202 = pneg %p92
      %p203 = pneg %p89
      %p204 = pneg %p113
      %p205 = pneg %p110
      %p206 = pneg %p141
      %p207 = pneg %p138
      %s208 = smul.u32 2, %s20
      %p209 = scmp.lt.s32.totalorder %s19, 1
      %s210 = scalar_select %p209, %s19, 1
      %p211 = scmp.lt.s32.totalorder %s208, 1
      %s212 = scalar_select %p211, %s208, 1
      %s213 = smul.addr %s212, 2
      %s214 = smul.addr %s210, 4
      %s215 = sadd.s32 %s213, %s214
      %s216 = smul.addr %s215, 4
      %s217 = scalar_lea.vmem %s4, %s216
      %s218 = smul.u32 2, %s20
      %p219 = scmp.lt.s32.totalorder %s19, 1
      %s220 = scalar_select %p219, %s19, 1
      %p221 = scmp.lt.s32.totalorder %s218, 1
      %s222 = scalar_select %p221, %s218, 1
      %s223 = smul.addr %s220, 2
      %s224 = sadd.s32 %s222, %s223
      %s225 = smul.addr %s224, 4
      %s226 = scalar_lea.vmem %s0, %s225
      %s227 = smul.u32 2, %s20
      %s228 = smul.u32 2, %s20
      %p229 = scmp.lt.s32.totalorder %s19, 1
      %s230 = scalar_select %p229, %s19, 1
      %p231 = scmp.lt.s32.totalorder %s228, 1
      %s232 = scalar_select %p231, %s228, 1
      %s233 = smul.addr %s232, 2
      %s234 = smul.addr %s230, 4
      %s235 = sadd.s32 %s233, %s234
      %s236 = smul.addr %s235, 4
      %s237 = scalar_lea.vmem %s4, %s236
      %s238 = smul.u32 2, %s20
      %v240 = vld [vmem:[%s226] sm:$0xf]
      %v241 = vld [vmem:[%s226 + $0x4] sm:$0xf]
      %v242 = vld [vmem:[%s1] sm:$0xff]
      %v243 = vld [vmem:[%s1 + $0x8] sm:$0xff]
      %v244 = vld [vmem:[%s1 + $0x10] sm:$0xff]
      %v247 = vunpack.c.l.b16 %v240
      %v248 = vunpack.c.l.b16 %v241
      %v249 = vpack.c.b16 %v248, %v247
      %v253 = vunpack.c.l.b16 %v242
      %v254 = vunpack.c.h.b16 %v242
      %v255 = vunpack.c.l.b16 %v243
      %v256 = vunpack.c.h.b16 %v243
      %v257 = vunpack.c.l.b16 %v244
      %v258 = vunpack.c.h.b16 %v244
      %v259 = vpack.c.b16 %v255, %v253
      %v260 = vpack.c.b16 %v256, %v254
      %v261 = vpack.c.b16 %v257, %v257
      %v262 = vpack.c.b16 %v258, %v258
      %vm265 = vcmask 195584
      %v267 = vsel %vm265, %v249, 0
      %vm269 = vcmask 1043456
      %v271 = vsel %vm269, %v261, 0
      %v274 = vsel %vm269, %v262, 0
      %276 = vmatprep.subr.bf16.mxu0 %v260
      %277 = vmatpush1.bf16.msra.mxu0 %v259
      %278 = vmatprep.subr.bf16.mxu0 %v274
      %279 = vmatpush1.bf16.msra.mxu0 %v271
      %280 = vmatprep.subr.bf16.mxu0 0
      %281 = vmatpush1.bf16.msra.mxu0 0
      %282 = vmatprep.subr.bf16.mxu0 0
      %283 = vmatpush1.bf16.msra.mxu0 0
      %284 = vmatprep.subr.bf16.mxu0 0
      %285 = vmatpush1.bf16.msra.mxu0 0
      %286 = vmatprep.subr.bf16.mxu0 0
      %287 = vmatpush1.bf16.msra.mxu0 0
      %288 = vmatprep.subr.bf16.mxu0 0
      %289 = vmatpush1.bf16.msra.mxu0 0
      %290 = vmatprep.subr.bf16.mxu0 0
      %291 = vmatpush1.bf16.msra.mxu0 0
      %292 = vmatprep.subr.bf16.mxu0 0
      %293 = vmatpush1.bf16.msra.mxu0 0
      %294 = vmatprep.subr.bf16.mxu0 0
      %295 = vmatpush1.bf16.msra.mxu0 0
      %296 = vmatprep.subr.bf16.mxu0 0
      %297 = vmatpush1.bf16.msra.mxu0 0
      %298 = vmatprep.subr.bf16.mxu0 0
      %299 = vmatpush1.bf16.msra.mxu0 0
      %300 = vmatprep.subr.bf16.mxu0 0
      %301 = vmatpush1.bf16.msra.mxu0 0
      %302 = vmatprep.subr.bf16.mxu0 0
      %303 = vmatpush1.bf16.msra.mxu0 0
      %304 = vmatprep.subr.bf16.mxu0 0
      %305 = vmatpush1.bf16.msra.mxu0 0
      %306 = vmatprep.subr.bf16.mxu0 0
      %307 = vmatpush1.bf16.msra.mxu0 0
      %308 = vmatprep.mubr.bf16.mxu0 0
      %309 = vmatmul.mubr.bf16.gmra.mrb[0].mxu0 %v267
      %v310 = vpop.f32.mrb[0].mxu0
      %v311 = vadd.f32 0.0, %v310
      %v312 = vpop.f32.mrb[0].mxu0
      %v313 = vadd.f32 0.0, %v312
      %v314 = vpop.f32.mrb[0].mxu0
      %v315 = vadd.f32 0.0, %v314
      %v316 = vpop.f32.mrb[0].mxu0
      %v317 = vadd.f32 0.0, %v316
      %318 = vdwg.mxu0
      %v319 = vld [vmem:[%s2] sm:$0x3]
      %v321 = vlaneseq
      %v322 = vshrl.u32 %v321, 7
      %v323 = vsub.s32 0, %v322
      %v324 = vrot.slane %v319, %v323
      %v325 = vlaneseq
      %v326 = vshrl.u32 %v325, 7
      %v327 = vsub.s32 1, %v326
      %v328 = vrot.slane %v319, %v327
      %v331 = vmul.f32 %v311, %v324
      %v332 = vmul.f32 %v313, %v328
      %v333 = vmul.f32 %v315, %v324
      %v334 = vmul.f32 %v317, %v328
      %v335 = vld [vmem:[%s3] sm:$0x3]
      %v337 = vlaneseq
      %v338 = vshrl.u32 %v337, 7
      %v339 = vsub.s32 0, %v338
      %v340 = vrot.slane %v335, %v339
      %v341 = vlaneseq
      %v342 = vshrl.u32 %v341, 7
      %v343 = vsub.s32 1, %v342
      %v344 = vrot.slane %v335, %v343
      %v347 = vadd.f32 %v331, %v340
      %v348 = vadd.f32 %v332, %v344
      %v349 = vadd.f32 %v333, %v340
      %v350 = vadd.f32 %v334, %v344
      %v351 = vmax.f32 %v347, 0.0
      %v352 = vmax.f32 %v348, 0.0
      %v353 = vmax.f32 %v349, 0.0
      %v354 = vmax.f32 %v350, 0.0
      %v355 = vpack.c.bf16 %v353, %v351
      %v356 = vpack.c.bf16 %v354, %v352
      %v359 = vunpack.c.l.b16 %v355
      %v360 = vunpack.c.l.b16 %v356
      %v361 = vunpack.c.h.b16 %v355
      %v362 = vunpack.c.h.b16 %v356
      %v363 = vpack.c.b16 %v360, %v359
      %v364 = vpack.c.b16 %v362, %v361
      %vm367 = vcmask 130052
      %vm368 = vmor %vm367, %vm269
      %369 = vst.msk [vmem:[%s237] sm:$0xff] %vm368, %v363
      %370 = vst.msk [vmem:[%s237 + $0x8] sm:$0xff] %vm368, %v364
      %s371 = smul.u32 2, %s20
      %p372 = scmp.lt.s32.totalorder %s19, 1
      %s373 = scalar_select %p372, %s19, 1
      %p374 = scmp.lt.s32.totalorder %s371, 1
      %s375 = scalar_select %p374, %s371, 1
      %s376 = smul.addr %s375, 2
      %s377 = smul.addr %s373, 4
      %s378 = sadd.s32 %s376, %s377
      %s379 = smul.addr %s378, 4
      %s380 = scalar_lea.vmem %s4, %s379
      // Predicated region
      $region37: #{efficientnet_features_forward.15} parent=35 // pred_check
        %p381 = pneg %p138
      $region38: #{efficientnet_features_forward.15} parent=35 // pred_check_branch
        %383 = sbr.rel (%p381) target = $region40
      $region39: #{efficientnet_features_forward.15} parent=35 // pred_region
        %s384 = smul.u32 2, %s20
      $region40: #{efficientnet_features_forward.15} parent=35 // pred_fallthru
        _
    $region36: #{efficientnet_features_forward.15} parent=5 // pred_fallthru
      _
    %p385 = scmp.le.s32.totalorder 2, %s10
    // Predicated region
    $region41: #{efficientnet_features_forward.15} parent=5 // pred_check
      %p386 = pneg %p385
    $region42: #{efficientnet_features_forward.15} parent=5 // pred_check_branch
      %388 = sbr.rel (%p386) target = $region44
    $region43: #{efficientnet_features_forward.15} parent=5 // pred_region
      %s389 = ssub.s32 %s10, 2
      // Predicated region
      $region45: #{efficientnet_features_forward.15} parent=43 // pred_check
        %p390 = pneg %p144
      $region46: #{efficientnet_features_forward.15} parent=43 // pred_check_branch
        %392 = sbr.rel (%p390) target = $region48
      $region47: #{efficientnet_features_forward.15} parent=43 // pred_region
        %s393 = smul.u32 2, %s22
        %p394 = scmp.lt.s32.totalorder %s21, 1
        %s395 = scalar_select %p394, %s21, 1
        %p396 = scmp.lt.s32.totalorder %s393, 1
        %s397 = scalar_select %p396, %s393, 1
        %s398 = smul.addr %s397, 2
        %s399 = smul.addr %s395, 4
        %s400 = sadd.s32 %s398, %s399
        %s401 = smul.addr %s400, 4
        %s402 = scalar_lea.vmem %s4, %s401
      $region48: #{efficientnet_features_forward.15} parent=43 // pred_fallthru
        _
    $region44: #{efficientnet_features_forward.15} parent=5 // pred_fallthru
      _
  $region6: #{efficientnet_features_forward.15} parent=0 // loop_footer
    %s14 = sadd.s32 1, %s10
  $region7: #{efficientnet_features_forward.15} parent=0 // loop_footer_branch
    %9 = sbr.rel target = $region3
  $region8: #{efficientnet_features_forward.15} parent=0 // loop_exit
    _

// kernel: efficientnet_features_forward.13
$region0: #{efficientnet_features_forward.13}
  #allocation0 [shape = 'u32[]', space=smem, size = 0x4, offset = 0x4, fixed_abs, tag = 'smem constant byte address 0x4 - core index']
  #allocation1 [shape = 'u32[144,128]{1,0:T(1,128)}', space=vmem, size = 0x12000, scoped, tag = 'internal scratch']
  %s0 = inlined_call_operand.vmem [shape: bf16[2,5,5,96], index: 0, kind: input, shape index: {}]
  %s1 = inlined_call_operand.vmem [shape: bf16[2,5,5,96], index: 1, kind: input, shape index: {}]
  %s2 = inlined_call_operand.vmem [shape: bf16[2,5,5,96], index: 2, kind: input, shape index: {}]
  %s3 = inlined_call_operand.vmem [shape: bf16[2,5,5,96], index: 3, kind: input, shape index: {}]
  %s4 = inlined_call_operand.vmem [shape: bf16[9,96], index: 4, kind: input, shape index: {}]
  %s5 = inlined_call_operand.vmem [shape: f32[1,96], index: 5, kind: input, shape index: {}]
  %s6 = inlined_call_operand.vmem [shape: f32[1,96], index: 6, kind: input, shape index: {}]
  %s7 = inlined_call_operand.vmem [shape: bf16[2,4,4,96], index: 7, kind: output, shape index: {0}]
  %s8 = inlined_call_operand.vmem [shape: f32[2,1,96], index: 8, kind: output, shape index: {1}]
  %9 = xla_tuple %s7, %s8
  %s10 = sld [smem:[#allocation0]]
  $region69: #{efficientnet_features_forward.13} parent=0
    _
  %s12 = ssub.s32 1, %s10
  %s13 = scalar_select 0, %s12, %s10
  loop: start=0, step=1, limit=4
  $region2: #{efficientnet_features_forward.13} parent=0 // loop_pre_header
    _
  $region3: #{efficientnet_features_forward.13} parent=0 // loop_header
    %s15 = sphi 0, %s19
    %p16 = scmp.ge.s32.totalorder %s15, 4
    %s25 = sphi 0, %s27
    %s28 = sphi 0, %s25
    %s29 = sphi 0, %s28
    %s45 = sphi 0, %s29
    %s51 = sphi 0, %s53
    %s54 = sphi 0, %s51
    %s55 = sphi 0, %s54
    %s71 = sphi 0, %s55
    %s77 = sphi 0, %s79
    %s80 = sphi 0, %s77
    %s81 = sphi 0, %s80
    %s97 = sphi 0, %s81
    %s103 = sphi 0, %s105
    %s106 = sphi 0, %s103
    %s107 = sphi 0, %s106
    %s123 = sphi 0, %s107
    %s127 = sphi 0, %s127
    %s129 = sphi 0, %s127
    %s130 = sphi 0, %s129
    %s144 = sphi 0, %s130
    %s148 = sphi 0, %s148
    %s150 = sphi 0, %s148
    %s151 = sphi 0, %s150
    %s165 = sphi 0, %s151
    %s169 = sphi 0, %s169
    %s171 = sphi 0, %s169
    %s172 = sphi 0, %s171
    %s186 = sphi 0, %s172
    %s192 = sphi 0, %s194
    %s195 = sphi 0, %s192
    %s196 = sphi 0, %s195
    %s212 = sphi 0, %s196
    %s218 = sphi 0, %s220
    %s221 = sphi 0, %s218
    %s222 = sphi 0, %s221
    %s238 = sphi 0, %s222
  $region4: #{efficientnet_features_forward.13} parent=0 // loop_header_branch
    %18 = sbr.rel (%p16) target = $region8
  $region5: #{efficientnet_features_forward.13} parent=0 // loop_body
    %s20 = ssub.s32 %s15, 1
    %s21 = ssub.s32 %s15, 2
    %s22 = sadd.s32 %s15, 1
    %s23 = ssub.s32 %s15, %s22
    %p24 = scmp.eq.s32.totalorder %s23, 0
    %s26 = sadd.s32 %s25, 1
    %s27 = scalar_select %p24, %s25, %s26
    %p30 = pneg %p24
    %p31 = scmp.eq.s32.totalorder %s15, 1
    %p32 = por %p30, %p31
    %p33 = scmp.ne.s32.totalorder %s25, %s28
    %p34 = scmp.eq.s32.totalorder %s15, 0
    %p35 = por %p33, %p34
    %p36 = scmp.ne.s32.totalorder %s25, %s28
    %p37 = scmp.eq.s32.totalorder %s20, 1
    %p38 = por %p36, %p37
    %p39 = scmp.ne.s32.totalorder %s28, %s29
    %p40 = scmp.eq.s32.totalorder %s20, 0
    %p41 = por %p39, %p40
    %p42 = scmp.ne.s32.totalorder %s28, %s29
    %p43 = scmp.eq.s32.totalorder %s21, 1
    %p44 = por %p42, %p43
    %p46 = scmp.ne.s32.totalorder %s29, %s45
    %p47 = scmp.eq.s32.totalorder %s21, 0
    %p48 = por %p46, %p47
    %s49 = ssub.s32 %s15, %s22
    %p50 = scmp.eq.s32.totalorder %s49, 0
    %s52 = sadd.s32 %s51, 1
    %s53 = scalar_select %p50, %s51, %s52
    %p56 = pneg %p50
    %p57 = scmp.eq.s32.totalorder %s15, 1
    %p58 = por %p56, %p57
    %p59 = scmp.ne.s32.totalorder %s51, %s54
    %p60 = scmp.eq.s32.totalorder %s15, 0
    %p61 = por %p59, %p60
    %p62 = scmp.ne.s32.totalorder %s51, %s54
    %p63 = scmp.eq.s32.totalorder %s20, 1
    %p64 = por %p62, %p63
    %p65 = scmp.ne.s32.totalorder %s54, %s55
    %p66 = scmp.eq.s32.totalorder %s20, 0
    %p67 = por %p65, %p66
    %p68 = scmp.ne.s32.totalorder %s54, %s55
    %p69 = scmp.eq.s32.totalorder %s21, 1
    %p70 = por %p68, %p69
    %p72 = scmp.ne.s32.totalorder %s55, %s71
    %p73 = scmp.eq.s32.totalorder %s21, 0
    %p74 = por %p72, %p73
    %s75 = ssub.s32 %s15, %s22
    %p76 = scmp.eq.s32.totalorder %s75, 0
    %s78 = sadd.s32 %s77, 1
    %s79 = scalar_select %p76, %s77, %s78
    %p82 = pneg %p76
    %p83 = scmp.eq.s32.totalorder %s15, 1
    %p84 = por %p82, %p83
    %p85 = scmp.ne.s32.totalorder %s77, %s80
    %p86 = scmp.eq.s32.totalorder %s15, 0
    %p87 = por %p85, %p86
    %p88 = scmp.ne.s32.totalorder %s77, %s80
    %p89 = scmp.eq.s32.totalorder %s20, 1
    %p90 = por %p88, %p89
    %p91 = scmp.ne.s32.totalorder %s80, %s81
    %p92 = scmp.eq.s32.totalorder %s20, 0
    %p93 = por %p91, %p92
    %p94 = scmp.ne.s32.totalorder %s80, %s81
    %p95 = scmp.eq.s32.totalorder %s21, 1
    %p96 = por %p94, %p95
    %p98 = scmp.ne.s32.totalorder %s81, %s97
    %p99 = scmp.eq.s32.totalorder %s21, 0
    %p100 = por %p98, %p99
    %s101 = ssub.s32 %s15, %s22
    %p102 = scmp.eq.s32.totalorder %s101, 0
    %s104 = sadd.s32 %s103, 1
    %s105 = scalar_select %p102, %s103, %s104
    %p108 = pneg %p102
    %p109 = scmp.eq.s32.totalorder %s15, 1
    %p110 = por %p108, %p109
    %p111 = scmp.ne.s32.totalorder %s103, %s106
    %p112 = scmp.eq.s32.totalorder %s15, 0
    %p113 = por %p111, %p112
    %p114 = scmp.ne.s32.totalorder %s103, %s106
    %p115 = scmp.eq.s32.totalorder %s20, 1
    %p116 = por %p114, %p115
    %p117 = scmp.ne.s32.totalorder %s106, %s107
    %p118 = scmp.eq.s32.totalorder %s20, 0
    %p119 = por %p117, %p118
    %p120 = scmp.ne.s32.totalorder %s106, %s107
    %p121 = scmp.eq.s32.totalorder %s21, 1
    %p122 = por %p120, %p121
    %p124 = scmp.ne.s32.totalorder %s107, %s123
    %p125 = scmp.eq.s32.totalorder %s21, 0
    %p126 = por %p124, %p125
    %s128 = sadd.s32 %s127, 1
    %p131 = scmp.eq.s32.totalorder %s15, 1
    %p132 = scmp.ne.s32.totalorder %s127, %s129
    %p133 = scmp.eq.s32.totalorder %s15, 0
    %p134 = por %p132, %p133
    %p135 = scmp.ne.s32.totalorder %s127, %s129
    %p136 = scmp.eq.s32.totalorder %s20, 1
    %p137 = por %p135, %p136
    %p138 = scmp.ne.s32.totalorder %s129, %s130
    %p139 = scmp.eq.s32.totalorder %s20, 0
    %p140 = por %p138, %p139
    %p141 = scmp.ne.s32.totalorder %s129, %s130
    %p142 = scmp.eq.s32.totalorder %s21, 1
    %p143 = por %p141, %p142
    %p145 = scmp.ne.s32.totalorder %s130, %s144
    %p146 = scmp.eq.s32.totalorder %s21, 0
    %p147 = por %p145, %p146
    %s149 = sadd.s32 %s148, 1
    %p152 = scmp.eq.s32.totalorder %s15, 1
    %p153 = scmp.ne.s32.totalorder %s148, %s150
    %p154 = scmp.eq.s32.totalorder %s15, 0
    %p155 = por %p153, %p154
    %p156 = scmp.ne.s32.totalorder %s148, %s150
    %p157 = scmp.eq.s32.totalorder %s20, 1
    %p158 = por %p156, %p157
    %p159 = scmp.ne.s32.totalorder %s150, %s151
    %p160 = scmp.eq.s32.totalorder %s20, 0
    %p161 = por %p159, %p160
    %p162 = scmp.ne.s32.totalorder %s150, %s151
    %p163 = scmp.eq.s32.totalorder %s21, 1
    %p164 = por %p162, %p163
    %p166 = scmp.ne.s32.totalorder %s151, %s165
    %p167 = scmp.eq.s32.totalorder %s21, 0
    %p168 = por %p166, %p167
    %s170 = sadd.s32 %s169, 1
    %p173 = scmp.eq.s32.totalorder %s15, 1
    %p174 = scmp.ne.s32.totalorder %s169, %s171
    %p175 = scmp.eq.s32.totalorder %s15, 0
    %p176 = por %p174, %p175
    %p177 = scmp.ne.s32.totalorder %s169, %s171
    %p178 = scmp.eq.s32.totalorder %s20, 1
    %p179 = por %p177, %p178
    %p180 = scmp.ne.s32.totalorder %s171, %s172
    %p181 = scmp.eq.s32.totalorder %s20, 0
    %p182 = por %p180, %p181
    %p183 = scmp.ne.s32.totalorder %s171, %s172
    %p184 = scmp.eq.s32.totalorder %s21, 1
    %p185 = por %p183, %p184
    %p187 = scmp.ne.s32.totalorder %s172, %s186
    %p188 = scmp.eq.s32.totalorder %s21, 0
    %p189 = por %p187, %p188
    %s190 = ssub.s32 %s15, %s22
    %p191 = scmp.eq.s32.totalorder %s190, 0
    %s193 = sadd.s32 %s192, 1
    %s194 = scalar_select %p191, %s192, %s193
    %p197 = pneg %p191
    %p198 = scmp.eq.s32.totalorder %s15, 1
    %p199 = por %p197, %p198
    %p200 = scmp.ne.s32.totalorder %s192, %s195
    %p201 = scmp.eq.s32.totalorder %s15, 0
    %p202 = por %p200, %p201
    %p203 = scmp.ne.s32.totalorder %s192, %s195
    %p204 = scmp.eq.s32.totalorder %s20, 1
    %p205 = por %p203, %p204
    %p206 = scmp.ne.s32.totalorder %s195, %s196
    %p207 = scmp.eq.s32.totalorder %s20, 0
    %p208 = por %p206, %p207
    %p209 = scmp.ne.s32.totalorder %s195, %s196
    %p210 = scmp.eq.s32.totalorder %s21, 1
    %p211 = por %p209, %p210
    %p213 = scmp.ne.s32.totalorder %s196, %s212
    %p214 = scmp.eq.s32.totalorder %s21, 0
    %p215 = por %p213, %p214
    %s216 = ssub.s32 %s15, %s22
    %p217 = scmp.eq.s32.totalorder %s216, 0
    %s219 = sadd.s32 %s218, 1
    %s220 = scalar_select %p217, %s218, %s219
    %p223 = pneg %p217
    %p224 = scmp.eq.s32.totalorder %s15, 1
    %p225 = por %p223, %p224
    %p226 = scmp.ne.s32.totalorder %s218, %s221
    %p227 = scmp.eq.s32.totalorder %s15, 0
    %p228 = por %p226, %p227
    %p229 = scmp.ne.s32.totalorder %s218, %s221
    %p230 = scmp.eq.s32.totalorder %s20, 1
    %p231 = por %p229, %p230
    %p232 = scmp.ne.s32.totalorder %s221, %s222
    %p233 = scmp.eq.s32.totalorder %s20, 0
    %p234 = por %p232, %p233
    %p235 = scmp.ne.s32.totalorder %s221, %s222
    %p236 = scmp.eq.s32.totalorder %s21, 1
    %p237 = por %p235, %p236
    %p239 = scmp.ne.s32.totalorder %s222, %s238
    %p240 = scmp.eq.s32.totalorder %s21, 0
    %p241 = por %p239, %p240
    %p242 = scmp.le.s32.totalorder 1, %s15
    %p243 = scmp.lt.s32.totalorder %s15, 3
    %p244 = pnand %p242, %p243
    %p245 = pneg %p244
    // Predicated region
    $region9: #{efficientnet_features_forward.13} parent=5 // pred_check
      _
    $region10: #{efficientnet_features_forward.13} parent=5 // pred_check_branch
      %247 = sbr.rel (%p244) target = $region12
    $region11: #{efficientnet_features_forward.13} parent=5 // pred_region
      %s248 = ssub.s32 %s15, 1
      // Predicated region
      $region13: #{efficientnet_features_forward.13} parent=11 // pred_check
        %p249 = pneg %p140
      $region14: #{efficientnet_features_forward.13} parent=11 // pred_check_branch
        %251 = sbr.rel (%p249) target = $region16
      $region15: #{efficientnet_features_forward.13} parent=11 // pred_region
        _
      $region16: #{efficientnet_features_forward.13} parent=11 // pred_fallthru
        _
      // Predicated region
      $region17: #{efficientnet_features_forward.13} parent=11 // pred_check
        %p252 = pneg %p161
      $region18: #{efficientnet_features_forward.13} parent=11 // pred_check_branch
        %254 = sbr.rel (%p252) target = $region20
      $region19: #{efficientnet_features_forward.13} parent=11 // pred_region
        _
      $region20: #{efficientnet_features_forward.13} parent=11 // pred_fallthru
        _
      // Predicated region
      $region21: #{efficientnet_features_forward.13} parent=11 // pred_check
        %p255 = pneg %p182
      $region22: #{efficientnet_features_forward.13} parent=11 // pred_check_branch
        %257 = sbr.rel (%p255) target = $region24
      $region23: #{efficientnet_features_forward.13} parent=11 // pred_region
        _
      $region24: #{efficientnet_features_forward.13} parent=11 // pred_fallthru
        _
    $region12: #{efficientnet_features_forward.13} parent=5 // pred_fallthru
      _
    %p258 = scmp.lt.s32.totalorder %s15, 2
    // Predicated region
    $region25: #{efficientnet_features_forward.13} parent=5 // pred_check
      %p259 = pneg %p258
    $region26: #{efficientnet_features_forward.13} parent=5 // pred_check_branch
      %261 = sbr.rel (%p259) target = $region28
    $region27: #{efficientnet_features_forward.13} parent=5 // pred_region
      // Predicated region
      $region29: #{efficientnet_features_forward.13} parent=27 // pred_check
        %p262 = pneg %p35
      $region30: #{efficientnet_features_forward.13} parent=27 // pred_check_branch
        %264 = sbr.rel (%p262) target = $region32
      $region31: #{efficientnet_features_forward.13} parent=27 // pred_region
        %p265 = scmp.lt.s32.totalorder %s15, 1
        %s266 = scalar_select %p265, %s15, 1
        %s267 = smul.addr %s266, 5
        %s268 = smul.addr %s267, 4
        %s269 = scalar_lea.vmem %s0, %s268
      $region32: #{efficientnet_features_forward.13} parent=27 // pred_fallthru
        _
      // Predicated region
      $region33: #{efficientnet_features_forward.13} parent=27 // pred_check
        %p270 = pneg %p61
      $region34: #{efficientnet_features_forward.13} parent=27 // pred_check_branch
        %272 = sbr.rel (%p270) target = $region36
      $region35: #{efficientnet_features_forward.13} parent=27 // pred_region
        %p273 = scmp.lt.s32.totalorder %s15, 1
        %s274 = scalar_select %p273, %s15, 1
        %s275 = smul.addr %s274, 5
        %s276 = smul.addr %s275, 4
        %s277 = scalar_lea.vmem %s1, %s276
      $region36: #{efficientnet_features_forward.13} parent=27 // pred_fallthru
        _
      // Predicated region
      $region37: #{efficientnet_features_forward.13} parent=27 // pred_check
        %p278 = pneg %p87
      $region38: #{efficientnet_features_forward.13} parent=27 // pred_check_branch
        %280 = sbr.rel (%p278) target = $region40
      $region39: #{efficientnet_features_forward.13} parent=27 // pred_region
        %p281 = scmp.lt.s32.totalorder %s15, 1
        %s282 = scalar_select %p281, %s15, 1
        %s283 = smul.addr %s282, 5
        %s284 = smul.addr %s283, 4
        %s285 = scalar_lea.vmem %s2, %s284
      $region40: #{efficientnet_features_forward.13} parent=27 // pred_fallthru
        _
      // Predicated region
      $region41: #{efficientnet_features_forward.13} parent=27 // pred_check
        %p286 = pneg %p113
      $region42: #{efficientnet_features_forward.13} parent=27 // pred_check_branch
        %288 = sbr.rel (%p286) target = $region44
      $region43: #{efficientnet_features_forward.13} parent=27 // pred_region
        %p289 = scmp.lt.s32.totalorder %s15, 1
        %s290 = scalar_select %p289, %s15, 1
        %s291 = smul.addr %s290, 5
        %s292 = smul.addr %s291, 4
        %s293 = scalar_lea.vmem %s3, %s292
      $region44: #{efficientnet_features_forward.13} parent=27 // pred_fallthru
        _
    $region28: #{efficientnet_features_forward.13} parent=5 // pred_fallthru
      _
    %p294 = scmp.le.s32.totalorder 1, %s15
    %p295 = scmp.lt.s32.totalorder %s15, 3
    %p296 = pnand %p294, %p295
    %p297 = pneg %p296
    // Predicated region
    $region45: #{efficientnet_features_forward.13} parent=5 // pred_check
      _
    $region46: #{efficientnet_features_forward.13} parent=5 // pred_check_branch
      %299 = sbr.rel (%p296) target = $region48
    $region47: #{efficientnet_features_forward.13} parent=5 // pred_region
      %s300 = ssub.s32 %s15, 1
      %p301 = scmp.lt.s32.totalorder %s20, 1
      %s302 = scalar_select %p301, %s20, 1
      %s303 = smul.addr %s302, 5
      %s304 = smul.addr %s303, 4
      %s305 = scalar_lea.vmem %s0, %s304
      %p306 = pneg %p41
      %p307 = pneg %p38
      %p308 = scmp.lt.s32.totalorder %s20, 1
      %s309 = scalar_select %p308, %s20, 1
      %s310 = smul.addr %s309, 5
      %s311 = smul.addr %s310, 4
      %s312 = scalar_lea.vmem %s1, %s311
      %p313 = pneg %p67
      %p314 = pneg %p64
      %p315 = scmp.lt.s32.totalorder %s20, 1
      %s316 = scalar_select %p315, %s20, 1
      %s317 = smul.addr %s316, 5
      %s318 = smul.addr %s317, 4
      %s319 = scalar_lea.vmem %s2, %s318
      %p320 = pneg %p93
      %p321 = pneg %p90
      %p322 = scmp.lt.s32.totalorder %s20, 1
      %s323 = scalar_select %p322, %s20, 1
      %s324 = smul.addr %s323, 5
      %s325 = smul.addr %s324, 4
      %s326 = scalar_lea.vmem %s3, %s325
      %p327 = pneg %p119
      %p328 = pneg %p116
      %p329 = pneg %p140
      %p330 = pneg %p137
      %p331 = pneg %p161
      %p332 = pneg %p158
      %p333 = pneg %p182
      %p334 = pneg %p179
      %p335 = pneg %p208
      %p336 = pneg %p205
      %p337 = scmp.lt.s32.totalorder %s20, 1
      %s338 = scalar_select %p337, %s20, 1
      %s339 = smul.addr %s338, 4
      %s340 = smul.addr %s339, 2
      %s341 = scalar_lea.vmem %s7, %s340
      %p342 = pneg %p234
      %p343 = pneg %p231
      %p344 = scmp.lt.s32.totalorder %s20, 1
      %s345 = scalar_select %p344, %s20, 1
      %s346 = scalar_lea.vmem %s8, %s345
      %p347 = scmp.lt.s32.totalorder %s20, 1
      %s348 = scalar_select %p347, %s20, 1
      %s349 = smul.addr %s348, 5
      %s350 = smul.addr %s349, 4
      %s351 = scalar_lea.vmem %s0, %s350
      %p352 = scmp.lt.s32.totalorder %s20, 1
      %s353 = scalar_select %p352, %s20, 1
      %s354 = smul.addr %s353, 5
      %s355 = smul.addr %s354, 4
      %s356 = scalar_lea.vmem %s1, %s355
      %p357 = scmp.lt.s32.totalorder %s20, 1
      %s358 = scalar_select %p357, %s20, 1
      %s359 = smul.addr %s358, 5
      %s360 = smul.addr %s359, 4
      %s361 = scalar_lea.vmem %s2, %s360
      %p362 = scmp.lt.s32.totalorder %s20, 1
      %s363 = scalar_select %p362, %s20, 1
      %s364 = smul.addr %s363, 5
      %s365 = smul.addr %s364, 4
      %s366 = scalar_lea.vmem %s3, %s365
      %p367 = scmp.lt.s32.totalorder %s20, 1
      %s368 = scalar_select %p367, %s20, 1
      %s369 = smul.addr %s368, 4
      %s370 = smul.addr %s369, 2
      %s371 = scalar_lea.vmem %s7, %s370
      %p372 = scmp.lt.s32.totalorder %s20, 1
      %s373 = scalar_select %p372, %s20, 1
      %s374 = scalar_lea.vmem %s8, %s373
      %v375 = vld [vmem:[%s351] sm:$0x7]
      %v376 = vld [vmem:[%s351 + $0x4] sm:$0x7]
      %v377 = vld [vmem:[%s351 + $0x8] sm:$0x7]
      %v378 = vld [vmem:[%s351 + $0xc] sm:$0x7]
      %v379 = vld [vmem:[%s351 + $0x10] sm:$0x7]
      %v380 = vunpack.c.l.bf16 %v375
      %v381 = vunpack.c.l.bf16 %v376
      %v382 = vunpack.c.l.bf16 %v377
      %v383 = vunpack.c.l.bf16 %v378
      %v384 = vunpack.c.l.bf16 %v379
      %v385 = vld [vmem:[%s356] sm:$0x7]
      %v386 = vld [vmem:[%s356 + $0x4] sm:$0x7]
      %v387 = vld [vmem:[%s356 + $0x8] sm:$0x7]
      %v388 = vld [vmem:[%s356 + $0xc] sm:$0x7]
      %v389 = vld [vmem:[%s356 + $0x10] sm:$0x7]
      %v390 = vunpack.c.l.bf16 %v385
      %v391 = vunpack.c.l.bf16 %v386
      %v392 = vunpack.c.l.bf16 %v387
      %v393 = vunpack.c.l.bf16 %v388
      %v394 = vunpack.c.l.bf16 %v389
      %v395 = vld [vmem:[%s361] sm:$0x7]
      %v396 = vld [vmem:[%s361 + $0x4] sm:$0x7]
      %v397 = vld [vmem:[%s361 + $0x8] sm:$0x7]
      %v398 = vld [vmem:[%s361 + $0xc] sm:$0x7]
      %v399 = vunpack.c.l.bf16 %v395
      %v400 = vunpack.c.l.bf16 %v396
      %v401 = vunpack.c.l.bf16 %v397
      %v402 = vunpack.c.l.bf16 %v398
      %v403 = vld [vmem:[%s366] sm:$0x7]
      %v404 = vld [vmem:[%s366 + $0x4] sm:$0x7]
      %v405 = vld [vmem:[%s366 + $0x8] sm:$0x7]
      %v406 = vld [vmem:[%s366 + $0xc] sm:$0x7]
      %v407 = vunpack.c.l.bf16 %v403
      %v408 = vunpack.c.l.bf16 %v404
      %v409 = vunpack.c.l.bf16 %v405
      %v410 = vunpack.c.l.bf16 %v406
      %v411 = vld [vmem:[%s4] sm:$0xf]
      %v412 = vld [vmem:[%s4 + $0x4] sm:$0x1]
      %v413 = vunpack.c.l.bf16 %v411
      %v414 = vunpack.c.l.bf16 %v412
      %v415 = vlaneseq
      %v416 = vshrl.u32 %v415, 7
      %v417 = vsub.s32 0, %v416
      %v418 = vrot.slane %v413, %v417
      %v419 = vmul.f32 %v380, %v418
      %v420 = vmul.f32 %v381, %v418
      %v421 = vmul.f32 %v382, %v418
      %v422 = vmul.f32 %v383, %v418
      %v423 = vadd.f32 %v419, 0.0
      %v424 = vadd.f32 %v420, 0.0
      %v425 = vadd.f32 %v421, 0.0
      %v426 = vadd.f32 %v422, 0.0
      %v427 = vlaneseq
      %v428 = vshrl.u32 %v427, 7
      %v429 = vsub.s32 1, %v428
      %v430 = vrot.slane %v413, %v429
      %v431 = vmul.f32 %v390, %v430
      %v432 = vmul.f32 %v391, %v430
      %v433 = vmul.f32 %v392, %v430
      %v434 = vmul.f32 %v393, %v430
      %v435 = vadd.f32 %v423, %v431
      %v436 = vadd.f32 %v424, %v432
      %v437 = vadd.f32 %v425, %v433
      %v438 = vadd.f32 %v426, %v434
      %v439 = vlaneseq
      %v440 = vshrl.u32 %v439, 7
      %v441 = vsub.s32 2, %v440
      %v442 = vrot.slane %v413, %v441
      %v443 = vmul.f32 %v380, %v442
      %v444 = vmul.f32 %v381, %v442
      %v445 = vmul.f32 %v382, %v442
      %v446 = vmul.f32 %v383, %v442
      %v451 = vrot.slane %v443, 1
      %v452 = vrot.slane %v444, 1
      %v453 = vrot.slane %v445, 1
      %v454 = vrot.slane %v446, 1
      %v459 = vadd.f32 %v435, %v451
      %v460 = vadd.f32 %v436, %v452
      %v461 = vadd.f32 %v437, %v453
      %v462 = vadd.f32 %v438, %v454
      %v463 = vlaneseq
      %v464 = vshrl.u32 %v463, 7
      %v465 = vsub.s32 3, %v464
      %v466 = vrot.slane %v413, %v465
      %v467 = vmul.f32 %v399, %v466
      %v468 = vmul.f32 %v400, %v466
      %v469 = vmul.f32 %v401, %v466
      %v470 = vmul.f32 %v402, %v466
      %v471 = vadd.f32 %v459, %v467
      %v472 = vadd.f32 %v460, %v468
      %v473 = vadd.f32 %v461, %v469
      %v474 = vadd.f32 %v462, %v470
      %v475 = vlaneseq
      %v476 = vshrl.u32 %v475, 7
      %v477 = vsub.s32 4, %v476
      %v478 = vrot.slane %v413, %v477
      %v479 = vmul.f32 %v407, %v478
      %v480 = vmul.f32 %v408, %v478
      %v481 = vmul.f32 %v409, %v478
      %v482 = vmul.f32 %v410, %v478
      %v483 = vadd.f32 %v471, %v479
      %v484 = vadd.f32 %v472, %v480
      %v485 = vadd.f32 %v473, %v481
      %v486 = vadd.f32 %v474, %v482
      %v487 = vlaneseq
      %v488 = vshrl.u32 %v487, 7
      %v489 = vsub.s32 5, %v488
      %v490 = vrot.slane %v413, %v489
      %v491 = vmul.f32 %v399, %v490
      %v492 = vmul.f32 %v400, %v490
      %v493 = vmul.f32 %v401, %v490
      %v494 = vmul.f32 %v402, %v490
      %v499 = vrot.slane %v491, 1
      %v500 = vrot.slane %v492, 1
      %v501 = vrot.slane %v493, 1
      %v502 = vrot.slane %v494, 1
      %v507 = vadd.f32 %v483, %v499
      %v508 = vadd.f32 %v484, %v500
      %v509 = vadd.f32 %v485, %v501
      %v510 = vadd.f32 %v486, %v502
      %v511 = vlaneseq
      %v512 = vshrl.u32 %v511, 7
      %v513 = vsub.s32 6, %v512
      %v514 = vrot.slane %v413, %v513
      %v515 = vmul.f32 %v381, %v514
      %v516 = vmul.f32 %v382, %v514
      %v517 = vmul.f32 %v383, %v514
      %v518 = vmul.f32 %v384, %v514
      %v519 = vadd.f32 %v507, %v515
      %v520 = vadd.f32 %v508, %v516
      %v521 = vadd.f32 %v509, %v517
      %v522 = vadd.f32 %v510, %v518
      %v523 = vlaneseq
      %v524 = vshrl.u32 %v523, 7
      %v525 = vsub.s32 7, %v524
      %v526 = vrot.slane %v413, %v525
      %v527 = vmul.f32 %v391, %v526
      %v528 = vmul.f32 %v392, %v526
      %v529 = vmul.f32 %v393, %v526
      %v530 = vmul.f32 %v394, %v526
      %v531 = vadd.f32 %v519, %v527
      %v532 = vadd.f32 %v520, %v528
      %v533 = vadd.f32 %v521, %v529
      %v534 = vadd.f32 %v522, %v530
      %v535 = vlaneseq
      %v536 = vshrl.u32 %v535, 7
      %v537 = vsub.s32 0, %v536
      %v538 = vrot.slane %v414, %v537
      %v539 = vmul.f32 %v381, %v538
      %v540 = vmul.f32 %v382, %v538
      %v541 = vmul.f32 %v383, %v538
      %v542 = vmul.f32 %v384, %v538
      %v547 = vrot.slane %v539, 1
      %v548 = vrot.slane %v540, 1
      %v549 = vrot.slane %v541, 1
      %v550 = vrot.slane %v542, 1
      %v555 = vadd.f32 %v531, %v547
      %v556 = vadd.f32 %v532, %v548
      %v557 = vadd.f32 %v533, %v549
      %v558 = vadd.f32 %v534, %v550
      %v559 = vld [vmem:[%s5] sm:$0x1]
      %v561 = vlaneseq
      %v562 = vshrl.u32 %v561, 7
      %v563 = vsub.s32 0, %v562
      %v564 = vrot.slane %v559, %v563
      %v566 = vmul.f32 %v555, %v564
      %v567 = vmul.f32 %v556, %v564
      %v568 = vmul.f32 %v557, %v564
      %v569 = vmul.f32 %v558, %v564
      %v570 = vld [vmem:[%s6] sm:$0x1]
      %v572 = vlaneseq
      %v573 = vshrl.u32 %v572, 7
      %v574 = vsub.s32 0, %v573
      %v575 = vrot.slane %v570, %v574
      %v577 = vadd.f32 %v566, %v575
      %v578 = vadd.f32 %v567, %v575
      %v579 = vadd.f32 %v568, %v575
      %v580 = vadd.f32 %v569, %v575
      %v581 = vmax.f32 %v577, 0.0
      %v582 = vmax.f32 %v578, 0.0
      %v583 = vmax.f32 %v579, 0.0
      %v584 = vmax.f32 %v580, 0.0
      %v585 = vpack.c.bf16 %v581, %v581
      %v586 = vpack.c.bf16 %v582, %v582
      %v587 = vpack.c.bf16 %v583, %v583
      %v588 = vpack.c.bf16 %v584, %v584
      %vm589 = vcmask 779264
      %590 = vst.msk [vmem:[%s371] sm:$0x3] %vm589, %v585
      %591 = vst.msk [vmem:[%s371 + $0x2] sm:$0x3] %vm589, %v586
      %592 = vst.msk [vmem:[%s371 + $0x4] sm:$0x3] %vm589, %v587
      %593 = vst.msk [vmem:[%s371 + $0x6] sm:$0x3] %vm589, %v588
      %vm594 = vcmask 781312
      %v595 = vsel %vm594, %v581, 0.0
      %v596 = vsel %vm594, %v582, 0.0
      %v597 = vadd.f32 %v595, %v596
      %v598 = vsel %vm594, %v583, 0.0
      %v599 = vadd.f32 %v597, %v598
      %v600 = vsel %vm594, %v584, 0.0
      %v601 = vadd.f32 %v599, %v600
      %v602 = vrot.slane %v601, 4
      %v603 = vadd.f32 %v601, %v602
      %v604 = vrot.slane %v603, 2
      %v605 = vadd.f32 %v603, %v604
      %v606 = vrot.slane %v605, 1
      %v607 = vadd.f32 %v605, %v606
      %v608 = vrcp.pop 16.0
      %v609 = vmul.f32 %v607, %v608
      %vm610 = vcmask 778240
      %611 = vst.msk [vmem:[%s374] sm:$0x1] %vm610, %v609
      %p612 = scmp.lt.s32.totalorder %s20, 1
      %s613 = scalar_select %p612, %s20, 1
      %s614 = smul.addr %s613, 4
      %s615 = smul.addr %s614, 2
      %s616 = scalar_lea.vmem %s7, %s615
      %p617 = scmp.lt.s32.totalorder %s20, 1
      %s618 = scalar_select %p617, %s20, 1
      %s619 = scalar_lea.vmem %s8, %s618
      // Predicated region
      $region49: #{efficientnet_features_forward.13} parent=47 // pred_check
        %p620 = pneg %p205
      $region50: #{efficientnet_features_forward.13} parent=47 // pred_check_branch
        %622 = sbr.rel (%p620) target = $region52
      $region51: #{efficientnet_features_forward.13} parent=47 // pred_region
        _
      $region52: #{efficientnet_features_forward.13} parent=47 // pred_fallthru
        _
      // Predicated region
      $region53: #{efficientnet_features_forward.13} parent=47 // pred_check
        %p623 = pneg %p231
      $region54: #{efficientnet_features_forward.13} parent=47 // pred_check_branch
        %625 = sbr.rel (%p623) target = $region56
      $region55: #{efficientnet_features_forward.13} parent=47 // pred_region
        _
      $region56: #{efficientnet_features_forward.13} parent=47 // pred_fallthru
        _
    $region48: #{efficientnet_features_forward.13} parent=5 // pred_fallthru
      _
    %p626 = scmp.le.s32.totalorder 2, %s15
    // Predicated region
    $region57: #{efficientnet_features_forward.13} parent=5 // pred_check
      %p627 = pneg %p626
    $region58: #{efficientnet_features_forward.13} parent=5 // pred_check_branch
      %629 = sbr.rel (%p627) target = $region60
    $region59: #{efficientnet_features_forward.13} parent=5 // pred_region
      %s630 = ssub.s32 %s15, 2
      // Predicated region
      $region61: #{efficientnet_features_forward.13} parent=59 // pred_check
        %p631 = pneg %p211
      $region62: #{efficientnet_features_forward.13} parent=59 // pred_check_branch
        %633 = sbr.rel (%p631) target = $region64
      $region63: #{efficientnet_features_forward.13} parent=59 // pred_region
        %p634 = scmp.lt.s32.totalorder %s21, 1
        %s635 = scalar_select %p634, %s21, 1
        %s636 = smul.addr %s635, 4
        %s637 = smul.addr %s636, 2
        %s638 = scalar_lea.vmem %s7, %s637
      $region64: #{efficientnet_features_forward.13} parent=59 // pred_fallthru
        _
      // Predicated region
      $region65: #{efficientnet_features_forward.13} parent=59 // pred_check
        %p639 = pneg %p237
      $region66: #{efficientnet_features_forward.13} parent=59 // pred_check_branch
        %641 = sbr.rel (%p639) target = $region68
      $region67: #{efficientnet_features_forward.13} parent=59 // pred_region
        %p642 = scmp.lt.s32.totalorder %s21, 1
        %s643 = scalar_select %p642, %s21, 1
        %s644 = scalar_lea.vmem %s8, %s643
      $region68: #{efficientnet_features_forward.13} parent=59 // pred_fallthru
        _
    $region60: #{efficientnet_features_forward.13} parent=5 // pred_fallthru
      _
  $region6: #{efficientnet_features_forward.13} parent=0 // loop_footer
    %s19 = sadd.s32 1, %s15
  $region7: #{efficientnet_features_forward.13} parent=0 // loop_footer_branch
    %14 = sbr.rel target = $region3
  $region8: #{efficientnet_features_forward.13} parent=0 // loop_exit
    _

// kernel: efficientnet_features_forward.16
$region0: #{efficientnet_features_forward.16}
  #allocation0 [shape = 'u32[]', space=smem, size = 0x4, offset = 0x4, fixed_abs, tag = 'smem constant byte address 0x4 - core index']
  #allocation1 [shape = 'u32[144,128]{1,0:T(1,128)}', space=vmem, size = 0x12000, scoped, tag = 'internal scratch']
  %s0 = inlined_call_operand.vmem [shape: bf16[2,6,6,144], index: 0, kind: input, shape index: {}]
  %s1 = inlined_call_operand.vmem [shape: bf16[9,144], index: 1, kind: input, shape index: {}]
  %s2 = inlined_call_operand.vmem [shape: f32[1,144], index: 2, kind: input, shape index: {}]
  %s3 = inlined_call_operand.vmem [shape: f32[1,144], index: 3, kind: input, shape index: {}]
  %s4 = inlined_call_operand.vmem [shape: bf16[2,4,4,144], index: 4, kind: output, shape index: {0}]
  %s5 = inlined_call_operand.vmem [shape: f32[2,1,144], index: 5, kind: output, shape index: {1}]
  %6 = xla_tuple %s4, %s5
  %s7 = sld [smem:[#allocation0]]
  $region57: #{efficientnet_features_forward.16} parent=0
    _
  %s9 = ssub.s32 1, %s7
  %s10 = scalar_select 0, %s9, %s7
  loop: start=0, step=1, limit=4
  $region2: #{efficientnet_features_forward.16} parent=0 // loop_pre_header
    _
  $region3: #{efficientnet_features_forward.16} parent=0 // loop_header
    %s12 = sphi 0, %s16
    %p13 = scmp.ge.s32.totalorder %s12, 4
    %s22 = sphi 0, %s24
    %s25 = sphi 0, %s22
    %s26 = sphi 0, %s25
    %s42 = sphi 0, %s26
    %s46 = sphi 0, %s46
    %s48 = sphi 0, %s46
    %s49 = sphi 0, %s48
    %s63 = sphi 0, %s49
    %s67 = sphi 0, %s67
    %s69 = sphi 0, %s67
    %s70 = sphi 0, %s69
    %s84 = sphi 0, %s70
    %s88 = sphi 0, %s88
    %s90 = sphi 0, %s88
    %s91 = sphi 0, %s90
    %s105 = sphi 0, %s91
    %s111 = sphi 0, %s113
    %s114 = sphi 0, %s111
    %s115 = sphi 0, %s114
    %s131 = sphi 0, %s115
    %s137 = sphi 0, %s139
    %s140 = sphi 0, %s137
    %s141 = sphi 0, %s140
    %s157 = sphi 0, %s141
  $region4: #{efficientnet_features_forward.16} parent=0 // loop_header_branch
    %15 = sbr.rel (%p13) target = $region8
  $region5: #{efficientnet_features_forward.16} parent=0 // loop_body
    %s17 = ssub.s32 %s12, 1
    %s18 = ssub.s32 %s12, 2
    %s19 = sadd.s32 %s12, 1
    %s20 = ssub.s32 %s12, %s19
    %p21 = scmp.eq.s32.totalorder %s20, 0
    %s23 = sadd.s32 %s22, 1
    %s24 = scalar_select %p21, %s22, %s23
    %p27 = pneg %p21
    %p28 = scmp.eq.s32.totalorder %s12, 1
    %p29 = por %p27, %p28
    %p30 = scmp.ne.s32.totalorder %s22, %s25
    %p31 = scmp.eq.s32.totalorder %s12, 0
    %p32 = por %p30, %p31
    %p33 = scmp.ne.s32.totalorder %s22, %s25
    %p34 = scmp.eq.s32.totalorder %s17, 1
    %p35 = por %p33, %p34
    %p36 = scmp.ne.s32.totalorder %s25, %s26
    %p37 = scmp.eq.s32.totalorder %s17, 0
    %p38 = por %p36, %p37
    %p39 = scmp.ne.s32.totalorder %s25, %s26
    %p40 = scmp.eq.s32.totalorder %s18, 1
    %p41 = por %p39, %p40
    %p43 = scmp.ne.s32.totalorder %s26, %s42
    %p44 = scmp.eq.s32.totalorder %s18, 0
    %p45 = por %p43, %p44
    %s47 = sadd.s32 %s46, 1
    %p50 = scmp.eq.s32.totalorder %s12, 1
    %p51 = scmp.ne.s32.totalorder %s46, %s48
    %p52 = scmp.eq.s32.totalorder %s12, 0
    %p53 = por %p51, %p52
    %p54 = scmp.ne.s32.totalorder %s46, %s48
    %p55 = scmp.eq.s32.totalorder %s17, 1
    %p56 = por %p54, %p55
    %p57 = scmp.ne.s32.totalorder %s48, %s49
    %p58 = scmp.eq.s32.totalorder %s17, 0
    %p59 = por %p57, %p58
    %p60 = scmp.ne.s32.totalorder %s48, %s49
    %p61 = scmp.eq.s32.totalorder %s18, 1
    %p62 = por %p60, %p61
    %p64 = scmp.ne.s32.totalorder %s49, %s63
    %p65 = scmp.eq.s32.totalorder %s18, 0
    %p66 = por %p64, %p65
    %s68 = sadd.s32 %s67, 1
    %p71 = scmp.eq.s32.totalorder %s12, 1
    %p72 = scmp.ne.s32.totalorder %s67, %s69
    %p73 = scmp.eq.s32.totalorder %s12, 0
    %p74 = por %p72, %p73
    %p75 = scmp.ne.s32.totalorder %s67, %s69
    %p76 = scmp.eq.s32.totalorder %s17, 1
    %p77 = por %p75, %p76
    %p78 = scmp.ne.s32.totalorder %s69, %s70
    %p79 = scmp.eq.s32.totalorder %s17, 0
    %p80 = por %p78, %p79
    %p81 = scmp.ne.s32.totalorder %s69, %s70
    %p82 = scmp.eq.s32.totalorder %s18, 1
    %p83 = por %p81, %p82
    %p85 = scmp.ne.s32.totalorder %s70, %s84
    %p86 = scmp.eq.s32.totalorder %s18, 0
    %p87 = por %p85, %p86
    %s89 = sadd.s32 %s88, 1
    %p92 = scmp.eq.s32.totalorder %s12, 1
    %p93 = scmp.ne.s32.totalorder %s88, %s90
    %p94 = scmp.eq.s32.totalorder %s12, 0
    %p95 = por %p93, %p94
    %p96 = scmp.ne.s32.totalorder %s88, %s90
    %p97 = scmp.eq.s32.totalorder %s17, 1
    %p98 = por %p96, %p97
    %p99 = scmp.ne.s32.totalorder %s90, %s91
    %p100 = scmp.eq.s32.totalorder %s17, 0
    %p101 = por %p99, %p100
    %p102 = scmp.ne.s32.totalorder %s90, %s91
    %p103 = scmp.eq.s32.totalorder %s18, 1
    %p104 = por %p102, %p103
    %p106 = scmp.ne.s32.totalorder %s91, %s105
    %p107 = scmp.eq.s32.totalorder %s18, 0
    %p108 = por %p106, %p107
    %s109 = ssub.s32 %s12, %s19
    %p110 = scmp.eq.s32.totalorder %s109, 0
    %s112 = sadd.s32 %s111, 1
    %s113 = scalar_select %p110, %s111, %s112
    %p116 = pneg %p110
    %p117 = scmp.eq.s32.totalorder %s12, 1
    %p118 = por %p116, %p117
    %p119 = scmp.ne.s32.totalorder %s111, %s114
    %p120 = scmp.eq.s32.totalorder %s12, 0
    %p121 = por %p119, %p120
    %p122 = scmp.ne.s32.totalorder %s111, %s114
    %p123 = scmp.eq.s32.totalorder %s17, 1
    %p124 = por %p122, %p123
    %p125 = scmp.ne.s32.totalorder %s114, %s115
    %p126 = scmp.eq.s32.totalorder %s17, 0
    %p127 = por %p125, %p126
    %p128 = scmp.ne.s32.totalorder %s114, %s115
    %p129 = scmp.eq.s32.totalorder %s18, 1
    %p130 = por %p128, %p129
    %p132 = scmp.ne.s32.totalorder %s115, %s131
    %p133 = scmp.eq.s32.totalorder %s18, 0
    %p134 = por %p132, %p133
    %s135 = ssub.s32 %s12, %s19
    %p136 = scmp.eq.s32.totalorder %s135, 0
    %s138 = sadd.s32 %s137, 1
    %s139 = scalar_select %p136, %s137, %s138
    %p142 = pneg %p136
    %p143 = scmp.eq.s32.totalorder %s12, 1
    %p144 = por %p142, %p143
    %p145 = scmp.ne.s32.totalorder %s137, %s140
    %p146 = scmp.eq.s32.totalorder %s12, 0
    %p147 = por %p145, %p146
    %p148 = scmp.ne.s32.totalorder %s137, %s140
    %p149 = scmp.eq.s32.totalorder %s17, 1
    %p150 = por %p148, %p149
    %p151 = scmp.ne.s32.totalorder %s140, %s141
    %p152 = scmp.eq.s32.totalorder %s17, 0
    %p153 = por %p151, %p152
    %p154 = scmp.ne.s32.totalorder %s140, %s141
    %p155 = scmp.eq.s32.totalorder %s18, 1
    %p156 = por %p154, %p155
    %p158 = scmp.ne.s32.totalorder %s141, %s157
    %p159 = scmp.eq.s32.totalorder %s18, 0
    %p160 = por %p158, %p159
    %p161 = scmp.le.s32.totalorder 1, %s12
    %p162 = scmp.lt.s32.totalorder %s12, 3
    %p163 = pnand %p161, %p162
    %p164 = pneg %p163
    // Predicated region
    $region9: #{efficientnet_features_forward.16} parent=5 // pred_check
      _
    $region10: #{efficientnet_features_forward.16} parent=5 // pred_check_branch
      %166 = sbr.rel (%p163) target = $region12
    $region11: #{efficientnet_features_forward.16} parent=5 // pred_region
      %s167 = ssub.s32 %s12, 1
      // Predicated region
      $region13: #{efficientnet_features_forward.16} parent=11 // pred_check
        %p168 = pneg %p59
      $region14: #{efficientnet_features_forward.16} parent=11 // pred_check_branch
        %170 = sbr.rel (%p168) target = $region16
      $region15: #{efficientnet_features_forward.16} parent=11 // pred_region
        _
      $region16: #{efficientnet_features_forward.16} parent=11 // pred_fallthru
        _
      // Predicated region
      $region17: #{efficientnet_features_forward.16} parent=11 // pred_check
        %p171 = pneg %p80
      $region18: #{efficientnet_features_forward.16} parent=11 // pred_check_branch
        %173 = sbr.rel (%p171) target = $region20
      $region19: #{efficientnet_features_forward.16} parent=11 // pred_region
        _
      $region20: #{efficientnet_features_forward.16} parent=11 // pred_fallthru
        _
      // Predicated region
      $region21: #{efficientnet_features_forward.16} parent=11 // pred_check
        %p174 = pneg %p101
      $region22: #{efficientnet_features_forward.16} parent=11 // pred_check_branch
        %176 = sbr.rel (%p174) target = $region24
      $region23: #{efficientnet_features_forward.16} parent=11 // pred_region
        _
      $region24: #{efficientnet_features_forward.16} parent=11 // pred_fallthru
        _
    $region12: #{efficientnet_features_forward.16} parent=5 // pred_fallthru
      _
    %p177 = scmp.lt.s32.totalorder %s12, 2
    // Predicated region
    $region25: #{efficientnet_features_forward.16} parent=5 // pred_check
      %p178 = pneg %p177
    $region26: #{efficientnet_features_forward.16} parent=5 // pred_check_branch
      %180 = sbr.rel (%p178) target = $region28
    $region27: #{efficientnet_features_forward.16} parent=5 // pred_region
      // Predicated region
      $region29: #{efficientnet_features_forward.16} parent=27 // pred_check
        %p181 = pneg %p32
      $region30: #{efficientnet_features_forward.16} parent=27 // pred_check_branch
        %183 = sbr.rel (%p181) target = $region32
      $region31: #{efficientnet_features_forward.16} parent=27 // pred_region
        %p184 = scmp.lt.s32.totalorder %s12, 1
        %s185 = scalar_select %p184, %s12, 1
        %s186 = smul.addr %s185, 12
        %s187 = smul.addr %s186, 4
        %s188 = scalar_lea.vmem %s0, %s187
      $region32: #{efficientnet_features_forward.16} parent=27 // pred_fallthru
        _
    $region28: #{efficientnet_features_forward.16} parent=5 // pred_fallthru
      _
    %p189 = scmp.le.s32.totalorder 1, %s12
    %p190 = scmp.lt.s32.totalorder %s12, 3
    %p191 = pnand %p189, %p190
    %p192 = pneg %p191
    // Predicated region
    $region33: #{efficientnet_features_forward.16} parent=5 // pred_check
      _
    $region34: #{efficientnet_features_forward.16} parent=5 // pred_check_branch
      %194 = sbr.rel (%p191) target = $region36
    $region35: #{efficientnet_features_forward.16} parent=5 // pred_region
      %s195 = ssub.s32 %s12, 1
      %p196 = scmp.lt.s32.totalorder %s17, 1
      %s197 = scalar_select %p196, %s17, 1
      %s198 = smul.addr %s197, 12
      %s199 = smul.addr %s198, 4
      %s200 = scalar_lea.vmem %s0, %s199
      %p201 = pneg %p38
      %p202 = pneg %p35
      %p203 = pneg %p59
      %p204 = pneg %p56
      %p205 = pneg %p80
      %p206 = pneg %p77
      %p207 = pneg %p101
      %p208 = pneg %p98
      %p209 = pneg %p127
      %p210 = pneg %p124
      %p211 = scmp.lt.s32.totalorder %s17, 1
      %s212 = scalar_select %p211, %s17, 1
      %s213 = smul.addr %s212, 8
      %s214 = smul.addr %s213, 2
      %s215 = scalar_lea.vmem %s4, %s214
      %p216 = pneg %p153
      %p217 = pneg %p150
      %p218 = scmp.lt.s32.totalorder %s17, 1
      %s219 = scalar_select %p218, %s17, 1
      %s220 = smul.addr %s219, 2
      %s221 = scalar_lea.vmem %s5, %s220
      %p222 = scmp.lt.s32.totalorder %s17, 1
      %s223 = scalar_select %p222, %s17, 1
      %s224 = smul.addr %s223, 12
      %s225 = smul.addr %s224, 4
      %s226 = scalar_lea.vmem %s0, %s225
      %p227 = scmp.lt.s32.totalorder %s17, 1
      %s228 = scalar_select %p227, %s17, 1
      %s229 = smul.addr %s228, 8
      %s230 = smul.addr %s229, 2
      %s231 = scalar_lea.vmem %s4, %s230
      %p232 = scmp.lt.s32.totalorder %s17, 1
      %s233 = scalar_select %p232, %s17, 1
      %s234 = smul.addr %s233, 2
      %s235 = scalar_lea.vmem %s5, %s234
      %v236 = vld [vmem:[%s226] sm:$0x77]
      %v237 = vld [vmem:[%s226 + $0x8] sm:$0x77]
      %v238 = vld [vmem:[%s226 + $0x10] sm:$0x77]
      %v239 = vld [vmem:[%s226 + $0x18] sm:$0x77]
      %v240 = vld [vmem:[%s226 + $0x20] sm:$0x77]
      %v241 = vld [vmem:[%s226 + $0x28] sm:$0x77]
      %v242 = vunpack.c.l.bf16 %v236
      %v243 = vunpack.c.h.bf16 %v236
      %v244 = vunpack.c.l.bf16 %v237
      %v245 = vunpack.c.h.bf16 %v237
      %v246 = vunpack.c.l.bf16 %v238
      %v247 = vunpack.c.h.bf16 %v238
      %v248 = vunpack.c.l.bf16 %v239
      %v249 = vunpack.c.h.bf16 %v239
      %v250 = vunpack.c.l.bf16 %v240
      %v251 = vunpack.c.h.bf16 %v240
      %v252 = vunpack.c.l.bf16 %v241
      %v253 = vunpack.c.h.bf16 %v241
      %v254 = vld [vmem:[%s1] sm:$0xff]
      %v255 = vld [vmem:[%s1 + $0x8] sm:$0x11]
      %v256 = vunpack.c.l.bf16 %v254
      %v257 = vunpack.c.h.bf16 %v254
      %v258 = vunpack.c.l.bf16 %v255
      %v259 = vunpack.c.h.bf16 %v255
      %v260 = vlaneseq
      %v261 = vshrl.u32 %v260, 7
      %v262 = vsub.s32 0, %v261
      %v263 = vrot.slane %v256, %v262
      %v264 = vlaneseq
      %v265 = vshrl.u32 %v264, 7
      %v266 = vsub.s32 0, %v265
      %v267 = vrot.slane %v257, %v266
      %v268 = vmul.f32 %v242, %v263
      %v269 = vmul.f32 %v243, %v267
      %v270 = vmul.f32 %v244, %v263
      %v271 = vmul.f32 %v245, %v267
      %v272 = vmul.f32 %v246, %v263
      %v273 = vmul.f32 %v247, %v267
      %v274 = vmul.f32 %v248, %v263
      %v275 = vmul.f32 %v249, %v267
      %v276 = vadd.f32 %v268, 0.0
      %v277 = vadd.f32 %v269, 0.0
      %v278 = vadd.f32 %v270, 0.0
      %v279 = vadd.f32 %v271, 0.0
      %v280 = vadd.f32 %v272, 0.0
      %v281 = vadd.f32 %v273, 0.0
      %v282 = vadd.f32 %v274, 0.0
      %v283 = vadd.f32 %v275, 0.0
      %v284 = vlaneseq
      %v285 = vshrl.u32 %v284, 7
      %v286 = vsub.s32 1, %v285
      %v287 = vrot.slane %v256, %v286
      %v288 = vlaneseq
      %v289 = vshrl.u32 %v288, 7
      %v290 = vsub.s32 1, %v289
      %v291 = vrot.slane %v257, %v290
      %v292 = vmul.f32 %v242, %v287
      %v293 = vmul.f32 %v243, %v291
      %v294 = vmul.f32 %v244, %v287
      %v295 = vmul.f32 %v245, %v291
      %v296 = vmul.f32 %v246, %v287
      %v297 = vmul.f32 %v247, %v291
      %v298 = vmul.f32 %v248, %v287
      %v299 = vmul.f32 %v249, %v291
      %v308 = vrot.slane %v292, 1
      %v309 = vrot.slane %v293, 1
      %v310 = vrot.slane %v294, 1
      %v311 = vrot.slane %v295, 1
      %v312 = vrot.slane %v296, 1
      %v313 = vrot.slane %v297, 1
      %v314 = vrot.slane %v298, 1
      %v315 = vrot.slane %v299, 1
      %v324 = vadd.f32 %v276, %v308
      %v325 = vadd.f32 %v277, %v309
      %v326 = vadd.f32 %v278, %v310
      %v327 = vadd.f32 %v279, %v311
      %v328 = vadd.f32 %v280, %v312
      %v329 = vadd.f32 %v281, %v313
      %v330 = vadd.f32 %v282, %v314
      %v331 = vadd.f32 %v283, %v315
      %v332 = vlaneseq
      %v333 = vshrl.u32 %v332, 7
      %v334 = vsub.s32 2, %v333
      %v335 = vrot.slane %v256, %v334
      %v336 = vlaneseq
      %v337 = vshrl.u32 %v336, 7
      %v338 = vsub.s32 2, %v337
      %v339 = vrot.slane %v257, %v338
      %v340 = vmul.f32 %v242, %v335
      %v341 = vmul.f32 %v243, %v339
      %v342 = vmul.f32 %v244, %v335
      %v343 = vmul.f32 %v245, %v339
      %v344 = vmul.f32 %v246, %v335
      %v345 = vmul.f32 %v247, %v339
      %v346 = vmul.f32 %v248, %v335
      %v347 = vmul.f32 %v249, %v339
      %v356 = vrot.slane %v340, 2
      %v357 = vrot.slane %v341, 2
      %v358 = vrot.slane %v342, 2
      %v359 = vrot.slane %v343, 2
      %v360 = vrot.slane %v344, 2
      %v361 = vrot.slane %v345, 2
      %v362 = vrot.slane %v346, 2
      %v363 = vrot.slane %v347, 2
      %v372 = vadd.f32 %v324, %v356
      %v373 = vadd.f32 %v325, %v357
      %v374 = vadd.f32 %v326, %v358
      %v375 = vadd.f32 %v327, %v359
      %v376 = vadd.f32 %v328, %v360
      %v377 = vadd.f32 %v329, %v361
      %v378 = vadd.f32 %v330, %v362
      %v379 = vadd.f32 %v331, %v363
      %v380 = vlaneseq
      %v381 = vshrl.u32 %v380, 7
      %v382 = vsub.s32 3, %v381
      %v383 = vrot.slane %v256, %v382
      %v384 = vlaneseq
      %v385 = vshrl.u32 %v384, 7
      %v386 = vsub.s32 3, %v385
      %v387 = vrot.slane %v257, %v386
      %v388 = vmul.f32 %v244, %v383
      %v389 = vmul.f32 %v245, %v387
      %v390 = vmul.f32 %v246, %v383
      %v391 = vmul.f32 %v247, %v387
      %v392 = vmul.f32 %v248, %v383
      %v393 = vmul.f32 %v249, %v387
      %v394 = vmul.f32 %v250, %v383
      %v395 = vmul.f32 %v251, %v387
      %v396 = vadd.f32 %v372, %v388
      %v397 = vadd.f32 %v373, %v389
      %v398 = vadd.f32 %v374, %v390
      %v399 = vadd.f32 %v375, %v391
      %v400 = vadd.f32 %v376, %v392
      %v401 = vadd.f32 %v377, %v393
      %v402 = vadd.f32 %v378, %v394
      %v403 = vadd.f32 %v379, %v395
      %v404 = vlaneseq
      %v405 = vshrl.u32 %v404, 7
      %v406 = vsub.s32 4, %v405
      %v407 = vrot.slane %v256, %v406
      %v408 = vlaneseq
      %v409 = vshrl.u32 %v408, 7
      %v410 = vsub.s32 4, %v409
      %v411 = vrot.slane %v257, %v410
      %v412 = vmul.f32 %v244, %v407
      %v413 = vmul.f32 %v245, %v411
      %v414 = vmul.f32 %v246, %v407
      %v415 = vmul.f32 %v247, %v411
      %v416 = vmul.f32 %v248, %v407
      %v417 = vmul.f32 %v249, %v411
      %v418 = vmul.f32 %v250, %v407
      %v419 = vmul.f32 %v251, %v411
      %v428 = vrot.slane %v412, 1
      %v429 = vrot.slane %v413, 1
      %v430 = vrot.slane %v414, 1
      %v431 = vrot.slane %v415, 1
      %v432 = vrot.slane %v416, 1
      %v433 = vrot.slane %v417, 1
      %v434 = vrot.slane %v418, 1
      %v435 = vrot.slane %v419, 1
      %v444 = vadd.f32 %v396, %v428
      %v445 = vadd.f32 %v397, %v429
      %v446 = vadd.f32 %v398, %v430
      %v447 = vadd.f32 %v399, %v431
      %v448 = vadd.f32 %v400, %v432
      %v449 = vadd.f32 %v401, %v433
      %v450 = vadd.f32 %v402, %v434
      %v451 = vadd.f32 %v403, %v435
      %v452 = vlaneseq
      %v453 = vshrl.u32 %v452, 7
      %v454 = vsub.s32 5, %v453
      %v455 = vrot.slane %v256, %v454
      %v456 = vlaneseq
      %v457 = vshrl.u32 %v456, 7
      %v458 = vsub.s32 5, %v457
      %v459 = vrot.slane %v257, %v458
      %v460 = vmul.f32 %v244, %v455
      %v461 = vmul.f32 %v245, %v459
      %v462 = vmul.f32 %v246, %v455
      %v463 = vmul.f32 %v247, %v459
      %v464 = vmul.f32 %v248, %v455
      %v465 = vmul.f32 %v249, %v459
      %v466 = vmul.f32 %v250, %v455
      %v467 = vmul.f32 %v251, %v459
      %v476 = vrot.slane %v460, 2
      %v477 = vrot.slane %v461, 2
      %v478 = vrot.slane %v462, 2
      %v479 = vrot.slane %v463, 2
      %v480 = vrot.slane %v464, 2
      %v481 = vrot.slane %v465, 2
      %v482 = vrot.slane %v466, 2
      %v483 = vrot.slane %v467, 2
      %v492 = vadd.f32 %v444, %v476
      %v493 = vadd.f32 %v445, %v477
      %v494 = vadd.f32 %v446, %v478
      %v495 = vadd.f32 %v447, %v479
      %v496 = vadd.f32 %v448, %v480
      %v497 = vadd.f32 %v449, %v481
      %v498 = vadd.f32 %v450, %v482
      %v499 = vadd.f32 %v451, %v483
      %v500 = vlaneseq
      %v501 = vshrl.u32 %v500, 7
      %v502 = vsub.s32 6, %v501
      %v503 = vrot.slane %v256, %v502
      %v504 = vlaneseq
      %v505 = vshrl.u32 %v504, 7
      %v506 = vsub.s32 6, %v505
      %v507 = vrot.slane %v257, %v506
      %v508 = vmul.f32 %v246, %v503
      %v509 = vmul.f32 %v247, %v507
      %v510 = vmul.f32 %v248, %v503
      %v511 = vmul.f32 %v249, %v507
      %v512 = vmul.f32 %v250, %v503
      %v513 = vmul.f32 %v251, %v507
      %v514 = vmul.f32 %v252, %v503
      %v515 = vmul.f32 %v253, %v507
      %v516 = vadd.f32 %v492, %v508
      %v517 = vadd.f32 %v493, %v509
      %v518 = vadd.f32 %v494, %v510
      %v519 = vadd.f32 %v495, %v511
      %v520 = vadd.f32 %v496, %v512
      %v521 = vadd.f32 %v497, %v513
      %v522 = vadd.f32 %v498, %v514
      %v523 = vadd.f32 %v499, %v515
      %v524 = vlaneseq
      %v525 = vshrl.u32 %v524, 7
      %v526 = vsub.s32 7, %v525
      %v527 = vrot.slane %v256, %v526
      %v528 = vlaneseq
      %v529 = vshrl.u32 %v528, 7
      %v530 = vsub.s32 7, %v529
      %v531 = vrot.slane %v257, %v530
      %v532 = vmul.f32 %v246, %v527
      %v533 = vmul.f32 %v247, %v531
      %v534 = vmul.f32 %v248, %v527
      %v535 = vmul.f32 %v249, %v531
      %v536 = vmul.f32 %v250, %v527
      %v537 = vmul.f32 %v251, %v531
      %v538 = vmul.f32 %v252, %v527
      %v539 = vmul.f32 %v253, %v531
      %v548 = vrot.slane %v532, 1
      %v549 = vrot.slane %v533, 1
      %v550 = vrot.slane %v534, 1
      %v551 = vrot.slane %v535, 1
      %v552 = vrot.slane %v536, 1
      %v553 = vrot.slane %v537, 1
      %v554 = vrot.slane %v538, 1
      %v555 = vrot.slane %v539, 1
      %v564 = vadd.f32 %v516, %v548
      %v565 = vadd.f32 %v517, %v549
      %v566 = vadd.f32 %v518, %v550
      %v567 = vadd.f32 %v519, %v551
      %v568 = vadd.f32 %v520, %v552
      %v569 = vadd.f32 %v521, %v553
      %v570 = vadd.f32 %v522, %v554
      %v571 = vadd.f32 %v523, %v555
      %v572 = vlaneseq
      %v573 = vshrl.u32 %v572, 7
      %v574 = vsub.s32 0, %v573
      %v575 = vrot.slane %v258, %v574
      %v576 = vlaneseq
      %v577 = vshrl.u32 %v576, 7
      %v578 = vsub.s32 0, %v577
      %v579 = vrot.slane %v259, %v578
      %v580 = vmul.f32 %v246, %v575
      %v581 = vmul.f32 %v247, %v579
      %v582 = vmul.f32 %v248, %v575
      %v583 = vmul.f32 %v249, %v579
      %v584 = vmul.f32 %v250, %v575
      %v585 = vmul.f32 %v251, %v579
      %v586 = vmul.f32 %v252, %v575
      %v587 = vmul.f32 %v253, %v579
      %v596 = vrot.slane %v580, 2
      %v597 = vrot.slane %v581, 2
      %v598 = vrot.slane %v582, 2
      %v599 = vrot.slane %v583, 2
      %v600 = vrot.slane %v584, 2
      %v601 = vrot.slane %v585, 2
      %v602 = vrot.slane %v586, 2
      %v603 = vrot.slane %v587, 2
      %v612 = vadd.f32 %v564, %v596
      %v613 = vadd.f32 %v565, %v597
      %v614 = vadd.f32 %v566, %v598
      %v615 = vadd.f32 %v567, %v599
      %v616 = vadd.f32 %v568, %v600
      %v617 = vadd.f32 %v569, %v601
      %v618 = vadd.f32 %v570, %v602
      %v619 = vadd.f32 %v571, %v603
      %v620 = vld [vmem:[%s2] sm:$0x3]
      %v622 = vlaneseq
      %v623 = vshrl.u32 %v622, 7
      %v624 = vsub.s32 0, %v623
      %v625 = vrot.slane %v620, %v624
      %v626 = vlaneseq
      %v627 = vshrl.u32 %v626, 7
      %v628 = vsub.s32 1, %v627
      %v629 = vrot.slane %v620, %v628
      %v632 = vmul.f32 %v612, %v625
      %v633 = vmul.f32 %v613, %v629
      %v634 = vmul.f32 %v614, %v625
      %v635 = vmul.f32 %v615, %v629
      %v636 = vmul.f32 %v616, %v625
      %v637 = vmul.f32 %v617, %v629
      %v638 = vmul.f32 %v618, %v625
      %v639 = vmul.f32 %v619, %v629
      %v640 = vld [vmem:[%s3] sm:$0x3]
      %v642 = vlaneseq
      %v643 = vshrl.u32 %v642, 7
      %v644 = vsub.s32 0, %v643
      %v645 = vrot.slane %v640, %v644
      %v646 = vlaneseq
      %v647 = vshrl.u32 %v646, 7
      %v648 = vsub.s32 1, %v647
      %v649 = vrot.slane %v640, %v648
      %v652 = vadd.f32 %v632, %v645
      %v653 = vadd.f32 %v633, %v649
      %v654 = vadd.f32 %v634, %v645
      %v655 = vadd.f32 %v635, %v649
      %v656 = vadd.f32 %v636, %v645
      %v657 = vadd.f32 %v637, %v649
      %v658 = vadd.f32 %v638, %v645
      %v659 = vadd.f32 %v639, %v649
      %v660 = vmax.f32 %v652, 0.0
      %v661 = vmax.f32 %v653, 0.0
      %v662 = vmax.f32 %v654, 0.0
      %v663 = vmax.f32 %v655, 0.0
      %v664 = vmax.f32 %v656, 0.0
      %v665 = vmax.f32 %v657, 0.0
      %v666 = vmax.f32 %v658, 0.0
      %v667 = vmax.f32 %v659, 0.0
      %v668 = vpack.c.bf16 %v660, %v660
      %v669 = vpack.c.bf16 %v661, %v661
      %v670 = vpack.c.bf16 %v662, %v662
      %v671 = vpack.c.bf16 %v663, %v663
      %v672 = vpack.c.bf16 %v664, %v664
      %v673 = vpack.c.bf16 %v665, %v665
      %v674 = vpack.c.bf16 %v666, %v666
      %v675 = vpack.c.bf16 %v667, %v667
      %v684 = vcombine.low %v668, %v669
      %v686 = vunpack.c.l.s4 1983009808
      %v687 = vunpack.c.0.s8 %v686
      %v688 = vlaneseq
      %v689 = vshrl.u32 %v688, 7
      %v690 = vsub.s32 %v687, %v689
      %v691 = vrot.slane %v684, %v690
      %v692 = vcombine.low %v670, %v671
      %v694 = vunpack.c.l.s4 1983009808
      %v695 = vunpack.c.0.s8 %v694
      %v696 = vlaneseq
      %v697 = vshrl.u32 %v696, 7
      %v698 = vsub.s32 %v695, %v697
      %v699 = vrot.slane %v692, %v698
      %v700 = vcombine.low %v672, %v673
      %v702 = vunpack.c.l.s4 1983009808
      %v703 = vunpack.c.0.s8 %v702
      %v704 = vlaneseq
      %v705 = vshrl.u32 %v704, 7
      %v706 = vsub.s32 %v703, %v705
      %v707 = vrot.slane %v700, %v706
      %v708 = vcombine.low %v674, %v675
      %v710 = vunpack.c.l.s4 1983009808
      %v711 = vunpack.c.0.s8 %v710
      %v712 = vlaneseq
      %v713 = vshrl.u32 %v712, 7
      %v714 = vsub.s32 %v711, %v713
      %v715 = vrot.slane %v708, %v714
      %vm720 = vcmask 1041408
      %vm721 = vcmask 125954
      %vm722 = vmor %vm721, %vm720
      %723 = vst.msk [vmem:[%s231] sm:$0xf] %vm722, %v691
      %724 = vst.msk [vmem:[%s231 + $0x4] sm:$0xf] %vm722, %v699
      %725 = vst.msk [vmem:[%s231 + $0x8] sm:$0xf] %vm722, %v707
      %726 = vst.msk [vmem:[%s231 + $0xc] sm:$0xf] %vm722, %v715
      %vm727 = vcmask 1043456
      %v728 = vsel %vm727, %v660, 0.0
      %v729 = vsel %vm727, %v662, 0.0
      %v730 = vadd.f32 %v728, %v729
      %v731 = vsel %vm727, %v664, 0.0
      %v732 = vadd.f32 %v730, %v731
      %v733 = vsel %vm727, %v666, 0.0
      %v734 = vadd.f32 %v732, %v733
      %v735 = vrot.slane %v734, 4
      %v736 = vadd.f32 %v734, %v735
      %v737 = vrot.slane %v736, 2
      %v738 = vadd.f32 %v736, %v737
      %v739 = vrot.slane %v738, 1
      %v740 = vadd.f32 %v738, %v739
      %vm741 = vcmask 125952
      %v742 = vsel %vm741, %v661, 0.0
      %v743 = vsel %vm741, %v663, 0.0
      %v744 = vadd.f32 %v742, %v743
      %v745 = vsel %vm741, %v665, 0.0
      %v746 = vadd.f32 %v744, %v745
      %v747 = vsel %vm741, %v667, 0.0
      %v748 = vadd.f32 %v746, %v747
      %v749 = vrot.slane %v748, 4
      %v750 = vadd.f32 %v748, %v749
      %v751 = vrot.slane %v750, 2
      %v752 = vadd.f32 %v750, %v751
      %v753 = vrot.slane %v752, 1
      %v754 = vadd.f32 %v752, %v753
      %v755 = vrcp.pop 16.0
      %v756 = vmul.f32 %v740, %v755
      %v757 = vmul.f32 %v754, %v755
      %v760 = vcombine.low %v756, %v757
      %v762 = vunpack.c.l.s4 1966171168
      %v763 = vunpack.c.0.s8 %v762
      %v764 = vlaneseq
      %v765 = vshrl.u32 %v764, 7
      %v766 = vsub.s32 %v763, %v765
      %v767 = vrot.slane %v760, %v766
      %v769 = vunpack.c.l.s4 1966171168
      %v770 = vunpack.c.0.s8 %v769
      %v771 = vlaneseq
      %v772 = vshrl.u32 %v771, 7
      %v773 = vsub.s32 %v770, %v772
      %v774 = vrot.slane %v767, %v773
      %v776 = vlaneseq
      %vm777 = vcmp.ge.s32.totalorder %v776, 0
      %vm778 = vcmp.lt.s32.totalorder %v776, 144
      %vm779 = vmand %vm777, %vm778
      %780 = vst.msk [vmem:[%s235] sm:$0x3] %vm779, %v774
      %p781 = scmp.lt.s32.totalorder %s17, 1
      %s782 = scalar_select %p781, %s17, 1
      %s783 = smul.addr %s782, 8
      %s784 = smul.addr %s783, 2
      %s785 = scalar_lea.vmem %s4, %s784
      %p786 = scmp.lt.s32.totalorder %s17, 1
      %s787 = scalar_select %p786, %s17, 1
      %s788 = smul.addr %s787, 2
      %s789 = scalar_lea.vmem %s5, %s788
      // Predicated region
      $region37: #{efficientnet_features_forward.16} parent=35 // pred_check
        %p790 = pneg %p124
      $region38: #{efficientnet_features_forward.16} parent=35 // pred_check_branch
        %792 = sbr.rel (%p790) target = $region40
      $region39: #{efficientnet_features_forward.16} parent=35 // pred_region
        _
      $region40: #{efficientnet_features_forward.16} parent=35 // pred_fallthru
        _
      // Predicated region
      $region41: #{efficientnet_features_forward.16} parent=35 // pred_check
        %p793 = pneg %p150
      $region42: #{efficientnet_features_forward.16} parent=35 // pred_check_branch
        %795 = sbr.rel (%p793) target = $region44
      $region43: #{efficientnet_features_forward.16} parent=35 // pred_region
        _
      $region44: #{efficientnet_features_forward.16} parent=35 // pred_fallthru
        _
    $region36: #{efficientnet_features_forward.16} parent=5 // pred_fallthru
      _
    %p796 = scmp.le.s32.totalorder 2, %s12
    // Predicated region
    $region45: #{efficientnet_features_forward.16} parent=5 // pred_check
      %p797 = pneg %p796
    $region46: #{efficientnet_features_forward.16} parent=5 // pred_check_branch
      %799 = sbr.rel (%p797) target = $region48
    $region47: #{efficientnet_features_forward.16} parent=5 // pred_region
      %s800 = ssub.s32 %s12, 2
      // Predicated region
      $region49: #{efficientnet_features_forward.16} parent=47 // pred_check
        %p801 = pneg %p130
      $region50: #{efficientnet_features_forward.16} parent=47 // pred_check_branch
        %803 = sbr.rel (%p801) target = $region52
      $region51: #{efficientnet_features_forward.16} parent=47 // pred_region
        %p804 = scmp.lt.s32.totalorder %s18, 1
        %s805 = scalar_select %p804, %s18, 1
        %s806 = smul.addr %s805, 8
        %s807 = smul.addr %s806, 2
        %s808 = scalar_lea.vmem %s4, %s807
      $region52: #{efficientnet_features_forward.16} parent=47 // pred_fallthru
        _
      // Predicated region
      $region53: #{efficientnet_features_forward.16} parent=47 // pred_check
        %p809 = pneg %p156
      $region54: #{efficientnet_features_forward.16} parent=47 // pred_check_branch
        %811 = sbr.rel (%p809) target = $region56
      $region55: #{efficientnet_features_forward.16} parent=47 // pred_region
        %p812 = scmp.lt.s32.totalorder %s18, 1
        %s813 = scalar_select %p812, %s18, 1
        %s814 = smul.addr %s813, 2
        %s815 = scalar_lea.vmem %s5, %s814
      $region56: #{efficientnet_features_forward.16} parent=47 // pred_fallthru
        _
    $region48: #{efficientnet_features_forward.16} parent=5 // pred_fallthru
      _
  $region6: #{efficientnet_features_forward.16} parent=0 // loop_footer
    %s16 = sadd.s32 1, %s12
  $region7: #{efficientnet_features_forward.16} parent=0 // loop_footer_branch
    %11 = sbr.rel target = $region3
  $region8: #{efficientnet_features_forward.16} parent=0 // loop_exit
    _

// kernel: efficientnet_features_forward.17
$region0: #{efficientnet_features_forward.17}
  #allocation0 [shape = 'u32[]', space=smem, size = 0x4, offset = 0x4, fixed_abs, tag = 'smem constant byte address 0x4 - core index']
  #allocation1 [shape = 'u32[144,128]{1,0:T(1,128)}', space=vmem, size = 0x12000, scoped, tag = 'internal scratch']
  %s0 = inlined_call_operand.vmem [shape: bf16[2,16,144], index: 0, kind: input, shape index: {}]
  %s1 = inlined_call_operand.vmem [shape: bf16[2,1,144], index: 1, kind: input, shape index: {}]
  %s2 = inlined_call_operand.vmem [shape: bf16[144,24], index: 2, kind: input, shape index: {}]
  %s3 = inlined_call_operand.vmem [shape: f32[1,24], index: 3, kind: input, shape index: {}]
  %s4 = inlined_call_operand.vmem [shape: f32[1,24], index: 4, kind: input, shape index: {}]
  %s5 = inlined_call_operand.vmem [shape: bf16[2,16,24], index: 5, kind: input, shape index: {}]
  %s6 = inlined_call_operand.vmem [shape: bf16[2,16,24], index: 6, kind: output, shape index: {}]
  %s7 = sld [smem:[#allocation0]]
  $region57: #{efficientnet_features_forward.17} parent=0
    _
  %s9 = ssub.s32 1, %s7
  %s10 = scalar_select 0, %s9, %s7
  loop: start=0, step=1, limit=4
  $region2: #{efficientnet_features_forward.17} parent=0 // loop_pre_header
    _
  $region3: #{efficientnet_features_forward.17} parent=0 // loop_header
    %s12 = sphi 0, %s16
    %p13 = scmp.ge.s32.totalorder %s12, 4
    %s19 = sphi 0, %s31
    %s20 = sphi 0, %s27
    %s21 = sphi 0, %s19
    %s22 = sphi 0, %s20
    %s23 = sphi 0, %s21
    %s24 = sphi 0, %s22
    %s36 = sphi 0, %s38
    %s39 = sphi 0, %s36
    %s40 = sphi 0, %s39
    %s56 = sphi 0, %s40
    %s62 = sphi 0, %s64
    %s65 = sphi 0, %s62
    %s66 = sphi 0, %s65
    %s82 = sphi 0, %s66
    %s86 = sphi 0, %s86
    %s88 = sphi 0, %s86
    %s89 = sphi 0, %s88
    %s103 = sphi 0, %s89
    %s107 = sphi 0, %s107
    %s109 = sphi 0, %s107
    %s110 = sphi 0, %s109
    %s124 = sphi 0, %s110
    %s128 = sphi 0, %s128
    %s130 = sphi 0, %s128
    %s131 = sphi 0, %s130
    %s145 = sphi 0, %s131
    %s153 = sphi 0, %s155
    %s156 = sphi 0, %s153
    %s157 = sphi 0, %s156
    %s173 = sphi 0, %s157
    %s181 = sphi 0, %s183
    %s184 = sphi 0, %s181
    %s185 = sphi 0, %s184
    %s201 = sphi 0, %s185
  $region4: #{efficientnet_features_forward.17} parent=0 // loop_header_branch
    %15 = sbr.rel (%p13) target = $region8
  $region5: #{efficientnet_features_forward.17} parent=0 // loop_body
    %s17 = ssub.s32 %s12, 1
    %s18 = ssub.s32 %s12, 2
    %s25 = sadd.s32 1, %s20
    %p26 = scmp.ge.s32.totalorder %s25, 1
    %s27 = scalar_select %p26, 0, %s25
    %s28 = sadd.s32 1, %s19
    %s29 = scalar_select %p26, %s28, %s19
    %p30 = scmp.ge.s32.totalorder %s29, 2
    %s31 = scalar_select %p30, 0, %s29
    %s32 = ssub.s32 %s19, %s31
    %s33 = ssub.s32 %s20, %s27
    %s34 = sor.u32 %s32, %s33
    %p35 = scmp.eq.s32.totalorder %s34, 0
    %s37 = sadd.s32 %s36, 1
    %s38 = scalar_select %p35, %s36, %s37
    %p41 = pneg %p35
    %p42 = scmp.eq.s32.totalorder %s12, 1
    %p43 = por %p41, %p42
    %p44 = scmp.ne.s32.totalorder %s36, %s39
    %p45 = scmp.eq.s32.totalorder %s12, 0
    %p46 = por %p44, %p45
    %p47 = scmp.ne.s32.totalorder %s36, %s39
    %p48 = scmp.eq.s32.totalorder %s17, 1
    %p49 = por %p47, %p48
    %p50 = scmp.ne.s32.totalorder %s39, %s40
    %p51 = scmp.eq.s32.totalorder %s17, 0
    %p52 = por %p50, %p51
    %p53 = scmp.ne.s32.totalorder %s39, %s40
    %p54 = scmp.eq.s32.totalorder %s18, 1
    %p55 = por %p53, %p54
    %p57 = scmp.ne.s32.totalorder %s40, %s56
    %p58 = scmp.eq.s32.totalorder %s18, 0
    %p59 = por %p57, %p58
    %s60 = ssub.s32 %s19, %s31
    %p61 = scmp.eq.s32.totalorder %s60, 0
    %s63 = sadd.s32 %s62, 1
    %s64 = scalar_select %p61, %s62, %s63
    %p67 = pneg %p61
    %p68 = scmp.eq.s32.totalorder %s12, 1
    %p69 = por %p67, %p68
    %p70 = scmp.ne.s32.totalorder %s62, %s65
    %p71 = scmp.eq.s32.totalorder %s12, 0
    %p72 = por %p70, %p71
    %p73 = scmp.ne.s32.totalorder %s62, %s65
    %p74 = scmp.eq.s32.totalorder %s17, 1
    %p75 = por %p73, %p74
    %p76 = scmp.ne.s32.totalorder %s65, %s66
    %p77 = scmp.eq.s32.totalorder %s17, 0
    %p78 = por %p76, %p77
    %p79 = scmp.ne.s32.totalorder %s65, %s66
    %p80 = scmp.eq.s32.totalorder %s18, 1
    %p81 = por %p79, %p80
    %p83 = scmp.ne.s32.totalorder %s66, %s82
    %p84 = scmp.eq.s32.totalorder %s18, 0
    %p85 = por %p83, %p84
    %s87 = sadd.s32 %s86, 1
    %p90 = scmp.eq.s32.totalorder %s12, 1
    %p91 = scmp.ne.s32.totalorder %s86, %s88
    %p92 = scmp.eq.s32.totalorder %s12, 0
    %p93 = por %p91, %p92
    %p94 = scmp.ne.s32.totalorder %s86, %s88
    %p95 = scmp.eq.s32.totalorder %s17, 1
    %p96 = por %p94, %p95
    %p97 = scmp.ne.s32.totalorder %s88, %s89
    %p98 = scmp.eq.s32.totalorder %s17, 0
    %p99 = por %p97, %p98
    %p100 = scmp.ne.s32.totalorder %s88, %s89
    %p101 = scmp.eq.s32.totalorder %s18, 1
    %p102 = por %p100, %p101
    %p104 = scmp.ne.s32.totalorder %s89, %s103
    %p105 = scmp.eq.s32.totalorder %s18, 0
    %p106 = por %p104, %p105
    %s108 = sadd.s32 %s107, 1
    %p111 = scmp.eq.s32.totalorder %s12, 1
    %p112 = scmp.ne.s32.totalorder %s107, %s109
    %p113 = scmp.eq.s32.totalorder %s12, 0
    %p114 = por %p112, %p113
    %p115 = scmp.ne.s32.totalorder %s107, %s109
    %p116 = scmp.eq.s32.totalorder %s17, 1
    %p117 = por %p115, %p116
    %p118 = scmp.ne.s32.totalorder %s109, %s110
    %p119 = scmp.eq.s32.totalorder %s17, 0
    %p120 = por %p118, %p119
    %p121 = scmp.ne.s32.totalorder %s109, %s110
    %p122 = scmp.eq.s32.totalorder %s18, 1
    %p123 = por %p121, %p122
    %p125 = scmp.ne.s32.totalorder %s110, %s124
    %p126 = scmp.eq.s32.totalorder %s18, 0
    %p127 = por %p125, %p126
    %s129 = sadd.s32 %s128, 1
    %p132 = scmp.eq.s32.totalorder %s12, 1
    %p133 = scmp.ne.s32.totalorder %s128, %s130
    %p134 = scmp.eq.s32.totalorder %s12, 0
    %p135 = por %p133, %p134
    %p136 = scmp.ne.s32.totalorder %s128, %s130
    %p137 = scmp.eq.s32.totalorder %s17, 1
    %p138 = por %p136, %p137
    %p139 = scmp.ne.s32.totalorder %s130, %s131
    %p140 = scmp.eq.s32.totalorder %s17, 0
    %p141 = por %p139, %p140
    %p142 = scmp.ne.s32.totalorder %s130, %s131
    %p143 = scmp.eq.s32.totalorder %s18, 1
    %p144 = por %p142, %p143
    %p146 = scmp.ne.s32.totalorder %s131, %s145
    %p147 = scmp.eq.s32.totalorder %s18, 0
    %p148 = por %p146, %p147
    %s149 = ssub.s32 %s19, %s31
    %s150 = ssub.s32 %s20, %s27
    %s151 = sor.u32 %s149, %s150
    %p152 = scmp.eq.s32.totalorder %s151, 0
    %s154 = sadd.s32 %s153, 1
    %s155 = scalar_select %p152, %s153, %s154
    %p158 = pneg %p152
    %p159 = scmp.eq.s32.totalorder %s12, 1
    %p160 = por %p158, %p159
    %p161 = scmp.ne.s32.totalorder %s153, %s156
    %p162 = scmp.eq.s32.totalorder %s12, 0
    %p163 = por %p161, %p162
    %p164 = scmp.ne.s32.totalorder %s153, %s156
    %p165 = scmp.eq.s32.totalorder %s17, 1
    %p166 = por %p164, %p165
    %p167 = scmp.ne.s32.totalorder %s156, %s157
    %p168 = scmp.eq.s32.totalorder %s17, 0
    %p169 = por %p167, %p168
    %p170 = scmp.ne.s32.totalorder %s156, %s157
    %p171 = scmp.eq.s32.totalorder %s18, 1
    %p172 = por %p170, %p171
    %p174 = scmp.ne.s32.totalorder %s157, %s173
    %p175 = scmp.eq.s32.totalorder %s18, 0
    %p176 = por %p174, %p175
    %s177 = ssub.s32 %s19, %s31
    %s178 = ssub.s32 %s20, %s27
    %s179 = sor.u32 %s177, %s178
    %p180 = scmp.eq.s32.totalorder %s179, 0
    %s182 = sadd.s32 %s181, 1
    %s183 = scalar_select %p180, %s181, %s182
    %p186 = pneg %p180
    %p187 = scmp.eq.s32.totalorder %s12, 1
    %p188 = por %p186, %p187
    %p189 = scmp.ne.s32.totalorder %s181, %s184
    %p190 = scmp.eq.s32.totalorder %s12, 0
    %p191 = por %p189, %p190
    %p192 = scmp.ne.s32.totalorder %s181, %s184
    %p193 = scmp.eq.s32.totalorder %s17, 1
    %p194 = por %p192, %p193
    %p195 = scmp.ne.s32.totalorder %s184, %s185
    %p196 = scmp.eq.s32.totalorder %s17, 0
    %p197 = por %p195, %p196
    %p198 = scmp.ne.s32.totalorder %s184, %s185
    %p199 = scmp.eq.s32.totalorder %s18, 1
    %p200 = por %p198, %p199
    %p202 = scmp.ne.s32.totalorder %s185, %s201
    %p203 = scmp.eq.s32.totalorder %s18, 0
    %p204 = por %p202, %p203
    %p205 = scmp.le.s32.totalorder 1, %s12
    %p206 = scmp.lt.s32.totalorder %s12, 3
    %p207 = pnand %p205, %p206
    %p208 = pneg %p207
    // Predicated region
    $region9: #{efficientnet_features_forward.17} parent=5 // pred_check
      _
    $region10: #{efficientnet_features_forward.17} parent=5 // pred_check_branch
      %210 = sbr.rel (%p207) target = $region12
    $region11: #{efficientnet_features_forward.17} parent=5 // pred_region
      %s211 = ssub.s32 %s12, 1
      // Predicated region
      $region13: #{efficientnet_features_forward.17} parent=11 // pred_check
        %p212 = pneg %p99
      $region14: #{efficientnet_features_forward.17} parent=11 // pred_check_branch
        %214 = sbr.rel (%p212) target = $region16
      $region15: #{efficientnet_features_forward.17} parent=11 // pred_region
        _
      $region16: #{efficientnet_features_forward.17} parent=11 // pred_fallthru
        _
      // Predicated region
      $region17: #{efficientnet_features_forward.17} parent=11 // pred_check
        %p215 = pneg %p120
      $region18: #{efficientnet_features_forward.17} parent=11 // pred_check_branch
        %217 = sbr.rel (%p215) target = $region20
      $region19: #{efficientnet_features_forward.17} parent=11 // pred_region
        _
      $region20: #{efficientnet_features_forward.17} parent=11 // pred_fallthru
        _
      // Predicated region
      $region21: #{efficientnet_features_forward.17} parent=11 // pred_check
        %p218 = pneg %p141
      $region22: #{efficientnet_features_forward.17} parent=11 // pred_check_branch
        %220 = sbr.rel (%p218) target = $region24
      $region23: #{efficientnet_features_forward.17} parent=11 // pred_region
        _
      $region24: #{efficientnet_features_forward.17} parent=11 // pred_fallthru
        _
    $region12: #{efficientnet_features_forward.17} parent=5 // pred_fallthru
      _
    %p221 = scmp.lt.s32.totalorder %s12, 2
    // Predicated region
    $region25: #{efficientnet_features_forward.17} parent=5 // pred_check
      %p222 = pneg %p221
    $region26: #{efficientnet_features_forward.17} parent=5 // pred_check_branch
      %224 = sbr.rel (%p222) target = $region28
    $region27: #{efficientnet_features_forward.17} parent=5 // pred_region
      // Predicated region
      $region29: #{efficientnet_features_forward.17} parent=27 // pred_check
        %p225 = pneg %p46
      $region30: #{efficientnet_features_forward.17} parent=27 // pred_check_branch
        %227 = sbr.rel (%p225) target = $region32
      $region31: #{efficientnet_features_forward.17} parent=27 // pred_region
        %s228 = smul.u32 2, %s20
        %p229 = scmp.lt.s32.totalorder %s19, 1
        %s230 = scalar_select %p229, %s19, 1
        %p231 = scmp.lt.s32.totalorder %s228, 1
        %s232 = scalar_select %p231, %s228, 1
        %s233 = smul.addr %s232, 2
        %s234 = smul.addr %s230, 4
        %s235 = sadd.s32 %s233, %s234
        %s236 = smul.addr %s235, 4
        %s237 = scalar_lea.vmem %s0, %s236
        %s238 = smul.u32 2, %s20
      $region32: #{efficientnet_features_forward.17} parent=27 // pred_fallthru
        _
      // Predicated region
      $region33: #{efficientnet_features_forward.17} parent=27 // pred_check
        %p239 = pneg %p72
      $region34: #{efficientnet_features_forward.17} parent=27 // pred_check_branch
        %241 = sbr.rel (%p239) target = $region36
      $region35: #{efficientnet_features_forward.17} parent=27 // pred_region
        %p242 = scmp.lt.s32.totalorder %s19, 1
        %s243 = scalar_select %p242, %s19, 1
        %s244 = smul.addr %s243, 2
        %s245 = scalar_lea.vmem %s1, %s244
      $region36: #{efficientnet_features_forward.17} parent=27 // pred_fallthru
        _
      // Predicated region
      $region37: #{efficientnet_features_forward.17} parent=27 // pred_check
        %p246 = pneg %p163
      $region38: #{efficientnet_features_forward.17} parent=27 // pred_check_branch
        %248 = sbr.rel (%p246) target = $region40
      $region39: #{efficientnet_features_forward.17} parent=27 // pred_region
        %s249 = smul.u32 2, %s20
        %p250 = scmp.lt.s32.totalorder %s19, 1
        %s251 = scalar_select %p250, %s19, 1
        %p252 = scmp.lt.s32.totalorder %s249, 1
        %s253 = scalar_select %p252, %s249, 1
        %s254 = smul.addr %s251, 2
        %s255 = sadd.s32 %s253, %s254
        %s256 = smul.addr %s255, 4
        %s257 = scalar_lea.vmem %s5, %s256
        %s258 = smul.u32 2, %s20
      $region40: #{efficientnet_features_forward.17} parent=27 // pred_fallthru
        _
    $region28: #{efficientnet_features_forward.17} parent=5 // pred_fallthru
      _
    %p259 = scmp.le.s32.totalorder 1, %s12
    %p260 = scmp.lt.s32.totalorder %s12, 3
    %p261 = pnand %p259, %p260
    %p262 = pneg %p261
    // Predicated region
    $region41: #{efficientnet_features_forward.17} parent=5 // pred_check
      _
    $region42: #{efficientnet_features_forward.17} parent=5 // pred_check_branch
      %264 = sbr.rel (%p261) target = $region44
    $region43: #{efficientnet_features_forward.17} parent=5 // pred_region
      %s265 = ssub.s32 %s12, 1
      %s266 = smul.u32 2, %s22
      %p267 = scmp.lt.s32.totalorder %s21, 1
      %s268 = scalar_select %p267, %s21, 1
      %p269 = scmp.lt.s32.totalorder %s266, 1
      %s270 = scalar_select %p269, %s266, 1
      %s271 = smul.addr %s270, 2
      %s272 = smul.addr %s268, 4
      %s273 = sadd.s32 %s271, %s272
      %s274 = smul.addr %s273, 4
      %s275 = scalar_lea.vmem %s0, %s274
      %p276 = pneg %p52
      %p277 = pneg %p49
      %p278 = scmp.lt.s32.totalorder %s21, 1
      %s279 = scalar_select %p278, %s21, 1
      %s280 = smul.addr %s279, 2
      %s281 = scalar_lea.vmem %s1, %s280
      %p282 = pneg %p78
      %p283 = pneg %p75
      %p284 = pneg %p99
      %p285 = pneg %p96
      %p286 = pneg %p120
      %p287 = pneg %p117
      %p288 = pneg %p141
      %p289 = pneg %p138
      %s290 = smul.u32 2, %s22
      %p291 = scmp.lt.s32.totalorder %s21, 1
      %s292 = scalar_select %p291, %s21, 1
      %p293 = scmp.lt.s32.totalorder %s290, 1
      %s294 = scalar_select %p293, %s290, 1
      %s295 = smul.addr %s292, 2
      %s296 = sadd.s32 %s294, %s295
      %s297 = smul.addr %s296, 4
      %s298 = scalar_lea.vmem %s5, %s297
      %p299 = pneg %p169
      %p300 = pneg %p166
      %p301 = pneg %p197
      %p302 = pneg %p194
      %s303 = smul.u32 2, %s22
      %p304 = scmp.lt.s32.totalorder %s21, 1
      %s305 = scalar_select %p304, %s21, 1
      %p306 = scmp.lt.s32.totalorder %s303, 1
      %s307 = scalar_select %p306, %s303, 1
      %s308 = smul.addr %s305, 2
      %s309 = sadd.s32 %s307, %s308
      %s310 = smul.addr %s309, 4
      %s311 = scalar_lea.vmem %s6, %s310
      %s312 = smul.u32 2, %s22
      %p313 = scmp.lt.s32.totalorder %s21, 1
      %s314 = scalar_select %p313, %s21, 1
      %p315 = scmp.lt.s32.totalorder %s312, 1
      %s316 = scalar_select %p315, %s312, 1
      %s317 = smul.addr %s316, 2
      %s318 = smul.addr %s314, 4
      %s319 = sadd.s32 %s317, %s318
      %s320 = smul.addr %s319, 4
      %s321 = scalar_lea.vmem %s0, %s320
      %s322 = smul.u32 2, %s22
      %p323 = scmp.lt.s32.totalorder %s21, 1
      %s324 = scalar_select %p323, %s21, 1
      %s325 = smul.addr %s324, 2
      %s326 = scalar_lea.vmem %s1, %s325
      %s327 = smul.u32 2, %s22
      %p328 = scmp.lt.s32.totalorder %s21, 1
      %s329 = scalar_select %p328, %s21, 1
      %p330 = scmp.lt.s32.totalorder %s327, 1
      %s331 = scalar_select %p330, %s327, 1
      %s332 = smul.addr %s329, 2
      %s333 = sadd.s32 %s331, %s332
      %s334 = smul.addr %s333, 4
      %s335 = scalar_lea.vmem %s5, %s334
      %s336 = smul.u32 2, %s22
      %s337 = smul.u32 2, %s22
      %p338 = scmp.lt.s32.totalorder %s21, 1
      %s339 = scalar_select %p338, %s21, 1
      %p340 = scmp.lt.s32.totalorder %s337, 1
      %s341 = scalar_select %p340, %s337, 1
      %s342 = smul.addr %s339, 2
      %s343 = sadd.s32 %s341, %s342
      %s344 = smul.addr %s343, 4
      %s345 = scalar_lea.vmem %s6, %s344
      %s346 = smul.u32 2, %s22
      %v348 = vld [vmem:[%s321] sm:$0xff]
      %v349 = vld [vmem:[%s321 + $0x8] sm:$0xff]
      %v350 = vld [vmem:[%s326] sm:$0x3]
      %v353 = vunpack.c.l.s4 1966171168
      %v354 = vunpack.c.0.s8 %v353
      %v355 = vlaneseq
      %v356 = vshrl.u32 %v355, 7
      %v357 = vsub.s32 %v354, %v356
      %v358 = vrot.slane %v350, %v357
      %v359 = vcombine.high %v358, %v358
      %v361 = vunpack.c.l.s4 1966171168
      %v362 = vunpack.c.0.s8 %v361
      %v363 = vlaneseq
      %v364 = vshrl.u32 %v363, 7
      %v365 = vsub.s32 %v362, %v364
      %v366 = vrot.slane %v358, %v365
      %v368 = vunpack.c.l.s4 1966171168
      %v369 = vunpack.c.0.s8 %v368
      %v370 = vlaneseq
      %v371 = vshrl.u32 %v370, 7
      %v372 = vsub.s32 %v369, %v371
      %v373 = vrot.slane %v359, %v372
      %v375 = vpack.i.b16 %v366, %v366
      %v377 = vlaneseq
      %v378 = vshrl.u32 %v377, 7
      %v379 = vsub.s32 0, %v378
      %v380 = vrot.slane %v375, %v379
      %v382 = vpack.i.b16 %v373, %v373
      %v384 = vlaneseq
      %v385 = vshrl.u32 %v384, 7
      %v386 = vsub.s32 0, %v385
      %v387 = vrot.slane %v382, %v386
      %v390 = vunpack.c.l.b16 %v380
      %v391 = vunpack.c.l.b16 %v387
      %v392 = vpack.c.b16 %v391, %v390
      %v394 = vmul.bf16 %v348, %v392
      %v395 = vmul.bf16 %v349, %v392
      %v396 = vld [vmem:[%s2] sm:$0xf]
      %v397 = vld [vmem:[%s2 + $0x4] sm:$0xf]
      %v398 = vld [vmem:[%s2 + $0x8] sm:$0xf]
      %v399 = vld [vmem:[%s2 + $0xc] sm:$0xf]
      %v400 = vld [vmem:[%s2 + $0x10] sm:$0xf]
      %v401 = vld [vmem:[%s2 + $0x14] sm:$0xf]
      %v402 = vld [vmem:[%s2 + $0x18] sm:$0xf]
      %v403 = vld [vmem:[%s2 + $0x1c] sm:$0xf]
      %v404 = vld [vmem:[%s2 + $0x20] sm:$0xf]
      %v405 = vld [vmem:[%s2 + $0x24] sm:$0xf]
      %v406 = vld [vmem:[%s2 + $0x28] sm:$0xf]
      %v407 = vld [vmem:[%s2 + $0x2c] sm:$0xf]
      %v408 = vld [vmem:[%s2 + $0x30] sm:$0xf]
      %v409 = vld [vmem:[%s2 + $0x34] sm:$0xf]
      %v410 = vld [vmem:[%s2 + $0x38] sm:$0xf]
      %v411 = vld [vmem:[%s2 + $0x3c] sm:$0xf]
      %v412 = vld [vmem:[%s2 + $0x40] sm:$0xf]
      %v413 = vld [vmem:[%s2 + $0x44] sm:$0xf]
      %v416 = vunpack.c.l.b16 %v394
      %v417 = vunpack.c.h.b16 %v394
      %v418 = vunpack.c.l.b16 %v395
      %v419 = vunpack.c.h.b16 %v395
      %v420 = vpack.c.b16 %v418, %v416
      %v421 = vpack.c.b16 %v419, %v417
      %v441 = vunpack.c.l.b16 %v396
      %v442 = vunpack.c.l.b16 %v397
      %v443 = vunpack.c.l.b16 %v398
      %v444 = vunpack.c.l.b16 %v399
      %v445 = vunpack.c.l.b16 %v400
      %v446 = vunpack.c.l.b16 %v401
      %v447 = vunpack.c.l.b16 %v402
      %v448 = vunpack.c.l.b16 %v403
      %v449 = vunpack.c.l.b16 %v404
      %v450 = vunpack.c.l.b16 %v405
      %v451 = vunpack.c.l.b16 %v406
      %v452 = vunpack.c.l.b16 %v407
      %v453 = vunpack.c.l.b16 %v408
      %v454 = vunpack.c.l.b16 %v409
      %v455 = vunpack.c.l.b16 %v410
      %v456 = vunpack.c.l.b16 %v411
      %v457 = vunpack.c.l.b16 %v412
      %v458 = vunpack.c.l.b16 %v413
      %v459 = vpack.c.b16 %v442, %v441
      %v460 = vpack.c.b16 %v444, %v443
      %v461 = vpack.c.b16 %v446, %v445
      %v462 = vpack.c.b16 %v448, %v447
      %v463 = vpack.c.b16 %v450, %v449
      %v464 = vpack.c.b16 %v452, %v451
      %v465 = vpack.c.b16 %v454, %v453
      %v466 = vpack.c.b16 %v456, %v455
      %v467 = vpack.c.b16 %v458, %v457
      %vm477 = vcmask 130048
      %v479 = vsel %vm477, %v421, 0
      %481 = vmatprep.subr.bf16.mxu0 0
      %482 = vmatpush1.bf16.msra.mxu0 %v459
      %483 = vmatprep.subr.bf16.mxu0 0
      %484 = vmatpush1.bf16.msra.mxu0 %v460
      %485 = vmatprep.subr.bf16.mxu0 0
      %486 = vmatpush1.bf16.msra.mxu0 %v461
      %487 = vmatprep.subr.bf16.mxu0 0
      %488 = vmatpush1.bf16.msra.mxu0 %v462
      %489 = vmatprep.subr.bf16.mxu0 0
      %490 = vmatpush1.bf16.msra.mxu0 %v463
      %491 = vmatprep.subr.bf16.mxu0 0
      %492 = vmatpush1.bf16.msra.mxu0 %v464
      %493 = vmatprep.subr.bf16.mxu0 0
      %494 = vmatpush1.bf16.msra.mxu0 %v465
      %495 = vmatprep.subr.bf16.mxu0 0
      %496 = vmatpush1.bf16.msra.mxu0 %v466
      %497 = vmatprep.subr.bf16.mxu0 0
      %498 = vmatpush1.bf16.msra.mxu0 %v467
      %499 = vmatprep.subr.bf16.mxu0 0
      %500 = vmatpush1.bf16.msra.mxu0 0
      %501 = vmatprep.subr.bf16.mxu0 0
      %502 = vmatpush1.bf16.msra.mxu0 0
      %503 = vmatprep.subr.bf16.mxu0 0
      %504 = vmatpush1.bf16.msra.mxu0 0
      %505 = vmatprep.subr.bf16.mxu0 0
      %506 = vmatpush1.bf16.msra.mxu0 0
      %507 = vmatprep.subr.bf16.mxu0 0
      %508 = vmatpush1.bf16.msra.mxu0 0
      %509 = vmatprep.subr.bf16.mxu0 0
      %510 = vmatpush1.bf16.msra.mxu0 0
      %511 = vmatprep.subr.bf16.mxu0 0
      %512 = vmatpush1.bf16.msra.mxu0 0
      %513 = vmatprep.mubr.bf16.mxu0 %v479
      %514 = vmatmul.mubr.bf16.gmra.mrb[0].mxu0 %v420
      %v515 = vpop.f32.mrb[0].mxu0
      %v516 = vadd.f32 0.0, %v515
      %v517 = vpop.f32.mrb[0].mxu0
      %v518 = vpop.f32.mrb[0].mxu0
      %v519 = vadd.f32 0.0, %v518
      %v520 = vpop.f32.mrb[0].mxu0
      %521 = vdwg.mxu0
      %v522 = vld [vmem:[%s3] sm:$0x1]
      %v524 = vlaneseq
      %v525 = vshrl.u32 %v524, 7
      %v526 = vsub.s32 0, %v525
      %v527 = vrot.slane %v522, %v526
      %v529 = vmul.f32 %v516, %v527
      %v530 = vmul.f32 %v519, %v527
      %v531 = vld [vmem:[%s4] sm:$0x1]
      %v533 = vlaneseq
      %v534 = vshrl.u32 %v533, 7
      %v535 = vsub.s32 0, %v534
      %v536 = vrot.slane %v531, %v535
      %v538 = vadd.f32 %v529, %v536
      %v539 = vadd.f32 %v530, %v536
      %v540 = vld [vmem:[%s335] sm:$0xf]
      %v541 = vld [vmem:[%s335 + $0x4] sm:$0xf]
      %v542 = vunpack.c.l.bf16 %v540
      %v543 = vunpack.c.l.bf16 %v541
      %v544 = vadd.f32 %v538, %v542
      %v545 = vadd.f32 %v539, %v543
      %v546 = vpack.c.bf16 %v545, %v544
      %v548 = vunpack.c.l.b16 %v546
      %v549 = vunpack.c.h.b16 %v546
      %v550 = vpack.c.b16 %v548, %v548
      %v551 = vpack.c.b16 %v549, %v549
      %vm554 = vcmask 191488
      %555 = vst.msk [vmem:[%s345] sm:$0xf] %vm554, %v550
      %556 = vst.msk [vmem:[%s345 + $0x4] sm:$0xf] %vm554, %v551
      %s557 = smul.u32 2, %s22
      %p558 = scmp.lt.s32.totalorder %s21, 1
      %s559 = scalar_select %p558, %s21, 1
      %p560 = scmp.lt.s32.totalorder %s557, 1
      %s561 = scalar_select %p560, %s557, 1
      %s562 = smul.addr %s559, 2
      %s563 = sadd.s32 %s561, %s562
      %s564 = smul.addr %s563, 4
      %s565 = scalar_lea.vmem %s6, %s564
      // Predicated region
      $region45: #{efficientnet_features_forward.17} parent=43 // pred_check
        %p566 = pneg %p194
      $region46: #{efficientnet_features_forward.17} parent=43 // pred_check_branch
        %568 = sbr.rel (%p566) target = $region48
      $region47: #{efficientnet_features_forward.17} parent=43 // pred_region
        %s569 = smul.u32 2, %s22
      $region48: #{efficientnet_features_forward.17} parent=43 // pred_fallthru
        _
    $region44: #{efficientnet_features_forward.17} parent=5 // pred_fallthru
      _
    %p570 = scmp.le.s32.totalorder 2, %s12
    // Predicated region
    $region49: #{efficientnet_features_forward.17} parent=5 // pred_check
      %p571 = pneg %p570
    $region50: #{efficientnet_features_forward.17} parent=5 // pred_check_branch
      %573 = sbr.rel (%p571) target = $region52
    $region51: #{efficientnet_features_forward.17} parent=5 // pred_region
      %s574 = ssub.s32 %s12, 2
      // Predicated region
      $region53: #{efficientnet_features_forward.17} parent=51 // pred_check
        %p575 = pneg %p200
      $region54: #{efficientnet_features_forward.17} parent=51 // pred_check_branch
        %577 = sbr.rel (%p575) target = $region56
      $region55: #{efficientnet_features_forward.17} parent=51 // pred_region
        %s578 = smul.u32 2, %s24
        %p579 = scmp.lt.s32.totalorder %s23, 1
        %s580 = scalar_select %p579, %s23, 1
        %p581 = scmp.lt.s32.totalorder %s578, 1
        %s582 = scalar_select %p581, %s578, 1
        %s583 = smul.addr %s580, 2
        %s584 = sadd.s32 %s582, %s583
        %s585 = smul.addr %s584, 4
        %s586 = scalar_lea.vmem %s6, %s585
      $region56: #{efficientnet_features_forward.17} parent=51 // pred_fallthru
        _
    $region52: #{efficientnet_features_forward.17} parent=5 // pred_fallthru
      _
  $region6: #{efficientnet_features_forward.17} parent=0 // loop_footer
    %s16 = sadd.s32 1, %s12
  $region7: #{efficientnet_features_forward.17} parent=0 // loop_footer_branch
    %11 = sbr.rel target = $region3
  $region8: #{efficientnet_features_forward.17} parent=0 // loop_exit
    _

</llo_original>
